<compile_context>
chip_gen: v7x
topology: tpu7x:2x2x1
jax: 0.10.0
libtpu: 0.0.40
codegen_flags: <defaults>
</compile_context>

<pallas_src>
import math

import jax
import jax.numpy as jnp
import numpy as np
from jax import lax
from jax.experimental import pallas as pl
from jax.experimental.pallas import tpu as pltpu

# ---------------- model hyper-parameters (small, forward-consistent) ----------------
S = 8            # tgt_len / sequence length
B = 2            # batch size
D = 32           # dim_model == dim_embed
H = 2            # num_heads
DH = 16          # dim_head   (H * DH == D)
D_INNER = 64     # dim_inner
V = 50           # num_tokens
N_LAYERS = 2     # num_layers
EPS = 1e-5       # torch.nn.LayerNorm default eps

BS = B * S       # tokens per step
HD = H * DH      # 32
HB = H * B       # combined (head, batch) einsum batch axis
DI_P = 128       # dim_inner padded to a full lane tile (zero pad is exact through ReLU)
V_P = 128        # vocab padded to a full lane tile (pads masked via -1e30 bias)
NEG = -1e30
SCALE = 1.0 / math.sqrt(DH)


# -------- host-precomputed constant: pre-shifted positional embeddings ---------------
def _build_pos_shift_t():
    # PositionalEmbedding over descending positions (clamp_len=-1)
    pos_seq = np.arange(S - 1, -1, -1, dtype=np.float32)
    inv_freq = 1.0 / (10000.0 ** (np.arange(0, D, 2, dtype=np.float32) / D))
    sinusoid = pos_seq[:, None] * inv_freq[None, :]
    pos_emb = np.concatenate([np.sin(sinusoid), np.cos(sinusoid)], axis=-1)   # (S, D)
    # Transformer-XL _rel_shift (mem_len=0): BD[q, j] uses position index j - q + S - 1.
    # Pre-shift the positions themselves so no selector / shift is needed in-kernel.
    # j > q entries are clamped (garbage in PyTorch too) and killed by the causal mask.
    q = np.arange(S)[:, None]
    j = np.arange(S)[None, :]
    idx = np.clip(j - q + S - 1, 0, S - 1)                                    # (S, S)
    shifted = pos_emb[idx].reshape(S * S, D)                                  # (S*S, D)
    return jnp.asarray(shifted.T, dtype=jnp.bfloat16)                         # (D, S*S)


POS_SHIFT_T = _build_pos_shift_t()


def _layernorm(x, g, b):
    # fused moments: E[x] and E[x^2] in one pass, var = E[x^2] - mu^2
    mu = jnp.mean(x, axis=-1, keepdims=True)
    ms = jnp.mean(x * x, axis=-1, keepdims=True)
    var = jnp.maximum(ms - mu * mu, 0.0)
    return (x - mu) * lax.rsqrt(var + EPS) * g + b


# --------------- fused Pallas kernel: all decoder layers + criterion ------------------
def transformer_xl_kernel(h0_ref, posr_ref, qkb_ref,
                          wqkv_ref, wr_ref, wo_ref,
                          lnp_ref, bff1_ref, wff1_ref, wff2_ref,
                          wt_ref, obias_ref, tgt_ref,
                          loss_ref):
    f32, bf16 = jnp.float32, jnp.bfloat16

    hidden = h0_ref[...]                               # (BS, D) f32 residual stream
    pos_shift_t = posr_ref[...]                        # (D, S*S) bf16 pre-shifted positions

    # ---- loop-invariant constants generated in-kernel (no extra DMA descriptors) ----
    qi = lax.broadcasted_iota(jnp.int32, (S, S), 0)
    ji = lax.broadcasted_iota(jnp.int32, (S, S), 1)
    causal_mask = jnp.where(ji <= qi, 0.0, NEG)                               # (S, S)

    # per-query-row column selector for the pre-shifted BD matmul (0/1, no div/mod ops)
    rowq = lax.broadcasted_iota(jnp.int32, (S, S * S), 0)
    colc = lax.broadcasted_iota(jnp.int32, (S, S * S), 1)
    qsel = jnp.where((colc >= rowq * S) & (colc < rowq * S + S), 1.0, 0.0)    # (S, S*S)

    # fold matrix: FOLD[q'*S + j, j'] = [j == j'] (exact 0/1, bf16 for the MXU)
    eye = jnp.where(qi == ji, 1.0, 0.0)                                       # (S, S)
    fold = jnp.concatenate([eye] * S, axis=0).astype(bf16)                    # (S*S, S)

    for l in range(N_LAYERS):       # N_LAYERS=2: static unroll; hidden stays in VMEM
        hid_bf = hidden.astype(bf16)

        rwq_heads, k_heads, v_heads, bd_heads = [], [], [], []
        for h in range(H):
            # per-head projections: plain 2D bf16 MXU dots, no lane slicing
            w_q = wqkv_ref[(l * 3 + 0) * H + h]        # (D, DH) bf16
            w_k = wqkv_ref[(l * 3 + 1) * H + h]
            w_v = wqkv_ref[(l * 3 + 2) * H + h]
            q_h = jnp.dot(hid_bf, w_q, preferred_element_type=f32)            # (BS, DH)
            k_h = jnp.dot(hid_bf, w_k, preferred_element_type=f32)
            v_h = jnp.dot(hid_bf, w_v, preferred_element_type=f32)
            rw_q = q_h + qkb_ref[h]                    # + r_w_bias[h]  (1, DH) broadcast
            rr_q = q_h + qkb_ref[H + h]                # + r_r_bias[h]

            # relative-position scores, selector-free:
            #   rbig[d, q*S + j] = r_net_h(pos_emb)[j - q + S - 1, d]
            rbig = jnp.dot(wr_ref[l * H + h], pos_shift_t,
                           preferred_element_type=f32)                        # (DH, S*S)
            bdbig = jnp.dot(rr_q.astype(bf16), rbig.astype(bf16),
                            preferred_element_type=f32)                       # (BS, S*S)
            sel = (bdbig.reshape(B, S, S * S) * qsel[None]).reshape(BS, S * S)
            bd_h = jnp.dot(sel.astype(bf16), fold,
                           preferred_element_type=f32)                        # (BS, S)

            rwq_heads.append(rw_q)
            k_heads.append(k_h)
            v_heads.append(v_h)
            bd_heads.append(bd_h)

        # assemble (H*B, S, .) batched operands via leading-axis concat (no lane slices,
        # no H/S transpose); cast to bf16 only at the MXU inputs
        rwq3 = jnp.concatenate(rwq_heads, axis=0).reshape(HB, S, DH).astype(bf16)
        k3 = jnp.concatenate(k_heads, axis=0).reshape(HB, S, DH).astype(bf16)
        v3 = jnp.concatenate(v_heads, axis=0).reshape(HB, S, DH).astype(bf16)
        bd3 = jnp.concatenate(bd_heads, axis=0).reshape(HB, S, S)             # f32

        # content scores, softmax and attention*V batched over (head, batch)
        ac3 = jnp.einsum('zqd,zkd->zqk', rwq3, k3,
                         preferred_element_type=f32)                          # (HB, S, S)
        score = (ac3 + bd3) * SCALE + causal_mask[None]                       # f32

        mx = jnp.max(score, axis=-1, keepdims=True)
        p = jnp.exp(score - mx)
        probs = p * pl.reciprocal(jnp.sum(p, axis=-1, keepdims=True), approx=True)

        pv3 = jnp.einsum('zqk,zkd->zqd', probs.astype(bf16), v3,
                         preferred_element_type=f32)                          # (HB, S, DH)

        # per-head output projection, accumulated (heads never concatenated on lanes)
        attn_out = jnp.zeros((BS, D), f32)
        for h in range(H):
            o_h = pv3[h * B:(h + 1) * B].reshape(BS, DH).astype(bf16)
            attn_out = attn_out + jnp.dot(o_h, wo_ref[l * H + h],
                                          preferred_element_type=f32)

        # post-lnorm residual (pre_lnorm=False)
        o1 = _layernorm(hidden + attn_out, lnp_ref[l * 5 + 0], lnp_ref[l * 5 + 1])

        # position-wise FF (dim_inner zero-padded to 128 lanes; exact through ReLU)
        ff = jnp.maximum(
            jnp.dot(o1.astype(bf16), wff1_ref[l], preferred_element_type=f32)
            + bff1_ref[l], 0.0)
        ff = jnp.dot(ff.astype(bf16), wff2_ref[l],
                     preferred_element_type=f32) + lnp_ref[l * 5 + 4]
        hidden = _layernorm(o1 + ff, lnp_ref[l * 5 + 2], lnp_ref[l * 5 + 3])

    # tied-weight full-softmax NLL criterion (vocab padded to 128 lanes, pads biased -1e30)
    logits = jnp.dot(hidden.astype(bf16), wt_ref[...],
                     preferred_element_type=f32) + obias_ref[...]             # (BS, V_P)
    mx = jnp.max(logits, axis=-1, keepdims=True)
    lse = mx + jnp.log(jnp.sum(jnp.exp(logits - mx), axis=-1, keepdims=True))
    vocab_ids = lax.broadcasted_iota(jnp.int32, (BS, V_P), 1)
    picked = jnp.sum(jnp.where(vocab_ids == tgt_ref[...], logits, 0.0),
                     axis=-1, keepdims=True)
    loss_ref[...] = lse - picked          # -log_softmax(logits)[target]


# --------------------------------- wrappers ---------------------------------------
def init_model_params(key):
    ks = jax.random.split(key, 8)
    nrm = lambda k, shp: 0.02 * jax.random.normal(k, shp, jnp.float32)
    return {
        "embedding": nrm(ks[0], (V, D)),              # AdaptiveEmbedding (div_val=1) weight
        "bias_q": nrm(ks[1], (H, DH)),                # r_w_bias
        "bias_k": nrm(ks[2], (H, DH)),                # r_r_bias
        "out_bias": jnp.zeros((V,), jnp.float32),     # criterion out_layer bias
        "w_qkv": nrm(ks[3], (N_LAYERS, D, 3 * HD)),   # qkv_net (no bias), (in, out)
        "w_r":   nrm(ks[4], (N_LAYERS, HD, D)),       # r_net   (no bias), PyTorch (out, in)
        "w_o":   nrm(ks[5], (N_LAYERS, HD, D)),       # o_net   (no bias), (in, out)
        "ln1_g": jnp.ones((N_LAYERS, 1, D), jnp.float32),
        "ln1_b": jnp.zeros((N_LAYERS, 1, D), jnp.float32),
        "w_ff1": nrm(ks[6], (N_LAYERS, D, D_INNER)),
        "b_ff1": jnp.zeros((N_LAYERS, 1, D_INNER), jnp.float32),
        "w_ff2": nrm(ks[7], (N_LAYERS, D_INNER, D)),
        "b_ff2": jnp.zeros((N_LAYERS, 1, D), jnp.float32),
        "ln2_g": jnp.ones((N_LAYERS, 1, D), jnp.float32),
        "ln2_b": jnp.zeros((N_LAYERS, 1, D), jnp.float32),
    }


def prepare_params(params):
    """One-time pack / pad / cast (outside the per-step jit): per-head weight stacking
    on leading axes, lane-dense padding, bf16 MXU operands, LN/bias slabs."""
    bf16 = jnp.bfloat16
    # qkv_net weight split (3, H) onto the leading axis -> no lane slicing in-kernel
    w_qkv = params["w_qkv"].reshape(N_LAYERS, D, 3, H, DH)
    w_qkv = jnp.transpose(w_qkv, (0, 2, 3, 1, 4)).reshape(N_LAYERS * 3 * H, D, DH)
    w_r = params["w_r"].reshape(N_LAYERS * H, DH, D)          # per-head r_net, (DH, D)
    w_o = params["w_o"].reshape(N_LAYERS * H, DH, D)          # per-head o_net, (DH, D)
    qk_bias = jnp.concatenate([params["bias_q"], params["bias_k"]],
                              axis=0).reshape(2 * H, 1, DH)   # [r_w per head | r_r per head]
    ln_slab = jnp.stack([params["ln1_g"], params["ln1_b"],
                         params["ln2_g"], params["ln2_b"],
                         params["b_ff2"]], axis=1).reshape(N_LAYERS * 5, 1, D)
    # lane-dense padding: dim_inner -> 128 (exact), vocab -> 128 (masked via -1e30 bias)
    w_ff1 = jnp.pad(params["w_ff1"], ((0, 0), (0, 0), (0, DI_P - D_INNER)))
    b_ff1 = jnp.pad(params["b_ff1"], ((0, 0), (0, 0), (0, DI_P - D_INNER)))
    w_ff2 = jnp.pad(params["w_ff2"], ((0, 0), (0, DI_P - D_INNER), (0, 0)))
    wt = jnp.pad(jnp.transpose(params["embedding"]), ((0, 0), (0, V_P - V)))
    obias = jnp.pad(params["out_bias"], (0, V_P - V),
                    constant_values=NEG).reshape(1, V_P)
    return {
        "embedding": params["embedding"],           # f32, used for the input gather
        "pos_shift_t": POS_SHIFT_T,                 # (D, S*S) bf16
        "qk_bias": qk_bias,                         # (2H, 1, DH) f32
        "w_qkv": w_qkv.astype(bf16),                # (L*3*H, D, DH)
        "w_r": w_r.astype(bf16),                    # (L*H, DH, D)
        "w_o": w_o.astype(bf16),                    # (L*H, DH, D)
        "ln_slab": ln_slab,                         # (L*5, 1, D) f32
        "b_ff1": b_ff1,                             # (L, 1, DI_P) f32
        "w_ff1": w_ff1.astype(bf16),                # (L, D, DI_P)
        "w_ff2": w_ff2.astype(bf16),                # (L, DI_P, D)
        "wt": wt.astype(bf16),                      # (D, V_P) tied embedding weight
        "out_bias": obias,                          # (1, V_P) f32, pads = -1e30
    }


@jax.jit
def transformer_xl_forward(prep, source, target):
    """source, target: (S, B) int32 token ids (seq-first, like the PyTorch module)."""
    # word embedding, scaled by sqrt(dim_model) (AdaptiveEmbedding, div_val=1)
    word_emb = jnp.take(prep["embedding"], source, axis=0) * math.sqrt(D)   # (S, B, D)
    h0 = jnp.transpose(word_emb, (1, 0, 2)).reshape(BS, D)                  # (BS, D)
    tgt_flat = jnp.transpose(target).reshape(BS, 1).astype(jnp.int32)

    vmem = pl.BlockSpec(memory_space=pltpu.MemorySpace.VMEM)
    loss_flat = pl.pallas_call(
        transformer_xl_kernel,
        out_shape=jax.ShapeDtypeStruct((BS, 1), jnp.float32),
        in_specs=[vmem] * 13,
        out_specs=vmem,
    )(h0, prep["pos_shift_t"], prep["qk_bias"],
      prep["w_qkv"], prep["w_r"], prep["w_o"],
      prep["ln_slab"], prep["b_ff1"], prep["w_ff1"], prep["w_ff2"],
      prep["wt"], prep["out_bias"], tgt_flat)

    loss = jnp.transpose(loss_flat.reshape(B, S))     # (S, B) == loss.view(tgt_len, -1)
    return [loss]                                     # mem_len=0 -> no new memory returned


if __name__ == "__main__":
    key = jax.random.PRNGKey(0)
    pkey, skey, tkey = jax.random.split(key, 3)
    params = init_model_params(pkey)
    prep = prepare_params(params)        # pack/pad/cast once, outside the per-step jit
    source = jax.random.randint(skey, (S, B), 0, V, dtype=jnp.int32)
    target = jax.random.randint(tkey, (S, B), 0, V, dtype=jnp.int32)

    outs = transformer_xl_forward(prep, source, target)
    loss = jax.block_until_ready(outs[0])

    assert loss.shape == (S, B), loss.shape
    assert bool(jnp.all(jnp.isfinite(loss)))
    print("KERNEL_OK")
</pallas_src>

<mosaic_0001>
module attributes {stable_mosaic.version = 11 : i64} {
  func.func @transformer_xl_kernel(%arg0: memref<16x32xf32, #tpu.memory_space<vmem>>, %arg1: memref<32x64xbf16, #tpu.memory_space<vmem>>, %arg2: memref<4x1x16xf32, #tpu.memory_space<vmem>>, %arg3: memref<12x32x16xbf16, #tpu.memory_space<vmem>>, %arg4: memref<4x16x32xbf16, #tpu.memory_space<vmem>>, %arg5: memref<4x16x32xbf16, #tpu.memory_space<vmem>>, %arg6: memref<10x1x32xf32, #tpu.memory_space<vmem>>, %arg7: memref<2x1x128xf32, #tpu.memory_space<vmem>>, %arg8: memref<2x32x128xbf16, #tpu.memory_space<vmem>>, %arg9: memref<2x128x32xbf16, #tpu.memory_space<vmem>>, %arg10: memref<32x128xbf16, #tpu.memory_space<vmem>>, %arg11: memref<1x128xf32, #tpu.memory_space<vmem>>, %arg12: memref<16x1xi32, #tpu.memory_space<vmem>>, %arg13: memref<16x1xf32, #tpu.memory_space<vmem>>) attributes {dimension_semantics = [], scalar_prefetch = 0 : i64, scratch_operands = 0 : i64, tpu.core_type = #tpu.core_type<tc>} {
    %c0 = arith.constant 0 : index
    %c0_0 = arith.constant 0 : index
    %0 = vector.load %arg0[%c0, %c0_0] : memref<16x32xf32, #tpu.memory_space<vmem>>, vector<16x32xf32>
    %c0_1 = arith.constant 0 : index
    %c0_2 = arith.constant 0 : index
    %1 = vector.load %arg1[%c0_1, %c0_2] : memref<32x64xbf16, #tpu.memory_space<vmem>>, vector<32x64xbf16>
    %2 = tpu.iota {dimensions = array<i32: 0>} : vector<8x8xi32>
    %3 = tpu.iota {dimensions = array<i32: 1>} : vector<8x8xi32>
    %4 = arith.cmpi sle, %3, %2 : vector<8x8xi32>
    %cst = arith.constant 0.000000e+00 : f32
    %cst_3 = arith.constant -1.000000e+30 : f32
    %5 = vector.broadcast %cst : f32 to vector<8x8xf32>
    %6 = vector.broadcast %cst_3 : f32 to vector<8x8xf32>
    %7 = arith.select %4, %5, %6 : vector<8x8xi1>, vector<8x8xf32>
    %8 = tpu.iota {dimensions = array<i32: 0>} : vector<8x64xi32>
    %9 = tpu.iota {dimensions = array<i32: 1>} : vector<8x64xi32>
    %c8_i32 = arith.constant 8 : i32
    %10 = vector.broadcast %c8_i32 : i32 to vector<8x64xi32>
    %11 = arith.muli %8, %10 : vector<8x64xi32>
    %12 = arith.cmpi sge, %9, %11 : vector<8x64xi32>
    %c8_i32_4 = arith.constant 8 : i32
    %13 = vector.broadcast %c8_i32_4 : i32 to vector<8x64xi32>
    %14 = arith.muli %8, %13 : vector<8x64xi32>
    %c8_i32_5 = arith.constant 8 : i32
    %15 = vector.broadcast %c8_i32_5 : i32 to vector<8x64xi32>
    %16 = arith.addi %14, %15 : vector<8x64xi32>
    %17 = arith.cmpi slt, %9, %16 : vector<8x64xi32>
    %18 = arith.andi %12, %17 : vector<8x64xi1>
    %cst_6 = arith.constant 1.000000e+00 : f32
    %cst_7 = arith.constant 0.000000e+00 : f32
    %19 = vector.broadcast %cst_6 : f32 to vector<8x64xf32>
    %20 = vector.broadcast %cst_7 : f32 to vector<8x64xf32>
    %21 = arith.select %18, %19, %20 : vector<8x64xi1>, vector<8x64xf32>
    %22 = arith.cmpi eq, %2, %3 : vector<8x8xi32>
    %cst_8 = arith.constant 1.000000e+00 : f32
    %cst_9 = arith.constant 0.000000e+00 : f32
    %23 = vector.broadcast %cst_8 : f32 to vector<8x8xf32>
    %24 = vector.broadcast %cst_9 : f32 to vector<8x8xf32>
    %25 = arith.select %22, %23, %24 : vector<8x8xi1>, vector<8x8xf32>
    %26 = tpu.concatenate %25, %25, %25, %25, %25, %25, %25, %25 in 0 : vector<8x8xf32>, vector<8x8xf32>, vector<8x8xf32>, vector<8x8xf32>, vector<8x8xf32>, vector<8x8xf32>, vector<8x8xf32>, vector<8x8xf32> -> vector<64x8xf32>
    %27 = arith.truncf %26 : vector<64x8xf32> to vector<64x8xbf16>
    %28 = arith.truncf %0 : vector<16x32xf32> to vector<16x32xbf16>
    %c0_10 = arith.constant 0 : index
    %c0_11 = arith.constant 0 : index
    %c0_12 = arith.constant 0 : index
    %29 = vector.load %arg3[%c0_10, %c0_11, %c0_12] : memref<12x32x16xbf16, #tpu.memory_space<vmem>>, vector<1x32x16xbf16>
    %30 = vector.shape_cast %29 : vector<1x32x16xbf16> to vector<32x16xbf16>
    %c2 = arith.constant 2 : index
    %c0_13 = arith.constant 0 : index
    %c0_14 = arith.constant 0 : index
    %31 = vector.load %arg3[%c2, %c0_13, %c0_14] : memref<12x32x16xbf16, #tpu.memory_space<vmem>>, vector<1x32x16xbf16>
    %32 = vector.shape_cast %31 : vector<1x32x16xbf16> to vector<32x16xbf16>
    %c4 = arith.constant 4 : index
    %c0_15 = arith.constant 0 : index
    %c0_16 = arith.constant 0 : index
    %33 = vector.load %arg3[%c4, %c0_15, %c0_16] : memref<12x32x16xbf16, #tpu.memory_space<vmem>>, vector<1x32x16xbf16>
    %34 = vector.shape_cast %33 : vector<1x32x16xbf16> to vector<32x16xbf16>
    %cst_17 = arith.constant dense<0.000000e+00> : vector<16x16xf32>
    %35 = tpu.matmul %28, %30, %cst_17 {dimension_numbers = #tpu.dot_dimension_numbers<[1], [0], [0], [1], [0, 0, 1, 1], [], []>} : vector<16x32xbf16>, vector<32x16xbf16>, vector<16x16xf32> -> vector<16x16xf32>
    %cst_18 = arith.constant dense<0.000000e+00> : vector<16x16xf32>
    %36 = tpu.matmul %28, %32, %cst_18 {dimension_numbers = #tpu.dot_dimension_numbers<[1], [0], [0], [1], [0, 0, 1, 1], [], []>} : vector<16x32xbf16>, vector<32x16xbf16>, vector<16x16xf32> -> vector<16x16xf32>
    %cst_19 = arith.constant dense<0.000000e+00> : vector<16x16xf32>
    %37 = tpu.matmul %28, %34, %cst_19 {dimension_numbers = #tpu.dot_dimension_numbers<[1], [0], [0], [1], [0, 0, 1, 1], [], []>} : vector<16x32xbf16>, vector<32x16xbf16>, vector<16x16xf32> -> vector<16x16xf32>
    %c0_20 = arith.constant 0 : index
    %c0_21 = arith.constant 0 : index
    %c0_22 = arith.constant 0 : index
    %38 = vector.load %arg2[%c0_20, %c0_21, %c0_22] : memref<4x1x16xf32, #tpu.memory_space<vmem>>, vector<1x1x16xf32>
    %39 = vector.shape_cast %38 : vector<1x1x16xf32> to vector<1x16xf32>
    %40 = vector.broadcast %39 : vector<1x16xf32> to vector<16x16xf32>
    %41 = arith.addf %35, %40 : vector<16x16xf32>
    %c2_23 = arith.constant 2 : index
    %c0_24 = arith.constant 0 : index
    %c0_25 = arith.constant 0 : index
    %42 = vector.load %arg2[%c2_23, %c0_24, %c0_25] : memref<4x1x16xf32, #tpu.memory_space<vmem>>, vector<1x1x16xf32>
    %43 = vector.shape_cast %42 : vector<1x1x16xf32> to vector<1x16xf32>
    %44 = vector.broadcast %43 : vector<1x16xf32> to vector<16x16xf32>
    %45 = arith.addf %35, %44 : vector<16x16xf32>
    %c0_26 = arith.constant 0 : index
    %c0_27 = arith.constant 0 : index
    %c0_28 = arith.constant 0 : index
    %46 = vector.load %arg4[%c0_26, %c0_27, %c0_28] : memref<4x16x32xbf16, #tpu.memory_space<vmem>>, vector<1x16x32xbf16>
    %47 = vector.shape_cast %46 : vector<1x16x32xbf16> to vector<16x32xbf16>
    %cst_29 = arith.constant dense<0.000000e+00> : vector<16x64xf32>
    %48 = tpu.matmul %47, %1, %cst_29 {dimension_numbers = #tpu.dot_dimension_numbers<[1], [0], [0], [1], [0, 0, 1, 1], [], []>} : vector<16x32xbf16>, vector<32x64xbf16>, vector<16x64xf32> -> vector<16x64xf32>
    %49 = arith.truncf %45 : vector<16x16xf32> to vector<16x16xbf16>
    %50 = arith.truncf %48 : vector<16x64xf32> to vector<16x64xbf16>
    %cst_30 = arith.constant dense<0.000000e+00> : vector<16x64xf32>
    %51 = tpu.matmul %49, %50, %cst_30 {dimension_numbers = #tpu.dot_dimension_numbers<[1], [0], [0], [1], [0, 0, 1, 1], [], []>} : vector<16x16xbf16>, vector<16x64xbf16>, vector<16x64xf32> -> vector<16x64xf32>
    %52 = vector.shape_cast %51 : vector<16x64xf32> to vector<2x8x64xf32>
    %53 = vector.shape_cast %21 : vector<8x64xf32> to vector<1x8x64xf32>
    %54 = vector.broadcast %53 : vector<1x8x64xf32> to vector<2x8x64xf32>
    %55 = arith.mulf %52, %54 : vector<2x8x64xf32>
    %56 = vector.shape_cast %55 : vector<2x8x64xf32> to vector<16x64xf32>
    %57 = arith.truncf %56 : vector<16x64xf32> to vector<16x64xbf16>
    %cst_31 = arith.constant dense<0.000000e+00> : vector<16x8xf32>
    %58 = tpu.matmul %57, %27, %cst_31 {dimension_numbers = #tpu.dot_dimension_numbers<[1], [0], [0], [1], [0, 0, 1, 1], [], []>} : vector<16x64xbf16>, vector<64x8xbf16>, vector<16x8xf32> -> vector<16x8xf32>
    %c1 = arith.constant 1 : index
    %c0_32 = arith.constant 0 : index
    %c0_33 = arith.constant 0 : index
    %59 = vector.load %arg3[%c1, %c0_32, %c0_33] : memref<12x32x16xbf16, #tpu.memory_space<vmem>>, vector<1x32x16xbf16>
    %60 = vector.shape_cast %59 : vector<1x32x16xbf16> to vector<32x16xbf16>
    %c3 = arith.constant 3 : index
    %c0_34 = arith.constant 0 : index
    %c0_35 = arith.constant 0 : index
    %61 = vector.load %arg3[%c3, %c0_34, %c0_35] : memref<12x32x16xbf16, #tpu.memory_space<vmem>>, vector<1x32x16xbf16>
    %62 = vector.shape_cast %61 : vector<1x32x16xbf16> to vector<32x16xbf16>
    %c5 = arith.constant 5 : index
    %c0_36 = arith.constant 0 : index
    %c0_37 = arith.constant 0 : index
    %63 = vector.load %arg3[%c5, %c0_36, %c0_37] : memref<12x32x16xbf16, #tpu.memory_space<vmem>>, vector<1x32x16xbf16>
    %64 = vector.shape_cast %63 : vector<1x32x16xbf16> to vector<32x16xbf16>
    %cst_38 = arith.constant dense<0.000000e+00> : vector<16x16xf32>
    %65 = tpu.matmul %28, %60, %cst_38 {dimension_numbers = #tpu.dot_dimension_numbers<[1], [0], [0], [1], [0, 0, 1, 1], [], []>} : vector<16x32xbf16>, vector<32x16xbf16>, vector<16x16xf32> -> vector<16x16xf32>
    %cst_39 = arith.constant dense<0.000000e+00> : vector<16x16xf32>
    %66 = tpu.matmul %28, %62, %cst_39 {dimension_numbers = #tpu.dot_dimension_numbers<[1], [0], [0], [1], [0, 0, 1, 1], [], []>} : vector<16x32xbf16>, vector<32x16xbf16>, vector<16x16xf32> -> vector<16x16xf32>
    %cst_40 = arith.constant dense<0.000000e+00> : vector<16x16xf32>
    %67 = tpu.matmul %28, %64, %cst_40 {dimension_numbers = #tpu.dot_dimension_numbers<[1], [0], [0], [1], [0, 0, 1, 1], [], []>} : vector<16x32xbf16>, vector<32x16xbf16>, vector<16x16xf32> -> vector<16x16xf32>
    %c1_41 = arith.constant 1 : index
    %c0_42 = arith.constant 0 : index
    %c0_43 = arith.constant 0 : index
    %68 = vector.load %arg2[%c1_41, %c0_42, %c0_43] : memref<4x1x16xf32, #tpu.memory_space<vmem>>, vector<1x1x16xf32>
    %69 = vector.shape_cast %68 : vector<1x1x16xf32> to vector<1x16xf32>
    %70 = vector.broadcast %69 : vector<1x16xf32> to vector<16x16xf32>
    %71 = arith.addf %65, %70 : vector<16x16xf32>
    %c3_44 = arith.constant 3 : index
    %c0_45 = arith.constant 0 : index
    %c0_46 = arith.constant 0 : index
    %72 = vector.load %arg2[%c3_44, %c0_45, %c0_46] : memref<4x1x16xf32, #tpu.memory_space<vmem>>, vector<1x1x16xf32>
    %73 = vector.shape_cast %72 : vector<1x1x16xf32> to vector<1x16xf32>
    %74 = vector.broadcast %73 : vector<1x16xf32> to vector<16x16xf32>
    %75 = arith.addf %65, %74 : vector<16x16xf32>
    %c1_47 = arith.constant 1 : index
    %c0_48 = arith.constant 0 : index
    %c0_49 = arith.constant 0 : index
    %76 = vector.load %arg4[%c1_47, %c0_48, %c0_49] : memref<4x16x32xbf16, #tpu.memory_space<vmem>>, vector<1x16x32xbf16>
    %77 = vector.shape_cast %76 : vector<1x16x32xbf16> to vector<16x32xbf16>
    %cst_50 = arith.constant dense<0.000000e+00> : vector<16x64xf32>
    %78 = tpu.matmul %77, %1, %cst_50 {dimension_numbers = #tpu.dot_dimension_numbers<[1], [0], [0], [1], [0, 0, 1, 1], [], []>} : vector<16x32xbf16>, vector<32x64xbf16>, vector<16x64xf32> -> vector<16x64xf32>
    %79 = arith.truncf %75 : vector<16x16xf32> to vector<16x16xbf16>
    %80 = arith.truncf %78 : vector<16x64xf32> to vector<16x64xbf16>
    %cst_51 = arith.constant dense<0.000000e+00> : vector<16x64xf32>
    %81 = tpu.matmul %79, %80, %cst_51 {dimension_numbers = #tpu.dot_dimension_numbers<[1], [0], [0], [1], [0, 0, 1, 1], [], []>} : vector<16x16xbf16>, vector<16x64xbf16>, vector<16x64xf32> -> vector<16x64xf32>
    %82 = vector.shape_cast %81 : vector<16x64xf32> to vector<2x8x64xf32>
    %83 = vector.shape_cast %21 : vector<8x64xf32> to vector<1x8x64xf32>
    %84 = vector.broadcast %83 : vector<1x8x64xf32> to vector<2x8x64xf32>
    %85 = arith.mulf %82, %84 : vector<2x8x64xf32>
    %86 = vector.shape_cast %85 : vector<2x8x64xf32> to vector<16x64xf32>
    %87 = arith.truncf %86 : vector<16x64xf32> to vector<16x64xbf16>
    %cst_52 = arith.constant dense<0.000000e+00> : vector<16x8xf32>
    %88 = tpu.matmul %87, %27, %cst_52 {dimension_numbers = #tpu.dot_dimension_numbers<[1], [0], [0], [1], [0, 0, 1, 1], [], []>} : vector<16x64xbf16>, vector<64x8xbf16>, vector<16x8xf32> -> vector<16x8xf32>
    %89 = tpu.concatenate %41, %71 in 0 : vector<16x16xf32>, vector<16x16xf32> -> vector<32x16xf32>
    %90 = vector.shape_cast %89 : vector<32x16xf32> to vector<4x8x16xf32>
    %91 = arith.truncf %90 : vector<4x8x16xf32> to vector<4x8x16xbf16>
    %92 = tpu.concatenate %36, %66 in 0 : vector<16x16xf32>, vector<16x16xf32> -> vector<32x16xf32>
    %93 = vector.shape_cast %92 : vector<32x16xf32> to vector<4x8x16xf32>
    %94 = arith.truncf %93 : vector<4x8x16xf32> to vector<4x8x16xbf16>
    %95 = tpu.concatenate %37, %67 in 0 : vector<16x16xf32>, vector<16x16xf32> -> vector<32x16xf32>
    %96 = vector.shape_cast %95 : vector<32x16xf32> to vector<4x8x16xf32>
    %97 = arith.truncf %96 : vector<4x8x16xf32> to vector<4x8x16xbf16>
    %98 = tpu.concatenate %58, %88 in 0 : vector<16x8xf32>, vector<16x8xf32> -> vector<32x8xf32>
    %99 = vector.shape_cast %98 : vector<32x8xf32> to vector<4x8x8xf32>
    "tpu.trace_start"() <{level = 10 : i32, message = "zqd,zkd->zqk"}> : () -> ()
    %cst_53 = arith.constant dense<0.000000e+00> : vector<4x8x8xf32>
    %100 = tpu.matmul %91, %94, %cst_53 {dimension_numbers = #tpu.dot_dimension_numbers<[2], [2], [1], [1], [0, 0, 0, 1, 1, 1], [0], [0]>} : vector<4x8x16xbf16>, vector<4x8x16xbf16>, vector<4x8x8xf32> -> vector<4x8x8xf32>
    "tpu.trace_stop"() : () -> ()
    %101 = arith.addf %100, %99 : vector<4x8x8xf32>
    %cst_54 = arith.constant 2.500000e-01 : f32
    %102 = vector.broadcast %cst_54 : f32 to vector<4x8x8xf32>
    %103 = arith.mulf %101, %102 : vector<4x8x8xf32>
    %104 = vector.shape_cast %7 : vector<8x8xf32> to vector<1x8x8xf32>
    %105 = vector.broadcast %104 : vector<1x8x8xf32> to vector<4x8x8xf32>
    %106 = arith.addf %103, %105 : vector<4x8x8xf32>
    %cst_55 = arith.constant dense<0xFF800000> : vector<4x8xf32>
    %107 = vector.multi_reduction <maximumf>, %106, %cst_55 [2] : vector<4x8x8xf32> to vector<4x8xf32>
    %108 = vector.shape_cast %107 : vector<4x8xf32> to vector<4x8x1xf32>
    %109 = vector.broadcast %108 : vector<4x8x1xf32> to vector<4x8x8xf32>
    %110 = arith.subf %106, %109 : vector<4x8x8xf32>
    %111 = math.exp %110 : vector<4x8x8xf32>
    %cst_56 = arith.constant dense<0.000000e+00> : vector<4x8xf32>
    %112 = vector.multi_reduction <add>, %111, %cst_56 [2] : vector<4x8x8xf32> to vector<4x8xf32>
    %113 = vector.shape_cast %112 : vector<4x8xf32> to vector<4x8x1xf32>
    %114 = tpu.reciprocal %113 {approx = true} : vector<4x8x1xf32> -> vector<4x8x1xf32>
    %115 = vector.broadcast %114 : vector<4x8x1xf32> to vector<4x8x8xf32>
    %116 = arith.mulf %111, %115 : vector<4x8x8xf32>
    %117 = arith.truncf %116 : vector<4x8x8xf32> to vector<4x8x8xbf16>
    "tpu.trace_start"() <{level = 10 : i32, message = "zqk,zkd->zqd"}> : () -> ()
    %cst_57 = arith.constant dense<0.000000e+00> : vector<4x8x16xf32>
    %118 = tpu.matmul %117, %97, %cst_57 {dimension_numbers = #tpu.dot_dimension_numbers<[2], [1], [1], [2], [0, 0, 0, 1, 1, 2], [0], [0]>} : vector<4x8x8xbf16>, vector<4x8x16xbf16>, vector<4x8x16xf32> -> vector<4x8x16xf32>
    %cst_58 = arith.constant 0.000000e+00 : f32
    "tpu.trace_stop"() : () -> ()
    %119 = vector.broadcast %cst_58 : f32 to vector<16x32xf32>
    %120 = vector.extract_strided_slice %118 {offsets = [0, 0, 0], sizes = [2, 8, 16], strides = [1, 1, 1]} : vector<4x8x16xf32> to vector<2x8x16xf32>
    %121 = vector.shape_cast %120 : vector<2x8x16xf32> to vector<16x16xf32>
    %122 = arith.truncf %121 : vector<16x16xf32> to vector<16x16xbf16>
    %c0_59 = arith.constant 0 : index
    %c0_60 = arith.constant 0 : index
    %c0_61 = arith.constant 0 : index
    %123 = vector.load %arg5[%c0_59, %c0_60, %c0_61] : memref<4x16x32xbf16, #tpu.memory_space<vmem>>, vector<1x16x32xbf16>
    %124 = vector.shape_cast %123 : vector<1x16x32xbf16> to vector<16x32xbf16>
    %cst_62 = arith.constant dense<0.000000e+00> : vector<16x32xf32>
    %125 = tpu.matmul %122, %124, %cst_62 {dimension_numbers = #tpu.dot_dimension_numbers<[1], [0], [0], [1], [0, 0, 1, 1], [], []>} : vector<16x16xbf16>, vector<16x32xbf16>, vector<16x32xf32> -> vector<16x32xf32>
    %126 = arith.addf %119, %125 : vector<16x32xf32>
    %127 = vector.extract_strided_slice %118 {offsets = [2, 0, 0], sizes = [2, 8, 16], strides = [1, 1, 1]} : vector<4x8x16xf32> to vector<2x8x16xf32>
    %128 = vector.shape_cast %127 : vector<2x8x16xf32> to vector<16x16xf32>
    %129 = arith.truncf %128 : vector<16x16xf32> to vector<16x16xbf16>
    %c1_63 = arith.constant 1 : index
    %c0_64 = arith.constant 0 : index
    %c0_65 = arith.constant 0 : index
    %130 = vector.load %arg5[%c1_63, %c0_64, %c0_65] : memref<4x16x32xbf16, #tpu.memory_space<vmem>>, vector<1x16x32xbf16>
    %131 = vector.shape_cast %130 : vector<1x16x32xbf16> to vector<16x32xbf16>
    %cst_66 = arith.constant dense<0.000000e+00> : vector<16x32xf32>
    %132 = tpu.matmul %129, %131, %cst_66 {dimension_numbers = #tpu.dot_dimension_numbers<[1], [0], [0], [1], [0, 0, 1, 1], [], []>} : vector<16x16xbf16>, vector<16x32xbf16>, vector<16x32xf32> -> vector<16x32xf32>
    %133 = arith.addf %126, %132 : vector<16x32xf32>
    %134 = arith.addf %0, %133 : vector<16x32xf32>
    %c0_67 = arith.constant 0 : index
    %c0_68 = arith.constant 0 : index
    %c0_69 = arith.constant 0 : index
    %135 = vector.load %arg6[%c0_67, %c0_68, %c0_69] : memref<10x1x32xf32, #tpu.memory_space<vmem>>, vector<1x1x32xf32>
    %136 = vector.shape_cast %135 : vector<1x1x32xf32> to vector<1x32xf32>
    %c1_70 = arith.constant 1 : index
    %c0_71 = arith.constant 0 : index
    %c0_72 = arith.constant 0 : index
    %137 = vector.load %arg6[%c1_70, %c0_71, %c0_72] : memref<10x1x32xf32, #tpu.memory_space<vmem>>, vector<1x1x32xf32>
    %138 = vector.shape_cast %137 : vector<1x1x32xf32> to vector<1x32xf32>
    %cst_73 = arith.constant dense<0.000000e+00> : vector<16xf32>
    %139 = vector.multi_reduction <add>, %134, %cst_73 [1] : vector<16x32xf32> to vector<16xf32>
    %140 = vector.shape_cast %139 : vector<16xf32> to vector<16x1xf32>
    %cst_74 = arith.constant 3.200000e+01 : f32
    %141 = vector.broadcast %cst_74 : f32 to vector<16x1xf32>
    %142 = arith.divf %140, %141 : vector<16x1xf32>
    %143 = arith.mulf %134, %134 : vector<16x32xf32>
    %cst_75 = arith.constant dense<0.000000e+00> : vector<16xf32>
    %144 = vector.multi_reduction <add>, %143, %cst_75 [1] : vector<16x32xf32> to vector<16xf32>
    %145 = vector.shape_cast %144 : vector<16xf32> to vector<16x1xf32>
    %cst_76 = arith.constant 3.200000e+01 : f32
    %146 = vector.broadcast %cst_76 : f32 to vector<16x1xf32>
    %147 = arith.divf %145, %146 : vector<16x1xf32>
    %148 = arith.mulf %142, %142 : vector<16x1xf32>
    %149 = arith.subf %147, %148 : vector<16x1xf32>
    %cst_77 = arith.constant 0.000000e+00 : f32
    %150 = vector.broadcast %cst_77 : f32 to vector<16x1xf32>
    %151 = arith.maximumf %149, %150 : vector<16x1xf32>
    %152 = vector.broadcast %142 : vector<16x1xf32> to vector<16x32xf32>
    %153 = arith.subf %134, %152 : vector<16x32xf32>
    %cst_78 = arith.constant 9.99999974E-6 : f32
    %154 = vector.broadcast %cst_78 : f32 to vector<16x1xf32>
    %155 = arith.addf %151, %154 : vector<16x1xf32>
    %156 = math.rsqrt %155 : vector<16x1xf32>
    %157 = vector.broadcast %156 : vector<16x1xf32> to vector<16x32xf32>
    %158 = arith.mulf %153, %157 : vector<16x32xf32>
    %159 = vector.broadcast %136 : vector<1x32xf32> to vector<16x32xf32>
    %160 = arith.mulf %158, %159 : vector<16x32xf32>
    %161 = vector.broadcast %138 : vector<1x32xf32> to vector<16x32xf32>
    %162 = arith.addf %160, %161 : vector<16x32xf32>
    %163 = arith.truncf %162 : vector<16x32xf32> to vector<16x32xbf16>
    %c0_79 = arith.constant 0 : index
    %c0_80 = arith.constant 0 : index
    %c0_81 = arith.constant 0 : index
    %164 = vector.load %arg8[%c0_79, %c0_80, %c0_81] : memref<2x32x128xbf16, #tpu.memory_space<vmem>>, vector<1x32x128xbf16>
    %165 = vector.shape_cast %164 : vector<1x32x128xbf16> to vector<32x128xbf16>
    %cst_82 = arith.constant dense<0.000000e+00> : vector<16x128xf32>
    %166 = tpu.matmul %163, %165, %cst_82 {dimension_numbers = #tpu.dot_dimension_numbers<[1], [0], [0], [1], [0, 0, 1, 1], [], []>} : vector<16x32xbf16>, vector<32x128xbf16>, vector<16x128xf32> -> vector<16x128xf32>
    %c0_83 = arith.constant 0 : index
    %c0_84 = arith.constant 0 : index
    %c0_85 = arith.constant 0 : index
    %167 = vector.load %arg7[%c0_83, %c0_84, %c0_85] : memref<2x1x128xf32, #tpu.memory_space<vmem>>, vector<1x1x128xf32>
    %168 = vector.shape_cast %167 : vector<1x1x128xf32> to vector<1x128xf32>
    %169 = vector.broadcast %168 : vector<1x128xf32> to vector<16x128xf32>
    %170 = arith.addf %166, %169 : vector<16x128xf32>
    %cst_86 = arith.constant 0.000000e+00 : f32
    %171 = vector.broadcast %cst_86 : f32 to vector<16x128xf32>
    %172 = arith.maximumf %170, %171 : vector<16x128xf32>
    %173 = arith.truncf %172 : vector<16x128xf32> to vector<16x128xbf16>
    %c0_87 = arith.constant 0 : index
    %c0_88 = arith.constant 0 : index
    %c0_89 = arith.constant 0 : index
    %174 = vector.load %arg9[%c0_87, %c0_88, %c0_89] : memref<2x128x32xbf16, #tpu.memory_space<vmem>>, vector<1x128x32xbf16>
    %175 = vector.shape_cast %174 : vector<1x128x32xbf16> to vector<128x32xbf16>
    %cst_90 = arith.constant dense<0.000000e+00> : vector<16x32xf32>
    %176 = tpu.matmul %173, %175, %cst_90 {dimension_numbers = #tpu.dot_dimension_numbers<[1], [0], [0], [1], [0, 0, 1, 1], [], []>} : vector<16x128xbf16>, vector<128x32xbf16>, vector<16x32xf32> -> vector<16x32xf32>
    %c4_91 = arith.constant 4 : index
    %c0_92 = arith.constant 0 : index
    %c0_93 = arith.constant 0 : index
    %177 = vector.load %arg6[%c4_91, %c0_92, %c0_93] : memref<10x1x32xf32, #tpu.memory_space<vmem>>, vector<1x1x32xf32>
    %178 = vector.shape_cast %177 : vector<1x1x32xf32> to vector<1x32xf32>
    %179 = vector.broadcast %178 : vector<1x32xf32> to vector<16x32xf32>
    %180 = arith.addf %176, %179 : vector<16x32xf32>
    %181 = arith.addf %162, %180 : vector<16x32xf32>
    %c2_94 = arith.constant 2 : index
    %c0_95 = arith.constant 0 : index
    %c0_96 = arith.constant 0 : index
    %182 = vector.load %arg6[%c2_94, %c0_95, %c0_96] : memref<10x1x32xf32, #tpu.memory_space<vmem>>, vector<1x1x32xf32>
    %183 = vector.shape_cast %182 : vector<1x1x32xf32> to vector<1x32xf32>
    %c3_97 = arith.constant 3 : index
    %c0_98 = arith.constant 0 : index
    %c0_99 = arith.constant 0 : index
    %184 = vector.load %arg6[%c3_97, %c0_98, %c0_99] : memref<10x1x32xf32, #tpu.memory_space<vmem>>, vector<1x1x32xf32>
    %185 = vector.shape_cast %184 : vector<1x1x32xf32> to vector<1x32xf32>
    %cst_100 = arith.constant dense<0.000000e+00> : vector<16xf32>
    %186 = vector.multi_reduction <add>, %181, %cst_100 [1] : vector<16x32xf32> to vector<16xf32>
    %187 = vector.shape_cast %186 : vector<16xf32> to vector<16x1xf32>
    %cst_101 = arith.constant 3.200000e+01 : f32
    %188 = vector.broadcast %cst_101 : f32 to vector<16x1xf32>
    %189 = arith.divf %187, %188 : vector<16x1xf32>
    %190 = arith.mulf %181, %181 : vector<16x32xf32>
    %cst_102 = arith.constant dense<0.000000e+00> : vector<16xf32>
    %191 = vector.multi_reduction <add>, %190, %cst_102 [1] : vector<16x32xf32> to vector<16xf32>
    %192 = vector.shape_cast %191 : vector<16xf32> to vector<16x1xf32>
    %cst_103 = arith.constant 3.200000e+01 : f32
    %193 = vector.broadcast %cst_103 : f32 to vector<16x1xf32>
    %194 = arith.divf %192, %193 : vector<16x1xf32>
    %195 = arith.mulf %189, %189 : vector<16x1xf32>
    %196 = arith.subf %194, %195 : vector<16x1xf32>
    %cst_104 = arith.constant 0.000000e+00 : f32
    %197 = vector.broadcast %cst_104 : f32 to vector<16x1xf32>
    %198 = arith.maximumf %196, %197 : vector<16x1xf32>
    %199 = vector.broadcast %189 : vector<16x1xf32> to vector<16x32xf32>
    %200 = arith.subf %181, %199 : vector<16x32xf32>
    %cst_105 = arith.constant 9.99999974E-6 : f32
    %201 = vector.broadcast %cst_105 : f32 to vector<16x1xf32>
    %202 = arith.addf %198, %201 : vector<16x1xf32>
    %203 = math.rsqrt %202 : vector<16x1xf32>
    %204 = vector.broadcast %203 : vector<16x1xf32> to vector<16x32xf32>
    %205 = arith.mulf %200, %204 : vector<16x32xf32>
    %206 = vector.broadcast %183 : vector<1x32xf32> to vector<16x32xf32>
    %207 = arith.mulf %205, %206 : vector<16x32xf32>
    %208 = vector.broadcast %185 : vector<1x32xf32> to vector<16x32xf32>
    %209 = arith.addf %207, %208 : vector<16x32xf32>
    %210 = arith.truncf %209 : vector<16x32xf32> to vector<16x32xbf16>
    %c6 = arith.constant 6 : index
    %c0_106 = arith.constant 0 : index
    %c0_107 = arith.constant 0 : index
    %211 = vector.load %arg3[%c6, %c0_106, %c0_107] : memref<12x32x16xbf16, #tpu.memory_space<vmem>>, vector<1x32x16xbf16>
    %212 = vector.shape_cast %211 : vector<1x32x16xbf16> to vector<32x16xbf16>
    %c8 = arith.constant 8 : index
    %c0_108 = arith.constant 0 : index
    %c0_109 = arith.constant 0 : index
    %213 = vector.load %arg3[%c8, %c0_108, %c0_109] : memref<12x32x16xbf16, #tpu.memory_space<vmem>>, vector<1x32x16xbf16>
    %214 = vector.shape_cast %213 : vector<1x32x16xbf16> to vector<32x16xbf16>
    %c10 = arith.constant 10 : index
    %c0_110 = arith.constant 0 : index
    %c0_111 = arith.constant 0 : index
    %215 = vector.load %arg3[%c10, %c0_110, %c0_111] : memref<12x32x16xbf16, #tpu.memory_space<vmem>>, vector<1x32x16xbf16>
    %216 = vector.shape_cast %215 : vector<1x32x16xbf16> to vector<32x16xbf16>
    %cst_112 = arith.constant dense<0.000000e+00> : vector<16x16xf32>
    %217 = tpu.matmul %210, %212, %cst_112 {dimension_numbers = #tpu.dot_dimension_numbers<[1], [0], [0], [1], [0, 0, 1, 1], [], []>} : vector<16x32xbf16>, vector<32x16xbf16>, vector<16x16xf32> -> vector<16x16xf32>
    %cst_113 = arith.constant dense<0.000000e+00> : vector<16x16xf32>
    %218 = tpu.matmul %210, %214, %cst_113 {dimension_numbers = #tpu.dot_dimension_numbers<[1], [0], [0], [1], [0, 0, 1, 1], [], []>} : vector<16x32xbf16>, vector<32x16xbf16>, vector<16x16xf32> -> vector<16x16xf32>
    %cst_114 = arith.constant dense<0.000000e+00> : vector<16x16xf32>
    %219 = tpu.matmul %210, %216, %cst_114 {dimension_numbers = #tpu.dot_dimension_numbers<[1], [0], [0], [1], [0, 0, 1, 1], [], []>} : vector<16x32xbf16>, vector<32x16xbf16>, vector<16x16xf32> -> vector<16x16xf32>
    %c0_115 = arith.constant 0 : index
    %c0_116 = arith.constant 0 : index
    %c0_117 = arith.constant 0 : index
    %220 = vector.load %arg2[%c0_115, %c0_116, %c0_117] : memref<4x1x16xf32, #tpu.memory_space<vmem>>, vector<1x1x16xf32>
    %221 = vector.shape_cast %220 : vector<1x1x16xf32> to vector<1x16xf32>
    %222 = vector.broadcast %221 : vector<1x16xf32> to vector<16x16xf32>
    %223 = arith.addf %217, %222 : vector<16x16xf32>
    %c2_118 = arith.constant 2 : index
    %c0_119 = arith.constant 0 : index
    %c0_120 = arith.constant 0 : index
    %224 = vector.load %arg2[%c2_118, %c0_119, %c0_120] : memref<4x1x16xf32, #tpu.memory_space<vmem>>, vector<1x1x16xf32>
    %225 = vector.shape_cast %224 : vector<1x1x16xf32> to vector<1x16xf32>
    %226 = vector.broadcast %225 : vector<1x16xf32> to vector<16x16xf32>
    %227 = arith.addf %217, %226 : vector<16x16xf32>
    %c2_121 = arith.constant 2 : index
    %c0_122 = arith.constant 0 : index
    %c0_123 = arith.constant 0 : index
    %228 = vector.load %arg4[%c2_121, %c0_122, %c0_123] : memref<4x16x32xbf16, #tpu.memory_space<vmem>>, vector<1x16x32xbf16>
    %229 = vector.shape_cast %228 : vector<1x16x32xbf16> to vector<16x32xbf16>
    %cst_124 = arith.constant dense<0.000000e+00> : vector<16x64xf32>
    %230 = tpu.matmul %229, %1, %cst_124 {dimension_numbers = #tpu.dot_dimension_numbers<[1], [0], [0], [1], [0, 0, 1, 1], [], []>} : vector<16x32xbf16>, vector<32x64xbf16>, vector<16x64xf32> -> vector<16x64xf32>
    %231 = arith.truncf %227 : vector<16x16xf32> to vector<16x16xbf16>
    %232 = arith.truncf %230 : vector<16x64xf32> to vector<16x64xbf16>
    %cst_125 = arith.constant dense<0.000000e+00> : vector<16x64xf32>
    %233 = tpu.matmul %231, %232, %cst_125 {dimension_numbers = #tpu.dot_dimension_numbers<[1], [0], [0], [1], [0, 0, 1, 1], [], []>} : vector<16x16xbf16>, vector<16x64xbf16>, vector<16x64xf32> -> vector<16x64xf32>
    %234 = vector.shape_cast %233 : vector<16x64xf32> to vector<2x8x64xf32>
    %235 = vector.shape_cast %21 : vector<8x64xf32> to vector<1x8x64xf32>
    %236 = vector.broadcast %235 : vector<1x8x64xf32> to vector<2x8x64xf32>
    %237 = arith.mulf %234, %236 : vector<2x8x64xf32>
    %238 = vector.shape_cast %237 : vector<2x8x64xf32> to vector<16x64xf32>
    %239 = arith.truncf %238 : vector<16x64xf32> to vector<16x64xbf16>
    %cst_126 = arith.constant dense<0.000000e+00> : vector<16x8xf32>
    %240 = tpu.matmul %239, %27, %cst_126 {dimension_numbers = #tpu.dot_dimension_numbers<[1], [0], [0], [1], [0, 0, 1, 1], [], []>} : vector<16x64xbf16>, vector<64x8xbf16>, vector<16x8xf32> -> vector<16x8xf32>
    %c7 = arith.constant 7 : index
    %c0_127 = arith.constant 0 : index
    %c0_128 = arith.constant 0 : index
    %241 = vector.load %arg3[%c7, %c0_127, %c0_128] : memref<12x32x16xbf16, #tpu.memory_space<vmem>>, vector<1x32x16xbf16>
    %242 = vector.shape_cast %241 : vector<1x32x16xbf16> to vector<32x16xbf16>
    %c9 = arith.constant 9 : index
    %c0_129 = arith.constant 0 : index
    %c0_130 = arith.constant 0 : index
    %243 = vector.load %arg3[%c9, %c0_129, %c0_130] : memref<12x32x16xbf16, #tpu.memory_space<vmem>>, vector<1x32x16xbf16>
    %244 = vector.shape_cast %243 : vector<1x32x16xbf16> to vector<32x16xbf16>
    %c11 = arith.constant 11 : index
    %c0_131 = arith.constant 0 : index
    %c0_132 = arith.constant 0 : index
    %245 = vector.load %arg3[%c11, %c0_131, %c0_132] : memref<12x32x16xbf16, #tpu.memory_space<vmem>>, vector<1x32x16xbf16>
    %246 = vector.shape_cast %245 : vector<1x32x16xbf16> to vector<32x16xbf16>
    %cst_133 = arith.constant dense<0.000000e+00> : vector<16x16xf32>
    %247 = tpu.matmul %210, %242, %cst_133 {dimension_numbers = #tpu.dot_dimension_numbers<[1], [0], [0], [1], [0, 0, 1, 1], [], []>} : vector<16x32xbf16>, vector<32x16xbf16>, vector<16x16xf32> -> vector<16x16xf32>
    %cst_134 = arith.constant dense<0.000000e+00> : vector<16x16xf32>
    %248 = tpu.matmul %210, %244, %cst_134 {dimension_numbers = #tpu.dot_dimension_numbers<[1], [0], [0], [1], [0, 0, 1, 1], [], []>} : vector<16x32xbf16>, vector<32x16xbf16>, vector<16x16xf32> -> vector<16x16xf32>
    %cst_135 = arith.constant dense<0.000000e+00> : vector<16x16xf32>
    %249 = tpu.matmul %210, %246, %cst_135 {dimension_numbers = #tpu.dot_dimension_numbers<[1], [0], [0], [1], [0, 0, 1, 1], [], []>} : vector<16x32xbf16>, vector<32x16xbf16>, vector<16x16xf32> -> vector<16x16xf32>
    %c1_136 = arith.constant 1 : index
    %c0_137 = arith.constant 0 : index
    %c0_138 = arith.constant 0 : index
    %250 = vector.load %arg2[%c1_136, %c0_137, %c0_138] : memref<4x1x16xf32, #tpu.memory_space<vmem>>, vector<1x1x16xf32>
    %251 = vector.shape_cast %250 : vector<1x1x16xf32> to vector<1x16xf32>
    %252 = vector.broadcast %251 : vector<1x16xf32> to vector<16x16xf32>
    %253 = arith.addf %247, %252 : vector<16x16xf32>
    %c3_139 = arith.constant 3 : index
    %c0_140 = arith.constant 0 : index
    %c0_141 = arith.constant 0 : index
    %254 = vector.load %arg2[%c3_139, %c0_140, %c0_141] : memref<4x1x16xf32, #tpu.memory_space<vmem>>, vector<1x1x16xf32>
    %255 = vector.shape_cast %254 : vector<1x1x16xf32> to vector<1x16xf32>
    %256 = vector.broadcast %255 : vector<1x16xf32> to vector<16x16xf32>
    %257 = arith.addf %247, %256 : vector<16x16xf32>
    %c3_142 = arith.constant 3 : index
    %c0_143 = arith.constant 0 : index
    %c0_144 = arith.constant 0 : index
    %258 = vector.load %arg4[%c3_142, %c0_143, %c0_144] : memref<4x16x32xbf16, #tpu.memory_space<vmem>>, vector<1x16x32xbf16>
    %259 = vector.shape_cast %258 : vector<1x16x32xbf16> to vector<16x32xbf16>
    %cst_145 = arith.constant dense<0.000000e+00> : vector<16x64xf32>
    %260 = tpu.matmul %259, %1, %cst_145 {dimension_numbers = #tpu.dot_dimension_numbers<[1], [0], [0], [1], [0, 0, 1, 1], [], []>} : vector<16x32xbf16>, vector<32x64xbf16>, vector<16x64xf32> -> vector<16x64xf32>
    %261 = arith.truncf %257 : vector<16x16xf32> to vector<16x16xbf16>
    %262 = arith.truncf %260 : vector<16x64xf32> to vector<16x64xbf16>
    %cst_146 = arith.constant dense<0.000000e+00> : vector<16x64xf32>
    %263 = tpu.matmul %261, %262, %cst_146 {dimension_numbers = #tpu.dot_dimension_numbers<[1], [0], [0], [1], [0, 0, 1, 1], [], []>} : vector<16x16xbf16>, vector<16x64xbf16>, vector<16x64xf32> -> vector<16x64xf32>
    %264 = vector.shape_cast %263 : vector<16x64xf32> to vector<2x8x64xf32>
    %265 = vector.shape_cast %21 : vector<8x64xf32> to vector<1x8x64xf32>
    %266 = vector.broadcast %265 : vector<1x8x64xf32> to vector<2x8x64xf32>
    %267 = arith.mulf %264, %266 : vector<2x8x64xf32>
    %268 = vector.shape_cast %267 : vector<2x8x64xf32> to vector<16x64xf32>
    %269 = arith.truncf %268 : vector<16x64xf32> to vector<16x64xbf16>
    %cst_147 = arith.constant dense<0.000000e+00> : vector<16x8xf32>
    %270 = tpu.matmul %269, %27, %cst_147 {dimension_numbers = #tpu.dot_dimension_numbers<[1], [0], [0], [1], [0, 0, 1, 1], [], []>} : vector<16x64xbf16>, vector<64x8xbf16>, vector<16x8xf32> -> vector<16x8xf32>
    %271 = tpu.concatenate %223, %253 in 0 : vector<16x16xf32>, vector<16x16xf32> -> vector<32x16xf32>
    %272 = vector.shape_cast %271 : vector<32x16xf32> to vector<4x8x16xf32>
    %273 = arith.truncf %272 : vector<4x8x16xf32> to vector<4x8x16xbf16>
    %274 = tpu.concatenate %218, %248 in 0 : vector<16x16xf32>, vector<16x16xf32> -> vector<32x16xf32>
    %275 = vector.shape_cast %274 : vector<32x16xf32> to vector<4x8x16xf32>
    %276 = arith.truncf %275 : vector<4x8x16xf32> to vector<4x8x16xbf16>
    %277 = tpu.concatenate %219, %249 in 0 : vector<16x16xf32>, vector<16x16xf32> -> vector<32x16xf32>
    %278 = vector.shape_cast %277 : vector<32x16xf32> to vector<4x8x16xf32>
    %279 = arith.truncf %278 : vector<4x8x16xf32> to vector<4x8x16xbf16>
    %280 = tpu.concatenate %240, %270 in 0 : vector<16x8xf32>, vector<16x8xf32> -> vector<32x8xf32>
    %281 = vector.shape_cast %280 : vector<32x8xf32> to vector<4x8x8xf32>
    "tpu.trace_start"() <{level = 10 : i32, message = "zqd,zkd->zqk"}> : () -> ()
    %cst_148 = arith.constant dense<0.000000e+00> : vector<4x8x8xf32>
    %282 = tpu.matmul %273, %276, %cst_148 {dimension_numbers = #tpu.dot_dimension_numbers<[2], [2], [1], [1], [0, 0, 0, 1, 1, 1], [0], [0]>} : vector<4x8x16xbf16>, vector<4x8x16xbf16>, vector<4x8x8xf32> -> vector<4x8x8xf32>
    "tpu.trace_stop"() : () -> ()
    %283 = arith.addf %282, %281 : vector<4x8x8xf32>
    %cst_149 = arith.constant 2.500000e-01 : f32
    %284 = vector.broadcast %cst_149 : f32 to vector<4x8x8xf32>
    %285 = arith.mulf %283, %284 : vector<4x8x8xf32>
    %286 = vector.shape_cast %7 : vector<8x8xf32> to vector<1x8x8xf32>
    %287 = vector.broadcast %286 : vector<1x8x8xf32> to vector<4x8x8xf32>
    %288 = arith.addf %285, %287 : vector<4x8x8xf32>
    %cst_150 = arith.constant dense<0xFF800000> : vector<4x8xf32>
    %289 = vector.multi_reduction <maximumf>, %288, %cst_150 [2] : vector<4x8x8xf32> to vector<4x8xf32>
    %290 = vector.shape_cast %289 : vector<4x8xf32> to vector<4x8x1xf32>
    %291 = vector.broadcast %290 : vector<4x8x1xf32> to vector<4x8x8xf32>
    %292 = arith.subf %288, %291 : vector<4x8x8xf32>
    %293 = math.exp %292 : vector<4x8x8xf32>
    %cst_151 = arith.constant dense<0.000000e+00> : vector<4x8xf32>
    %294 = vector.multi_reduction <add>, %293, %cst_151 [2] : vector<4x8x8xf32> to vector<4x8xf32>
    %295 = vector.shape_cast %294 : vector<4x8xf32> to vector<4x8x1xf32>
    %296 = tpu.reciprocal %295 {approx = true} : vector<4x8x1xf32> -> vector<4x8x1xf32>
    %297 = vector.broadcast %296 : vector<4x8x1xf32> to vector<4x8x8xf32>
    %298 = arith.mulf %293, %297 : vector<4x8x8xf32>
    %299 = arith.truncf %298 : vector<4x8x8xf32> to vector<4x8x8xbf16>
    "tpu.trace_start"() <{level = 10 : i32, message = "zqk,zkd->zqd"}> : () -> ()
    %cst_152 = arith.constant dense<0.000000e+00> : vector<4x8x16xf32>
    %300 = tpu.matmul %299, %279, %cst_152 {dimension_numbers = #tpu.dot_dimension_numbers<[2], [1], [1], [2], [0, 0, 0, 1, 1, 2], [0], [0]>} : vector<4x8x8xbf16>, vector<4x8x16xbf16>, vector<4x8x16xf32> -> vector<4x8x16xf32>
    %cst_153 = arith.constant 0.000000e+00 : f32
    "tpu.trace_stop"() : () -> ()
    %301 = vector.broadcast %cst_153 : f32 to vector<16x32xf32>
    %302 = vector.extract_strided_slice %300 {offsets = [0, 0, 0], sizes = [2, 8, 16], strides = [1, 1, 1]} : vector<4x8x16xf32> to vector<2x8x16xf32>
    %303 = vector.shape_cast %302 : vector<2x8x16xf32> to vector<16x16xf32>
    %304 = arith.truncf %303 : vector<16x16xf32> to vector<16x16xbf16>
    %c2_154 = arith.constant 2 : index
    %c0_155 = arith.constant 0 : index
    %c0_156 = arith.constant 0 : index
    %305 = vector.load %arg5[%c2_154, %c0_155, %c0_156] : memref<4x16x32xbf16, #tpu.memory_space<vmem>>, vector<1x16x32xbf16>
    %306 = vector.shape_cast %305 : vector<1x16x32xbf16> to vector<16x32xbf16>
    %cst_157 = arith.constant dense<0.000000e+00> : vector<16x32xf32>
    %307 = tpu.matmul %304, %306, %cst_157 {dimension_numbers = #tpu.dot_dimension_numbers<[1], [0], [0], [1], [0, 0, 1, 1], [], []>} : vector<16x16xbf16>, vector<16x32xbf16>, vector<16x32xf32> -> vector<16x32xf32>
    %308 = arith.addf %301, %307 : vector<16x32xf32>
    %309 = vector.extract_strided_slice %300 {offsets = [2, 0, 0], sizes = [2, 8, 16], strides = [1, 1, 1]} : vector<4x8x16xf32> to vector<2x8x16xf32>
    %310 = vector.shape_cast %309 : vector<2x8x16xf32> to vector<16x16xf32>
    %311 = arith.truncf %310 : vector<16x16xf32> to vector<16x16xbf16>
    %c3_158 = arith.constant 3 : index
    %c0_159 = arith.constant 0 : index
    %c0_160 = arith.constant 0 : index
    %312 = vector.load %arg5[%c3_158, %c0_159, %c0_160] : memref<4x16x32xbf16, #tpu.memory_space<vmem>>, vector<1x16x32xbf16>
    %313 = vector.shape_cast %312 : vector<1x16x32xbf16> to vector<16x32xbf16>
    %cst_161 = arith.constant dense<0.000000e+00> : vector<16x32xf32>
    %314 = tpu.matmul %311, %313, %cst_161 {dimension_numbers = #tpu.dot_dimension_numbers<[1], [0], [0], [1], [0, 0, 1, 1], [], []>} : vector<16x16xbf16>, vector<16x32xbf16>, vector<16x32xf32> -> vector<16x32xf32>
    %315 = arith.addf %308, %314 : vector<16x32xf32>
    %316 = arith.addf %209, %315 : vector<16x32xf32>
    %c5_162 = arith.constant 5 : index
    %c0_163 = arith.constant 0 : index
    %c0_164 = arith.constant 0 : index
    %317 = vector.load %arg6[%c5_162, %c0_163, %c0_164] : memref<10x1x32xf32, #tpu.memory_space<vmem>>, vector<1x1x32xf32>
    %318 = vector.shape_cast %317 : vector<1x1x32xf32> to vector<1x32xf32>
    %c6_165 = arith.constant 6 : index
    %c0_166 = arith.constant 0 : index
    %c0_167 = arith.constant 0 : index
    %319 = vector.load %arg6[%c6_165, %c0_166, %c0_167] : memref<10x1x32xf32, #tpu.memory_space<vmem>>, vector<1x1x32xf32>
    %320 = vector.shape_cast %319 : vector<1x1x32xf32> to vector<1x32xf32>
    %cst_168 = arith.constant dense<0.000000e+00> : vector<16xf32>
    %321 = vector.multi_reduction <add>, %316, %cst_168 [1] : vector<16x32xf32> to vector<16xf32>
    %322 = vector.shape_cast %321 : vector<16xf32> to vector<16x1xf32>
    %cst_169 = arith.constant 3.200000e+01 : f32
    %323 = vector.broadcast %cst_169 : f32 to vector<16x1xf32>
    %324 = arith.divf %322, %323 : vector<16x1xf32>
    %325 = arith.mulf %316, %316 : vector<16x32xf32>
    %cst_170 = arith.constant dense<0.000000e+00> : vector<16xf32>
    %326 = vector.multi_reduction <add>, %325, %cst_170 [1] : vector<16x32xf32> to vector<16xf32>
    %327 = vector.shape_cast %326 : vector<16xf32> to vector<16x1xf32>
    %cst_171 = arith.constant 3.200000e+01 : f32
    %328 = vector.broadcast %cst_171 : f32 to vector<16x1xf32>
    %329 = arith.divf %327, %328 : vector<16x1xf32>
    %330 = arith.mulf %324, %324 : vector<16x1xf32>
    %331 = arith.subf %329, %330 : vector<16x1xf32>
    %cst_172 = arith.constant 0.000000e+00 : f32
    %332 = vector.broadcast %cst_172 : f32 to vector<16x1xf32>
    %333 = arith.maximumf %331, %332 : vector<16x1xf32>
    %334 = vector.broadcast %324 : vector<16x1xf32> to vector<16x32xf32>
    %335 = arith.subf %316, %334 : vector<16x32xf32>
    %cst_173 = arith.constant 9.99999974E-6 : f32
    %336 = vector.broadcast %cst_173 : f32 to vector<16x1xf32>
    %337 = arith.addf %333, %336 : vector<16x1xf32>
    %338 = math.rsqrt %337 : vector<16x1xf32>
    %339 = vector.broadcast %338 : vector<16x1xf32> to vector<16x32xf32>
    %340 = arith.mulf %335, %339 : vector<16x32xf32>
    %341 = vector.broadcast %318 : vector<1x32xf32> to vector<16x32xf32>
    %342 = arith.mulf %340, %341 : vector<16x32xf32>
    %343 = vector.broadcast %320 : vector<1x32xf32> to vector<16x32xf32>
    %344 = arith.addf %342, %343 : vector<16x32xf32>
    %345 = arith.truncf %344 : vector<16x32xf32> to vector<16x32xbf16>
    %c1_174 = arith.constant 1 : index
    %c0_175 = arith.constant 0 : index
    %c0_176 = arith.constant 0 : index
    %346 = vector.load %arg8[%c1_174, %c0_175, %c0_176] : memref<2x32x128xbf16, #tpu.memory_space<vmem>>, vector<1x32x128xbf16>
    %347 = vector.shape_cast %346 : vector<1x32x128xbf16> to vector<32x128xbf16>
    %cst_177 = arith.constant dense<0.000000e+00> : vector<16x128xf32>
    %348 = tpu.matmul %345, %347, %cst_177 {dimension_numbers = #tpu.dot_dimension_numbers<[1], [0], [0], [1], [0, 0, 1, 1], [], []>} : vector<16x32xbf16>, vector<32x128xbf16>, vector<16x128xf32> -> vector<16x128xf32>
    %c1_178 = arith.constant 1 : index
    %c0_179 = arith.constant 0 : index
    %c0_180 = arith.constant 0 : index
    %349 = vector.load %arg7[%c1_178, %c0_179, %c0_180] : memref<2x1x128xf32, #tpu.memory_space<vmem>>, vector<1x1x128xf32>
    %350 = vector.shape_cast %349 : vector<1x1x128xf32> to vector<1x128xf32>
    %351 = vector.broadcast %350 : vector<1x128xf32> to vector<16x128xf32>
    %352 = arith.addf %348, %351 : vector<16x128xf32>
    %cst_181 = arith.constant 0.000000e+00 : f32
    %353 = vector.broadcast %cst_181 : f32 to vector<16x128xf32>
    %354 = arith.maximumf %352, %353 : vector<16x128xf32>
    %355 = arith.truncf %354 : vector<16x128xf32> to vector<16x128xbf16>
    %c1_182 = arith.constant 1 : index
    %c0_183 = arith.constant 0 : index
    %c0_184 = arith.constant 0 : index
    %356 = vector.load %arg9[%c1_182, %c0_183, %c0_184] : memref<2x128x32xbf16, #tpu.memory_space<vmem>>, vector<1x128x32xbf16>
    %357 = vector.shape_cast %356 : vector<1x128x32xbf16> to vector<128x32xbf16>
    %cst_185 = arith.constant dense<0.000000e+00> : vector<16x32xf32>
    %358 = tpu.matmul %355, %357, %cst_185 {dimension_numbers = #tpu.dot_dimension_numbers<[1], [0], [0], [1], [0, 0, 1, 1], [], []>} : vector<16x128xbf16>, vector<128x32xbf16>, vector<16x32xf32> -> vector<16x32xf32>
    %c9_186 = arith.constant 9 : index
    %c0_187 = arith.constant 0 : index
    %c0_188 = arith.constant 0 : index
    %359 = vector.load %arg6[%c9_186, %c0_187, %c0_188] : memref<10x1x32xf32, #tpu.memory_space<vmem>>, vector<1x1x32xf32>
    %360 = vector.shape_cast %359 : vector<1x1x32xf32> to vector<1x32xf32>
    %361 = vector.broadcast %360 : vector<1x32xf32> to vector<16x32xf32>
    %362 = arith.addf %358, %361 : vector<16x32xf32>
    %363 = arith.addf %344, %362 : vector<16x32xf32>
    %c7_189 = arith.constant 7 : index
    %c0_190 = arith.constant 0 : index
    %c0_191 = arith.constant 0 : index
    %364 = vector.load %arg6[%c7_189, %c0_190, %c0_191] : memref<10x1x32xf32, #tpu.memory_space<vmem>>, vector<1x1x32xf32>
    %365 = vector.shape_cast %364 : vector<1x1x32xf32> to vector<1x32xf32>
    %c8_192 = arith.constant 8 : index
    %c0_193 = arith.constant 0 : index
    %c0_194 = arith.constant 0 : index
    %366 = vector.load %arg6[%c8_192, %c0_193, %c0_194] : memref<10x1x32xf32, #tpu.memory_space<vmem>>, vector<1x1x32xf32>
    %367 = vector.shape_cast %366 : vector<1x1x32xf32> to vector<1x32xf32>
    %cst_195 = arith.constant dense<0.000000e+00> : vector<16xf32>
    %368 = vector.multi_reduction <add>, %363, %cst_195 [1] : vector<16x32xf32> to vector<16xf32>
    %369 = vector.shape_cast %368 : vector<16xf32> to vector<16x1xf32>
    %cst_196 = arith.constant 3.200000e+01 : f32
    %370 = vector.broadcast %cst_196 : f32 to vector<16x1xf32>
    %371 = arith.divf %369, %370 : vector<16x1xf32>
    %372 = arith.mulf %363, %363 : vector<16x32xf32>
    %cst_197 = arith.constant dense<0.000000e+00> : vector<16xf32>
    %373 = vector.multi_reduction <add>, %372, %cst_197 [1] : vector<16x32xf32> to vector<16xf32>
    %374 = vector.shape_cast %373 : vector<16xf32> to vector<16x1xf32>
    %cst_198 = arith.constant 3.200000e+01 : f32
    %375 = vector.broadcast %cst_198 : f32 to vector<16x1xf32>
    %376 = arith.divf %374, %375 : vector<16x1xf32>
    %377 = arith.mulf %371, %371 : vector<16x1xf32>
    %378 = arith.subf %376, %377 : vector<16x1xf32>
    %cst_199 = arith.constant 0.000000e+00 : f32
    %379 = vector.broadcast %cst_199 : f32 to vector<16x1xf32>
    %380 = arith.maximumf %378, %379 : vector<16x1xf32>
    %381 = vector.broadcast %371 : vector<16x1xf32> to vector<16x32xf32>
    %382 = arith.subf %363, %381 : vector<16x32xf32>
    %cst_200 = arith.constant 9.99999974E-6 : f32
    %383 = vector.broadcast %cst_200 : f32 to vector<16x1xf32>
    %384 = arith.addf %380, %383 : vector<16x1xf32>
    %385 = math.rsqrt %384 : vector<16x1xf32>
    %386 = vector.broadcast %385 : vector<16x1xf32> to vector<16x32xf32>
    %387 = arith.mulf %382, %386 : vector<16x32xf32>
    %388 = vector.broadcast %365 : vector<1x32xf32> to vector<16x32xf32>
    %389 = arith.mulf %387, %388 : vector<16x32xf32>
    %390 = vector.broadcast %367 : vector<1x32xf32> to vector<16x32xf32>
    %391 = arith.addf %389, %390 : vector<16x32xf32>
    %392 = arith.truncf %391 : vector<16x32xf32> to vector<16x32xbf16>
    %c0_201 = arith.constant 0 : index
    %c0_202 = arith.constant 0 : index
    %393 = vector.load %arg10[%c0_201, %c0_202] : memref<32x128xbf16, #tpu.memory_space<vmem>>, vector<32x128xbf16>
    %cst_203 = arith.constant dense<0.000000e+00> : vector<16x128xf32>
    %394 = tpu.matmul %392, %393, %cst_203 {dimension_numbers = #tpu.dot_dimension_numbers<[1], [0], [0], [1], [0, 0, 1, 1], [], []>} : vector<16x32xbf16>, vector<32x128xbf16>, vector<16x128xf32> -> vector<16x128xf32>
    %c0_204 = arith.constant 0 : index
    %c0_205 = arith.constant 0 : index
    %395 = vector.load %arg11[%c0_204, %c0_205] : memref<1x128xf32, #tpu.memory_space<vmem>>, vector<1x128xf32>
    %396 = vector.broadcast %395 : vector<1x128xf32> to vector<16x128xf32>
    %397 = arith.addf %394, %396 : vector<16x128xf32>
    %cst_206 = arith.constant dense<0xFF800000> : vector<16xf32>
    %398 = vector.multi_reduction <maximumf>, %397, %cst_206 [1] : vector<16x128xf32> to vector<16xf32>
    %399 = vector.shape_cast %398 : vector<16xf32> to vector<16x1xf32>
    %400 = vector.broadcast %399 : vector<16x1xf32> to vector<16x128xf32>
    %401 = arith.subf %397, %400 : vector<16x128xf32>
    %402 = math.exp %401 : vector<16x128xf32>
    %cst_207 = arith.constant dense<0.000000e+00> : vector<16xf32>
    %403 = vector.multi_reduction <add>, %402, %cst_207 [1] : vector<16x128xf32> to vector<16xf32>
    %404 = vector.shape_cast %403 : vector<16xf32> to vector<16x1xf32>
    %405 = math.log %404 : vector<16x1xf32>
    %406 = arith.addf %399, %405 : vector<16x1xf32>
    %407 = tpu.iota {dimensions = array<i32: 1>} : vector<16x128xi32>
    %c0_208 = arith.constant 0 : index
    %c0_209 = arith.constant 0 : index
    %408 = vector.load %arg12[%c0_208, %c0_209] : memref<16x1xi32, #tpu.memory_space<vmem>>, vector<16x1xi32>
    %409 = vector.broadcast %408 : vector<16x1xi32> to vector<16x128xi32>
    %410 = arith.cmpi eq, %407, %409 : vector<16x128xi32>
    %cst_210 = arith.constant 0.000000e+00 : f32
    %411 = vector.broadcast %cst_210 : f32 to vector<16x128xf32>
    %412 = arith.select %410, %397, %411 : vector<16x128xi1>, vector<16x128xf32>
    %cst_211 = arith.constant dense<0.000000e+00> : vector<16xf32>
    %413 = vector.multi_reduction <add>, %412, %cst_211 [1] : vector<16x128xf32> to vector<16xf32>
    %414 = vector.shape_cast %413 : vector<16xf32> to vector<16x1xf32>
    %415 = arith.subf %406, %414 : vector<16x1xf32>
    %c0_212 = arith.constant 0 : index
    %c0_213 = arith.constant 0 : index
    %416 = vector.load %arg13[%c0_212, %c0_213] : memref<16x1xf32, #tpu.memory_space<vmem>>, vector<16x1xf32>
    tpu.vector_store %arg13[%c0_212, %c0_213], %415 {strides = array<i32>} : memref<16x1xf32, #tpu.memory_space<vmem>>, vector<16x1xf32>,
    return
  }
}

</mosaic_0001>

<llo_original>
// kernel: transformer_xl_forward.1
$region0: #{transformer_xl_forward.1}
  #allocation0 [shape = 'u32[]', space=smem, size = 0x4, offset = 0x4, fixed_abs, tag = 'smem constant byte address 0x4 - core index']
  #allocation1 [shape = 'u32[144,128]{1,0:T(1,128)}', space=vmem, size = 0x12000, scoped, tag = 'internal scratch']
  %s0 = inlined_call_operand.vmem [shape: f32[16,32], index: 0, kind: input, shape index: {}]
  %s1 = inlined_call_operand.vmem [shape: bf16[32,64], index: 1, kind: input, shape index: {}]
  %s2 = inlined_call_operand.vmem [shape: f32[4,1,16], index: 2, kind: input, shape index: {}]
  %s3 = inlined_call_operand.vmem [shape: bf16[12,32,16], index: 3, kind: input, shape index: {}]
  %s4 = inlined_call_operand.vmem [shape: bf16[4,16,32], index: 4, kind: input, shape index: {}]
  %s5 = inlined_call_operand.vmem [shape: bf16[4,16,32], index: 5, kind: input, shape index: {}]
  %s6 = inlined_call_operand.vmem [shape: f32[10,1,32], index: 6, kind: input, shape index: {}]
  %s7 = inlined_call_operand.vmem [shape: f32[2,1,128], index: 7, kind: input, shape index: {}]
  %s8 = inlined_call_operand.vmem [shape: bf16[2,32,128], index: 8, kind: input, shape index: {}]
  %s9 = inlined_call_operand.vmem [shape: bf16[2,128,32], index: 9, kind: input, shape index: {}]
  %s10 = inlined_call_operand.vmem [shape: bf16[32,128], index: 10, kind: input, shape index: {}]
  %s11 = inlined_call_operand.vmem [shape: f32[1,128], index: 11, kind: input, shape index: {}]
  %s12 = inlined_call_operand.vmem [shape: s32[16,1], index: 12, kind: input, shape index: {}]
  %s13 = inlined_call_operand.vmem [shape: f32[16,1], index: 13, kind: output, shape index: {}]
  %s14 = sld [smem:[#allocation0]]
  $region62: #{transformer_xl_forward.1} parent=0
    _
  %s16 = ssub.s32 1, %s14
  %s17 = scalar_select 0, %s16, %s14
  // Predicated region
  $region2: #{transformer_xl_forward.1} parent=0 // pred_check
    _
  $region3: #{transformer_xl_forward.1} parent=0 // pred_check_branch
    %19 = sbr.rel (0) target = $region5
  $region4: #{transformer_xl_forward.1} parent=0 // pred_region
    _
  $region5: #{transformer_xl_forward.1} parent=0 // pred_fallthru
    _
  // Predicated region
  $region6: #{transformer_xl_forward.1} parent=0 // pred_check
    _
  $region7: #{transformer_xl_forward.1} parent=0 // pred_check_branch
    %21 = sbr.rel (0) target = $region9
  $region8: #{transformer_xl_forward.1} parent=0 // pred_region
    _
  $region9: #{transformer_xl_forward.1} parent=0 // pred_fallthru
    _
  // Predicated region
  $region10: #{transformer_xl_forward.1} parent=0 // pred_check
    _
  $region11: #{transformer_xl_forward.1} parent=0 // pred_check_branch
    %23 = sbr.rel (0) target = $region13
  $region12: #{transformer_xl_forward.1} parent=0 // pred_region
    _
  $region13: #{transformer_xl_forward.1} parent=0 // pred_fallthru
    _
  // Predicated region
  $region14: #{transformer_xl_forward.1} parent=0 // pred_check
    _
  $region15: #{transformer_xl_forward.1} parent=0 // pred_check_branch
    %25 = sbr.rel (0) target = $region17
  $region16: #{transformer_xl_forward.1} parent=0 // pred_region
    _
  $region17: #{transformer_xl_forward.1} parent=0 // pred_fallthru
    _
  // Predicated region
  $region18: #{transformer_xl_forward.1} parent=0 // pred_check
    _
  $region19: #{transformer_xl_forward.1} parent=0 // pred_check_branch
    %27 = sbr.rel (0) target = $region21
  $region20: #{transformer_xl_forward.1} parent=0 // pred_region
    _
  $region21: #{transformer_xl_forward.1} parent=0 // pred_fallthru
    _
  // Predicated region
  $region22: #{transformer_xl_forward.1} parent=0 // pred_check
    _
  $region23: #{transformer_xl_forward.1} parent=0 // pred_check_branch
    %29 = sbr.rel (0) target = $region25
  $region24: #{transformer_xl_forward.1} parent=0 // pred_region
    _
  $region25: #{transformer_xl_forward.1} parent=0 // pred_fallthru
    _
  // Predicated region
  $region26: #{transformer_xl_forward.1} parent=0 // pred_check
    _
  $region27: #{transformer_xl_forward.1} parent=0 // pred_check_branch
    %31 = sbr.rel (0) target = $region29
  $region28: #{transformer_xl_forward.1} parent=0 // pred_region
    _
  $region29: #{transformer_xl_forward.1} parent=0 // pred_fallthru
    _
  // Predicated region
  $region30: #{transformer_xl_forward.1} parent=0 // pred_check
    _
  $region31: #{transformer_xl_forward.1} parent=0 // pred_check_branch
    %33 = sbr.rel (0) target = $region33
  $region32: #{transformer_xl_forward.1} parent=0 // pred_region
    _
  $region33: #{transformer_xl_forward.1} parent=0 // pred_fallthru
    _
  // Predicated region
  $region34: #{transformer_xl_forward.1} parent=0 // pred_check
    _
  $region35: #{transformer_xl_forward.1} parent=0 // pred_check_branch
    %35 = sbr.rel (0) target = $region37
  $region36: #{transformer_xl_forward.1} parent=0 // pred_region
    _
  $region37: #{transformer_xl_forward.1} parent=0 // pred_fallthru
    _
  // Predicated region
  $region38: #{transformer_xl_forward.1} parent=0 // pred_check
    _
  $region39: #{transformer_xl_forward.1} parent=0 // pred_check_branch
    %37 = sbr.rel (0) target = $region41
  $region40: #{transformer_xl_forward.1} parent=0 // pred_region
    _
  $region41: #{transformer_xl_forward.1} parent=0 // pred_fallthru
    _
  // Predicated region
  $region42: #{transformer_xl_forward.1} parent=0 // pred_check
    _
  $region43: #{transformer_xl_forward.1} parent=0 // pred_check_branch
    %39 = sbr.rel (0) target = $region45
  $region44: #{transformer_xl_forward.1} parent=0 // pred_region
    _
  $region45: #{transformer_xl_forward.1} parent=0 // pred_fallthru
    _
  // Predicated region
  $region46: #{transformer_xl_forward.1} parent=0 // pred_check
    _
  $region47: #{transformer_xl_forward.1} parent=0 // pred_check_branch
    %41 = sbr.rel (0) target = $region49
  $region48: #{transformer_xl_forward.1} parent=0 // pred_region
    _
  $region49: #{transformer_xl_forward.1} parent=0 // pred_fallthru
    _
  // Predicated region
  $region50: #{transformer_xl_forward.1} parent=0 // pred_check
    _
  $region51: #{transformer_xl_forward.1} parent=0 // pred_check_branch
    %43 = sbr.rel (0) target = $region53
  $region52: #{transformer_xl_forward.1} parent=0 // pred_region
    _
  $region53: #{transformer_xl_forward.1} parent=0 // pred_fallthru
    _
  %v45 = vld [vmem:[%s0] sm:$0xff]
  %v46 = vld [vmem:[%s0 + $0x8] sm:$0xff]
  %v47 = vld [vmem:[%s1] sm:$0xf]
  %v48 = vld [vmem:[%s1 + $0x4] sm:$0xf]
  %v49 = vld [vmem:[%s1 + $0x8] sm:$0xf]
  %v50 = vld [vmem:[%s1 + $0xc] sm:$0xf]
  %v51 = vlaneseq
  %v52 = vshrl.u32 %v51, 7
  %v53 = vlaneseq
  %v54 = vand.u32 %v53, 127
  %vm55 = vcmp.le.s32.totalorder %v54, %v52
  %v56 = vsel %vm55, 0.0, -1e+30
  %v57 = vmul.u32 %v52, 8
  %vm58 = vcmp.ge.s32.totalorder %v54, %v57
  %v59 = vadd.s32 %v57, 8
  %vm60 = vcmp.lt.s32.totalorder %v54, %v59
  %vm61 = vmand %vm58, %vm60
  %v62 = vsel %vm61, 1.0, 0.0
  %vm63 = vcmp.eq.s32.totalorder %v52, %v54
  %v64 = vsel %vm63, 1.0, 0.0
  %v65 = vpack.c.bf16 %v64, %v64
  %v66 = vpack.c.bf16 %v46, %v45
  %v67 = vld [vmem:[%s3] sm:$0xf]
  %v68 = vld [vmem:[%s3 + $0x4] sm:$0xf]
  %v69 = vld [vmem:[%s3 + $0x8] sm:$0xf]
  %v70 = vld [vmem:[%s3 + $0xc] sm:$0xf]
  %s71 = scalar_lea.vmem %s3, 32
  %v72 = vld [vmem:[%s71] sm:$0xf]
  %v73 = vld [vmem:[%s71 + $0x4] sm:$0xf]
  %v74 = vld [vmem:[%s71 + $0x8] sm:$0xf]
  %v75 = vld [vmem:[%s71 + $0xc] sm:$0xf]
  %s76 = scalar_lea.vmem %s3, 64
  %v77 = vld [vmem:[%s76] sm:$0xf]
  %v78 = vld [vmem:[%s76 + $0x4] sm:$0xf]
  %v79 = vld [vmem:[%s76 + $0x8] sm:$0xf]
  %v80 = vld [vmem:[%s76 + $0xc] sm:$0xf]
  %v85 = vunpack.c.l.b16 %v67
  %v86 = vunpack.c.l.b16 %v68
  %v87 = vunpack.c.l.b16 %v69
  %v88 = vunpack.c.l.b16 %v70
  %v89 = vpack.c.b16 %v86, %v85
  %v90 = vpack.c.b16 %v88, %v87
  %vm93 = vcmask 261120
  %v95 = vsel %vm93, %v66, 0
  %97 = vmatprep.subr.bf16.mxu0 0
  %98 = vmatpush1.bf16.msra.mxu0 %v89
  %99 = vmatprep.subr.bf16.mxu0 0
  %100 = vmatpush1.bf16.msra.mxu0 %v90
  %101 = vmatprep.subr.bf16.mxu0 0
  %102 = vmatpush1.bf16.msra.mxu0 0
  %103 = vmatprep.subr.bf16.mxu0 0
  %104 = vmatpush1.bf16.msra.mxu0 0
  %105 = vmatprep.subr.bf16.mxu0 0
  %106 = vmatpush1.bf16.msra.mxu0 0
  %107 = vmatprep.subr.bf16.mxu0 0
  %108 = vmatpush1.bf16.msra.mxu0 0
  %109 = vmatprep.subr.bf16.mxu0 0
  %110 = vmatpush1.bf16.msra.mxu0 0
  %111 = vmatprep.subr.bf16.mxu0 0
  %112 = vmatpush1.bf16.msra.mxu0 0
  %113 = vmatprep.subr.bf16.mxu0 0
  %114 = vmatpush1.bf16.msra.mxu0 0
  %115 = vmatprep.subr.bf16.mxu0 0
  %116 = vmatpush1.bf16.msra.mxu0 0
  %117 = vmatprep.subr.bf16.mxu0 0
  %118 = vmatpush1.bf16.msra.mxu0 0
  %119 = vmatprep.subr.bf16.mxu0 0
  %120 = vmatpush1.bf16.msra.mxu0 0
  %121 = vmatprep.subr.bf16.mxu0 0
  %122 = vmatpush1.bf16.msra.mxu0 0
  %123 = vmatprep.subr.bf16.mxu0 0
  %124 = vmatpush1.bf16.msra.mxu0 0
  %125 = vmatprep.subr.bf16.mxu0 0
  %126 = vmatpush1.bf16.msra.mxu0 0
  %127 = vmatprep.subr.bf16.mxu0 0
  %128 = vmatpush1.bf16.msra.mxu0 0
  %129 = vmatprep.mubr.bf16.mxu0 0
  %130 = vmatmul.mubr.bf16.gmra.mrb[0].mxu0 %v95
  %v131 = vpop.f32.mrb[0].mxu0
  %v132 = vadd.f32 0.0, %v131
  %v133 = vpop.f32.mrb[0].mxu0
  %v134 = vpop.f32.mrb[0].mxu0
  %v135 = vadd.f32 0.0, %v134
  %v136 = vpop.f32.mrb[0].mxu0
  %137 = vdwg.mxu0
  %v142 = vunpack.c.l.b16 %v72
  %v143 = vunpack.c.l.b16 %v73
  %v144 = vunpack.c.l.b16 %v74
  %v145 = vunpack.c.l.b16 %v75
  %v146 = vpack.c.b16 %v143, %v142
  %v147 = vpack.c.b16 %v145, %v144
  %150 = vmatprep.subr.bf16.mxu0 0
  %151 = vmatpush1.bf16.msra.mxu0 %v146
  %152 = vmatprep.subr.bf16.mxu0 0
  %153 = vmatpush1.bf16.msra.mxu0 %v147
  %154 = vmatprep.subr.bf16.mxu0 0
  %155 = vmatpush1.bf16.msra.mxu0 0
  %156 = vmatprep.subr.bf16.mxu0 0
  %157 = vmatpush1.bf16.msra.mxu0 0
  %158 = vmatprep.subr.bf16.mxu0 0
  %159 = vmatpush1.bf16.msra.mxu0 0
  %160 = vmatprep.subr.bf16.mxu0 0
  %161 = vmatpush1.bf16.msra.mxu0 0
  %162 = vmatprep.subr.bf16.mxu0 0
  %163 = vmatpush1.bf16.msra.mxu0 0
  %164 = vmatprep.subr.bf16.mxu0 0
  %165 = vmatpush1.bf16.msra.mxu0 0
  %166 = vmatprep.subr.bf16.mxu0 0
  %167 = vmatpush1.bf16.msra.mxu0 0
  %168 = vmatprep.subr.bf16.mxu0 0
  %169 = vmatpush1.bf16.msra.mxu0 0
  %170 = vmatprep.subr.bf16.mxu0 0
  %171 = vmatpush1.bf16.msra.mxu0 0
  %172 = vmatprep.subr.bf16.mxu0 0
  %173 = vmatpush1.bf16.msra.mxu0 0
  %174 = vmatprep.subr.bf16.mxu0 0
  %175 = vmatpush1.bf16.msra.mxu0 0
  %176 = vmatprep.subr.bf16.mxu0 0
  %177 = vmatpush1.bf16.msra.mxu0 0
  %178 = vmatprep.subr.bf16.mxu0 0
  %179 = vmatpush1.bf16.msra.mxu0 0
  %180 = vmatprep.subr.bf16.mxu0 0
  %181 = vmatpush1.bf16.msra.mxu0 0
  %182 = vmatprep.mubr.bf16.mxu0 0
  %183 = vmatmul.mubr.bf16.gmra.mrb[0].mxu0 %v95
  %v184 = vpop.f32.mrb[0].mxu0
  %v185 = vadd.f32 0.0, %v184
  %v186 = vpop.f32.mrb[0].mxu0
  %v187 = vpop.f32.mrb[0].mxu0
  %v188 = vadd.f32 0.0, %v187
  %v189 = vpop.f32.mrb[0].mxu0
  %190 = vdwg.mxu0
  %v195 = vunpack.c.l.b16 %v77
  %v196 = vunpack.c.l.b16 %v78
  %v197 = vunpack.c.l.b16 %v79
  %v198 = vunpack.c.l.b16 %v80
  %v199 = vpack.c.b16 %v196, %v195
  %v200 = vpack.c.b16 %v198, %v197
  %203 = vmatprep.subr.bf16.mxu0 0
  %204 = vmatpush1.bf16.msra.mxu0 %v199
  %205 = vmatprep.subr.bf16.mxu0 0
  %206 = vmatpush1.bf16.msra.mxu0 %v200
  %207 = vmatprep.subr.bf16.mxu0 0
  %208 = vmatpush1.bf16.msra.mxu0 0
  %209 = vmatprep.subr.bf16.mxu0 0
  %210 = vmatpush1.bf16.msra.mxu0 0
  %211 = vmatprep.subr.bf16.mxu0 0
  %212 = vmatpush1.bf16.msra.mxu0 0
  %213 = vmatprep.subr.bf16.mxu0 0
  %214 = vmatpush1.bf16.msra.mxu0 0
  %215 = vmatprep.subr.bf16.mxu0 0
  %216 = vmatpush1.bf16.msra.mxu0 0
  %217 = vmatprep.subr.bf16.mxu0 0
  %218 = vmatpush1.bf16.msra.mxu0 0
  %219 = vmatprep.subr.bf16.mxu0 0
  %220 = vmatpush1.bf16.msra.mxu0 0
  %221 = vmatprep.subr.bf16.mxu0 0
  %222 = vmatpush1.bf16.msra.mxu0 0
  %223 = vmatprep.subr.bf16.mxu0 0
  %224 = vmatpush1.bf16.msra.mxu0 0
  %225 = vmatprep.subr.bf16.mxu0 0
  %226 = vmatpush1.bf16.msra.mxu0 0
  %227 = vmatprep.subr.bf16.mxu0 0
  %228 = vmatpush1.bf16.msra.mxu0 0
  %229 = vmatprep.subr.bf16.mxu0 0
  %230 = vmatpush1.bf16.msra.mxu0 0
  %231 = vmatprep.subr.bf16.mxu0 0
  %232 = vmatpush1.bf16.msra.mxu0 0
  %233 = vmatprep.subr.bf16.mxu0 0
  %234 = vmatpush1.bf16.msra.mxu0 0
  %235 = vmatprep.mubr.bf16.mxu0 0
  %236 = vmatmul.mubr.bf16.gmra.mrb[0].mxu0 %v95
  %v237 = vpop.f32.mrb[0].mxu0
  %v238 = vadd.f32 0.0, %v237
  %v239 = vpop.f32.mrb[0].mxu0
  %v240 = vpop.f32.mrb[0].mxu0
  %v241 = vadd.f32 0.0, %v240
  %v242 = vpop.f32.mrb[0].mxu0
  %243 = vdwg.mxu0
  %v244 = vld [vmem:[%s2] sm:$0x1]
  %v246 = vlaneseq
  %v247 = vshrl.u32 %v246, 7
  %v248 = vsub.s32 0, %v247
  %v249 = vrot.slane %v244, %v248
  %v251 = vadd.f32 %v132, %v249
  %v252 = vadd.f32 %v135, %v249
  %s253 = scalar_lea.vmem %s2, 2
  %v254 = vld [vmem:[%s253] sm:$0x1]
  %v256 = vlaneseq
  %v257 = vshrl.u32 %v256, 7
  %v258 = vsub.s32 0, %v257
  %v259 = vrot.slane %v254, %v258
  %v261 = vadd.f32 %v132, %v259
  %v262 = vadd.f32 %v135, %v259
  %v263 = vld [vmem:[%s4] sm:$0xf]
  %v264 = vld [vmem:[%s4 + $0x4] sm:$0xf]
  %v267 = vunpack.c.l.b16 %v263
  %v268 = vunpack.c.l.b16 %v264
  %v269 = vpack.c.b16 %v268, %v267
  %v274 = vunpack.c.l.b16 %v47
  %v275 = vunpack.c.l.b16 %v48
  %v276 = vunpack.c.l.b16 %v49
  %v277 = vunpack.c.l.b16 %v50
  %v278 = vpack.c.b16 %v275, %v274
  %v279 = vpack.c.b16 %v277, %v276
  %v283 = vsel %vm93, %v269, 0
  %285 = vmatprep.subr.bf16.mxu0 0
  %286 = vmatpush1.bf16.msra.mxu0 %v278
  %287 = vmatprep.subr.bf16.mxu0 0
  %288 = vmatpush1.bf16.msra.mxu0 %v279
  %289 = vmatprep.subr.bf16.mxu0 0
  %290 = vmatpush1.bf16.msra.mxu0 0
  %291 = vmatprep.subr.bf16.mxu0 0
  %292 = vmatpush1.bf16.msra.mxu0 0
  %293 = vmatprep.subr.bf16.mxu0 0
  %294 = vmatpush1.bf16.msra.mxu0 0
  %295 = vmatprep.subr.bf16.mxu0 0
  %296 = vmatpush1.bf16.msra.mxu0 0
  %297 = vmatprep.subr.bf16.mxu0 0
  %298 = vmatpush1.bf16.msra.mxu0 0
  %299 = vmatprep.subr.bf16.mxu0 0
  %300 = vmatpush1.bf16.msra.mxu0 0
  %301 = vmatprep.subr.bf16.mxu0 0
  %302 = vmatpush1.bf16.msra.mxu0 0
  %303 = vmatprep.subr.bf16.mxu0 0
  %304 = vmatpush1.bf16.msra.mxu0 0
  %305 = vmatprep.subr.bf16.mxu0 0
  %306 = vmatpush1.bf16.msra.mxu0 0
  %307 = vmatprep.subr.bf16.mxu0 0
  %308 = vmatpush1.bf16.msra.mxu0 0
  %309 = vmatprep.subr.bf16.mxu0 0
  %310 = vmatpush1.bf16.msra.mxu0 0
  %311 = vmatprep.subr.bf16.mxu0 0
  %312 = vmatpush1.bf16.msra.mxu0 0
  %313 = vmatprep.subr.bf16.mxu0 0
  %314 = vmatpush1.bf16.msra.mxu0 0
  %315 = vmatprep.subr.bf16.mxu0 0
  %316 = vmatpush1.bf16.msra.mxu0 0
  %317 = vmatprep.mubr.bf16.mxu0 0
  %318 = vmatmul.mubr.bf16.gmra.mrb[0].mxu0 %v283
  %v319 = vpop.f32.mrb[0].mxu0
  %v320 = vadd.f32 0.0, %v319
  %v321 = vpop.f32.mrb[0].mxu0
  %v322 = vpop.f32.mrb[0].mxu0
  %v323 = vadd.f32 0.0, %v322
  %v324 = vpop.f32.mrb[0].mxu0
  %325 = vdwg.mxu0
  %v326 = vpack.c.bf16 %v262, %v261
  %v327 = vpack.c.bf16 %v323, %v320
  %vm328 = vcmask 130048
  %v330 = vsel %vm328, %v326, 0
  %332 = vmatprep.subr.bf16.mxu0 0
  %333 = vmatpush1.bf16.msra.mxu0 %v327
  %334 = vmatprep.subr.bf16.mxu0 0
  %335 = vmatpush1.bf16.msra.mxu0 0
  %336 = vmatprep.subr.bf16.mxu0 0
  %337 = vmatpush1.bf16.msra.mxu0 0
  %338 = vmatprep.subr.bf16.mxu0 0
  %339 = vmatpush1.bf16.msra.mxu0 0
  %340 = vmatprep.subr.bf16.mxu0 0
  %341 = vmatpush1.bf16.msra.mxu0 0
  %342 = vmatprep.subr.bf16.mxu0 0
  %343 = vmatpush1.bf16.msra.mxu0 0
  %344 = vmatprep.subr.bf16.mxu0 0
  %345 = vmatpush1.bf16.msra.mxu0 0
  %346 = vmatprep.subr.bf16.mxu0 0
  %347 = vmatpush1.bf16.msra.mxu0 0
  %348 = vmatprep.subr.bf16.mxu0 0
  %349 = vmatpush1.bf16.msra.mxu0 0
  %350 = vmatprep.subr.bf16.mxu0 0
  %351 = vmatpush1.bf16.msra.mxu0 0
  %352 = vmatprep.subr.bf16.mxu0 0
  %353 = vmatpush1.bf16.msra.mxu0 0
  %354 = vmatprep.subr.bf16.mxu0 0
  %355 = vmatpush1.bf16.msra.mxu0 0
  %356 = vmatprep.subr.bf16.mxu0 0
  %357 = vmatpush1.bf16.msra.mxu0 0
  %358 = vmatprep.subr.bf16.mxu0 0
  %359 = vmatpush1.bf16.msra.mxu0 0
  %360 = vmatprep.subr.bf16.mxu0 0
  %361 = vmatpush1.bf16.msra.mxu0 0
  %362 = vmatprep.subr.bf16.mxu0 0
  %363 = vmatpush1.bf16.msra.mxu0 0
  %364 = vmatprep.mubr.bf16.mxu0 0
  %365 = vmatmul.mubr.bf16.gmra.mrb[0].mxu0 %v330
  %v366 = vpop.f32.mrb[0].mxu0
  %v367 = vadd.f32 0.0, %v366
  %v368 = vpop.f32.mrb[0].mxu0
  %v369 = vpop.f32.mrb[0].mxu0
  %v370 = vadd.f32 0.0, %v369
  %v371 = vpop.f32.mrb[0].mxu0
  %372 = vdwg.mxu0
  %v373 = vmul.f32 %v367, %v62
  %v374 = vmul.f32 %v370, %v62
  %v375 = vpack.c.bf16 %v374, %v373
  %vm376 = vcmask 523264
  %v378 = vsel %vm376, %v375, 0
  %380 = vmatprep.subr.bf16.mxu0 0
  %381 = vmatpush1.bf16.msra.mxu0 %v65
  %382 = vmatprep.subr.bf16.mxu0 0
  %383 = vmatpush1.bf16.msra.mxu0 %v65
  %384 = vmatprep.subr.bf16.mxu0 0
  %385 = vmatpush1.bf16.msra.mxu0 %v65
  %386 = vmatprep.subr.bf16.mxu0 0
  %387 = vmatpush1.bf16.msra.mxu0 %v65
  %388 = vmatprep.subr.bf16.mxu0 0
  %389 = vmatpush1.bf16.msra.mxu0 0
  %390 = vmatprep.subr.bf16.mxu0 0
  %391 = vmatpush1.bf16.msra.mxu0 0
  %392 = vmatprep.subr.bf16.mxu0 0
  %393 = vmatpush1.bf16.msra.mxu0 0
  %394 = vmatprep.subr.bf16.mxu0 0
  %395 = vmatpush1.bf16.msra.mxu0 0
  %396 = vmatprep.subr.bf16.mxu0 0
  %397 = vmatpush1.bf16.msra.mxu0 0
  %398 = vmatprep.subr.bf16.mxu0 0
  %399 = vmatpush1.bf16.msra.mxu0 0
  %400 = vmatprep.subr.bf16.mxu0 0
  %401 = vmatpush1.bf16.msra.mxu0 0
  %402 = vmatprep.subr.bf16.mxu0 0
  %403 = vmatpush1.bf16.msra.mxu0 0
  %404 = vmatprep.subr.bf16.mxu0 0
  %405 = vmatpush1.bf16.msra.mxu0 0
  %406 = vmatprep.subr.bf16.mxu0 0
  %407 = vmatpush1.bf16.msra.mxu0 0
  %408 = vmatprep.subr.bf16.mxu0 0
  %409 = vmatpush1.bf16.msra.mxu0 0
  %410 = vmatprep.subr.bf16.mxu0 0
  %411 = vmatpush1.bf16.msra.mxu0 0
  %412 = vmatprep.mubr.bf16.mxu0 0
  %413 = vmatmul.mubr.bf16.gmra.mrb[0].mxu0 %v378
  %v414 = vpop.f32.mrb[0].mxu0
  %v415 = vadd.f32 0.0, %v414
  %v416 = vpop.f32.mrb[0].mxu0
  %v417 = vpop.f32.mrb[0].mxu0
  %v418 = vadd.f32 0.0, %v417
  %v419 = vpop.f32.mrb[0].mxu0
  %420 = vdwg.mxu0
  %s421 = scalar_lea.vmem %s3, 16
  %v422 = vld [vmem:[%s421] sm:$0xf]
  %v423 = vld [vmem:[%s421 + $0x4] sm:$0xf]
  %v424 = vld [vmem:[%s421 + $0x8] sm:$0xf]
  %v425 = vld [vmem:[%s421 + $0xc] sm:$0xf]
  %s426 = scalar_lea.vmem %s3, 48
  %v427 = vld [vmem:[%s426] sm:$0xf]
  %v428 = vld [vmem:[%s426 + $0x4] sm:$0xf]
  %v429 = vld [vmem:[%s426 + $0x8] sm:$0xf]
  %v430 = vld [vmem:[%s426 + $0xc] sm:$0xf]
  %s431 = scalar_lea.vmem %s3, 80
  %v432 = vld [vmem:[%s431] sm:$0xf]
  %v433 = vld [vmem:[%s431 + $0x4] sm:$0xf]
  %v434 = vld [vmem:[%s431 + $0x8] sm:$0xf]
  %v435 = vld [vmem:[%s431 + $0xc] sm:$0xf]
  %v440 = vunpack.c.l.b16 %v422
  %v441 = vunpack.c.l.b16 %v423
  %v442 = vunpack.c.l.b16 %v424
  %v443 = vunpack.c.l.b16 %v425
  %v444 = vpack.c.b16 %v441, %v440
  %v445 = vpack.c.b16 %v443, %v442
  %448 = vmatprep.subr.bf16.mxu0 0
  %449 = vmatpush1.bf16.msra.mxu0 %v444
  %450 = vmatprep.subr.bf16.mxu0 0
  %451 = vmatpush1.bf16.msra.mxu0 %v445
  %452 = vmatprep.subr.bf16.mxu0 0
  %453 = vmatpush1.bf16.msra.mxu0 0
  %454 = vmatprep.subr.bf16.mxu0 0
  %455 = vmatpush1.bf16.msra.mxu0 0
  %456 = vmatprep.subr.bf16.mxu0 0
  %457 = vmatpush1.bf16.msra.mxu0 0
  %458 = vmatprep.subr.bf16.mxu0 0
  %459 = vmatpush1.bf16.msra.mxu0 0
  %460 = vmatprep.subr.bf16.mxu0 0
  %461 = vmatpush1.bf16.msra.mxu0 0
  %462 = vmatprep.subr.bf16.mxu0 0
  %463 = vmatpush1.bf16.msra.mxu0 0
  %464 = vmatprep.subr.bf16.mxu0 0
  %465 = vmatpush1.bf16.msra.mxu0 0
  %466 = vmatprep.subr.bf16.mxu0 0
  %467 = vmatpush1.bf16.msra.mxu0 0
  %468 = vmatprep.subr.bf16.mxu0 0
  %469 = vmatpush1.bf16.msra.mxu0 0
  %470 = vmatprep.subr.bf16.mxu0 0
  %471 = vmatpush1.bf16.msra.mxu0 0
  %472 = vmatprep.subr.bf16.mxu0 0
  %473 = vmatpush1.bf16.msra.mxu0 0
  %474 = vmatprep.subr.bf16.mxu0 0
  %475 = vmatpush1.bf16.msra.mxu0 0
  %476 = vmatprep.subr.bf16.mxu0 0
  %477 = vmatpush1.bf16.msra.mxu0 0
  %478 = vmatprep.subr.bf16.mxu0 0
  %479 = vmatpush1.bf16.msra.mxu0 0
  %480 = vmatprep.mubr.bf16.mxu0 0
  %481 = vmatmul.mubr.bf16.gmra.mrb[0].mxu0 %v95
  %v482 = vpop.f32.mrb[0].mxu0
  %v483 = vadd.f32 0.0, %v482
  %v484 = vpop.f32.mrb[0].mxu0
  %v485 = vpop.f32.mrb[0].mxu0
  %v486 = vadd.f32 0.0, %v485
  %v487 = vpop.f32.mrb[0].mxu0
  %488 = vdwg.mxu0
  %v493 = vunpack.c.l.b16 %v427
  %v494 = vunpack.c.l.b16 %v428
  %v495 = vunpack.c.l.b16 %v429
  %v496 = vunpack.c.l.b16 %v430
  %v497 = vpack.c.b16 %v494, %v493
  %v498 = vpack.c.b16 %v496, %v495
  %501 = vmatprep.subr.bf16.mxu0 0
  %502 = vmatpush1.bf16.msra.mxu0 %v497
  %503 = vmatprep.subr.bf16.mxu0 0
  %504 = vmatpush1.bf16.msra.mxu0 %v498
  %505 = vmatprep.subr.bf16.mxu0 0
  %506 = vmatpush1.bf16.msra.mxu0 0
  %507 = vmatprep.subr.bf16.mxu0 0
  %508 = vmatpush1.bf16.msra.mxu0 0
  %509 = vmatprep.subr.bf16.mxu0 0
  %510 = vmatpush1.bf16.msra.mxu0 0
  %511 = vmatprep.subr.bf16.mxu0 0
  %512 = vmatpush1.bf16.msra.mxu0 0
  %513 = vmatprep.subr.bf16.mxu0 0
  %514 = vmatpush1.bf16.msra.mxu0 0
  %515 = vmatprep.subr.bf16.mxu0 0
  %516 = vmatpush1.bf16.msra.mxu0 0
  %517 = vmatprep.subr.bf16.mxu0 0
  %518 = vmatpush1.bf16.msra.mxu0 0
  %519 = vmatprep.subr.bf16.mxu0 0
  %520 = vmatpush1.bf16.msra.mxu0 0
  %521 = vmatprep.subr.bf16.mxu0 0
  %522 = vmatpush1.bf16.msra.mxu0 0
  %523 = vmatprep.subr.bf16.mxu0 0
  %524 = vmatpush1.bf16.msra.mxu0 0
  %525 = vmatprep.subr.bf16.mxu0 0
  %526 = vmatpush1.bf16.msra.mxu0 0
  %527 = vmatprep.subr.bf16.mxu0 0
  %528 = vmatpush1.bf16.msra.mxu0 0
  %529 = vmatprep.subr.bf16.mxu0 0
  %530 = vmatpush1.bf16.msra.mxu0 0
  %531 = vmatprep.subr.bf16.mxu0 0
  %532 = vmatpush1.bf16.msra.mxu0 0
  %533 = vmatprep.mubr.bf16.mxu0 0
  %534 = vmatmul.mubr.bf16.gmra.mrb[0].mxu0 %v95
  %v535 = vpop.f32.mrb[0].mxu0
  %v536 = vadd.f32 0.0, %v535
  %v537 = vpop.f32.mrb[0].mxu0
  %v538 = vpop.f32.mrb[0].mxu0
  %v539 = vadd.f32 0.0, %v538
  %v540 = vpop.f32.mrb[0].mxu0
  %541 = vdwg.mxu0
  %v546 = vunpack.c.l.b16 %v432
  %v547 = vunpack.c.l.b16 %v433
  %v548 = vunpack.c.l.b16 %v434
  %v549 = vunpack.c.l.b16 %v435
  %v550 = vpack.c.b16 %v547, %v546
  %v551 = vpack.c.b16 %v549, %v548
  %554 = vmatprep.subr.bf16.mxu0 0
  %555 = vmatpush1.bf16.msra.mxu0 %v550
  %556 = vmatprep.subr.bf16.mxu0 0
  %557 = vmatpush1.bf16.msra.mxu0 %v551
  %558 = vmatprep.subr.bf16.mxu0 0
  %559 = vmatpush1.bf16.msra.mxu0 0
  %560 = vmatprep.subr.bf16.mxu0 0
  %561 = vmatpush1.bf16.msra.mxu0 0
  %562 = vmatprep.subr.bf16.mxu0 0
  %563 = vmatpush1.bf16.msra.mxu0 0
  %564 = vmatprep.subr.bf16.mxu0 0
  %565 = vmatpush1.bf16.msra.mxu0 0
  %566 = vmatprep.subr.bf16.mxu0 0
  %567 = vmatpush1.bf16.msra.mxu0 0
  %568 = vmatprep.subr.bf16.mxu0 0
  %569 = vmatpush1.bf16.msra.mxu0 0
  %570 = vmatprep.subr.bf16.mxu0 0
  %571 = vmatpush1.bf16.msra.mxu0 0
  %572 = vmatprep.subr.bf16.mxu0 0
  %573 = vmatpush1.bf16.msra.mxu0 0
  %574 = vmatprep.subr.bf16.mxu0 0
  %575 = vmatpush1.bf16.msra.mxu0 0
  %576 = vmatprep.subr.bf16.mxu0 0
  %577 = vmatpush1.bf16.msra.mxu0 0
  %578 = vmatprep.subr.bf16.mxu0 0
  %579 = vmatpush1.bf16.msra.mxu0 0
  %580 = vmatprep.subr.bf16.mxu0 0
  %581 = vmatpush1.bf16.msra.mxu0 0
  %582 = vmatprep.subr.bf16.mxu0 0
  %583 = vmatpush1.bf16.msra.mxu0 0
  %584 = vmatprep.subr.bf16.mxu0 0
  %585 = vmatpush1.bf16.msra.mxu0 0
  %586 = vmatprep.mubr.bf16.mxu0 0
  %587 = vmatmul.mubr.bf16.gmra.mrb[0].mxu0 %v95
  %v588 = vpop.f32.mrb[0].mxu0
  %v589 = vadd.f32 0.0, %v588
  %v590 = vpop.f32.mrb[0].mxu0
  %v591 = vpop.f32.mrb[0].mxu0
  %v592 = vadd.f32 0.0, %v591
  %v593 = vpop.f32.mrb[0].mxu0
  %594 = vdwg.mxu0
  %s595 = scalar_lea.vmem %s2, 1
  %v596 = vld [vmem:[%s595] sm:$0x1]
  %v598 = vlaneseq
  %v599 = vshrl.u32 %v598, 7
  %v600 = vsub.s32 0, %v599
  %v601 = vrot.slane %v596, %v600
  %v603 = vadd.f32 %v483, %v601
  %v604 = vadd.f32 %v486, %v601
  %s605 = scalar_lea.vmem %s2, 3
  %v606 = vld [vmem:[%s605] sm:$0x1]
  %v608 = vlaneseq
  %v609 = vshrl.u32 %v608, 7
  %v610 = vsub.s32 0, %v609
  %v611 = vrot.slane %v606, %v610
  %v613 = vadd.f32 %v483, %v611
  %v614 = vadd.f32 %v486, %v611
  %s615 = scalar_lea.vmem %s4, 8
  %v616 = vld [vmem:[%s615] sm:$0xf]
  %v617 = vld [vmem:[%s615 + $0x4] sm:$0xf]
  %v620 = vunpack.c.l.b16 %v616
  %v621 = vunpack.c.l.b16 %v617
  %v622 = vpack.c.b16 %v621, %v620
  %v624 = vsel %vm93, %v622, 0
  %626 = vmatprep.subr.bf16.mxu0 0
  %627 = vmatpush1.bf16.msra.mxu0 %v278
  %628 = vmatprep.subr.bf16.mxu0 0
  %629 = vmatpush1.bf16.msra.mxu0 %v279
  %630 = vmatprep.subr.bf16.mxu0 0
  %631 = vmatpush1.bf16.msra.mxu0 0
  %632 = vmatprep.subr.bf16.mxu0 0
  %633 = vmatpush1.bf16.msra.mxu0 0
  %634 = vmatprep.subr.bf16.mxu0 0
  %635 = vmatpush1.bf16.msra.mxu0 0
  %636 = vmatprep.subr.bf16.mxu0 0
  %637 = vmatpush1.bf16.msra.mxu0 0
  %638 = vmatprep.subr.bf16.mxu0 0
  %639 = vmatpush1.bf16.msra.mxu0 0
  %640 = vmatprep.subr.bf16.mxu0 0
  %641 = vmatpush1.bf16.msra.mxu0 0
  %642 = vmatprep.subr.bf16.mxu0 0
  %643 = vmatpush1.bf16.msra.mxu0 0
  %644 = vmatprep.subr.bf16.mxu0 0
  %645 = vmatpush1.bf16.msra.mxu0 0
  %646 = vmatprep.subr.bf16.mxu0 0
  %647 = vmatpush1.bf16.msra.mxu0 0
  %648 = vmatprep.subr.bf16.mxu0 0
  %649 = vmatpush1.bf16.msra.mxu0 0
  %650 = vmatprep.subr.bf16.mxu0 0
  %651 = vmatpush1.bf16.msra.mxu0 0
  %652 = vmatprep.subr.bf16.mxu0 0
  %653 = vmatpush1.bf16.msra.mxu0 0
  %654 = vmatprep.subr.bf16.mxu0 0
  %655 = vmatpush1.bf16.msra.mxu0 0
  %656 = vmatprep.subr.bf16.mxu0 0
  %657 = vmatpush1.bf16.msra.mxu0 0
  %658 = vmatprep.mubr.bf16.mxu0 0
  %659 = vmatmul.mubr.bf16.gmra.mrb[0].mxu0 %v624
  %v660 = vpop.f32.mrb[0].mxu0
  %v661 = vadd.f32 0.0, %v660
  %v662 = vpop.f32.mrb[0].mxu0
  %v663 = vpop.f32.mrb[0].mxu0
  %v664 = vadd.f32 0.0, %v663
  %v665 = vpop.f32.mrb[0].mxu0
  %666 = vdwg.mxu0
  %v667 = vpack.c.bf16 %v614, %v613
  %v668 = vpack.c.bf16 %v664, %v661
  %v670 = vsel %vm328, %v667, 0
  %672 = vmatprep.subr.bf16.mxu0 0
  %673 = vmatpush1.bf16.msra.mxu0 %v668
  %674 = vmatprep.subr.bf16.mxu0 0
  %675 = vmatpush1.bf16.msra.mxu0 0
  %676 = vmatprep.subr.bf16.mxu0 0
  %677 = vmatpush1.bf16.msra.mxu0 0
  %678 = vmatprep.subr.bf16.mxu0 0
  %679 = vmatpush1.bf16.msra.mxu0 0
  %680 = vmatprep.subr.bf16.mxu0 0
  %681 = vmatpush1.bf16.msra.mxu0 0
  %682 = vmatprep.subr.bf16.mxu0 0
  %683 = vmatpush1.bf16.msra.mxu0 0
  %684 = vmatprep.subr.bf16.mxu0 0
  %685 = vmatpush1.bf16.msra.mxu0 0
  %686 = vmatprep.subr.bf16.mxu0 0
  %687 = vmatpush1.bf16.msra.mxu0 0
  %688 = vmatprep.subr.bf16.mxu0 0
  %689 = vmatpush1.bf16.msra.mxu0 0
  %690 = vmatprep.subr.bf16.mxu0 0
  %691 = vmatpush1.bf16.msra.mxu0 0
  %692 = vmatprep.subr.bf16.mxu0 0
  %693 = vmatpush1.bf16.msra.mxu0 0
  %694 = vmatprep.subr.bf16.mxu0 0
  %695 = vmatpush1.bf16.msra.mxu0 0
  %696 = vmatprep.subr.bf16.mxu0 0
  %697 = vmatpush1.bf16.msra.mxu0 0
  %698 = vmatprep.subr.bf16.mxu0 0
  %699 = vmatpush1.bf16.msra.mxu0 0
  %700 = vmatprep.subr.bf16.mxu0 0
  %701 = vmatpush1.bf16.msra.mxu0 0
  %702 = vmatprep.subr.bf16.mxu0 0
  %703 = vmatpush1.bf16.msra.mxu0 0
  %704 = vmatprep.mubr.bf16.mxu0 0
  %705 = vmatmul.mubr.bf16.gmra.mrb[0].mxu0 %v670
  %v706 = vpop.f32.mrb[0].mxu0
  %v707 = vadd.f32 0.0, %v706
  %v708 = vpop.f32.mrb[0].mxu0
  %v709 = vpop.f32.mrb[0].mxu0
  %v710 = vadd.f32 0.0, %v709
  %v711 = vpop.f32.mrb[0].mxu0
  %712 = vdwg.mxu0
  %v713 = vmul.f32 %v707, %v62
  %v714 = vmul.f32 %v710, %v62
  %v715 = vpack.c.bf16 %v714, %v713
  %v717 = vsel %vm376, %v715, 0
  %719 = vmatprep.subr.bf16.mxu0 0
  %720 = vmatpush1.bf16.msra.mxu0 %v65
  %721 = vmatprep.subr.bf16.mxu0 0
  %722 = vmatpush1.bf16.msra.mxu0 %v65
  %723 = vmatprep.subr.bf16.mxu0 0
  %724 = vmatpush1.bf16.msra.mxu0 %v65
  %725 = vmatprep.subr.bf16.mxu0 0
  %726 = vmatpush1.bf16.msra.mxu0 %v65
  %727 = vmatprep.subr.bf16.mxu0 0
  %728 = vmatpush1.bf16.msra.mxu0 0
  %729 = vmatprep.subr.bf16.mxu0 0
  %730 = vmatpush1.bf16.msra.mxu0 0
  %731 = vmatprep.subr.bf16.mxu0 0
  %732 = vmatpush1.bf16.msra.mxu0 0
  %733 = vmatprep.subr.bf16.mxu0 0
  %734 = vmatpush1.bf16.msra.mxu0 0
  %735 = vmatprep.subr.bf16.mxu0 0
  %736 = vmatpush1.bf16.msra.mxu0 0
  %737 = vmatprep.subr.bf16.mxu0 0
  %738 = vmatpush1.bf16.msra.mxu0 0
  %739 = vmatprep.subr.bf16.mxu0 0
  %740 = vmatpush1.bf16.msra.mxu0 0
  %741 = vmatprep.subr.bf16.mxu0 0
  %742 = vmatpush1.bf16.msra.mxu0 0
  %743 = vmatprep.subr.bf16.mxu0 0
  %744 = vmatpush1.bf16.msra.mxu0 0
  %745 = vmatprep.subr.bf16.mxu0 0
  %746 = vmatpush1.bf16.msra.mxu0 0
  %747 = vmatprep.subr.bf16.mxu0 0
  %748 = vmatpush1.bf16.msra.mxu0 0
  %749 = vmatprep.subr.bf16.mxu0 0
  %750 = vmatpush1.bf16.msra.mxu0 0
  %751 = vmatprep.mubr.bf16.mxu0 0
  %752 = vmatmul.mubr.bf16.gmra.mrb[0].mxu0 %v717
  %v753 = vpop.f32.mrb[0].mxu0
  %v754 = vadd.f32 0.0, %v753
  %v755 = vpop.f32.mrb[0].mxu0
  %v756 = vpop.f32.mrb[0].mxu0
  %v757 = vadd.f32 0.0, %v756
  %v758 = vpop.f32.mrb[0].mxu0
  %759 = vdwg.mxu0
  %v760 = vpack.c.bf16 %v251, %v251
  %v761 = vpack.c.bf16 %v252, %v252
  %v762 = vpack.c.bf16 %v603, %v603
  %v763 = vpack.c.bf16 %v604, %v604
  %v764 = vpack.c.bf16 %v185, %v185
  %v765 = vpack.c.bf16 %v188, %v188
  %v766 = vpack.c.bf16 %v536, %v536
  %v767 = vpack.c.bf16 %v539, %v539
  %v768 = vpack.c.bf16 %v238, %v238
  %v769 = vpack.c.bf16 %v241, %v241
  %v770 = vpack.c.bf16 %v589, %v589
  %v771 = vpack.c.bf16 %v592, %v592
  %v773 = vsel %vm328, %v760, 0
  %v776 = vsel %vm328, %v764, 0
  %778 = vmatprep.subr.bf16.mxu0 0
  %779 = vmatpush1.bf16.xpose.msra.mxu0 %v776
  %780 = vmatprep.subr.bf16.mxu0 0
  %781 = vmatpush1.bf16.xpose.msra.mxu0 0
  %782 = vmatprep.subr.bf16.mxu0 0
  %783 = vmatpush1.bf16.xpose.msra.mxu0 0
  %784 = vmatprep.subr.bf16.mxu0 0
  %785 = vmatpush1.bf16.xpose.msra.mxu0 0
  %786 = vmatprep.subr.bf16.mxu0 0
  %787 = vmatpush1.bf16.xpose.msra.mxu0 0
  %788 = vmatprep.subr.bf16.mxu0 0
  %789 = vmatpush1.bf16.xpose.msra.mxu0 0
  %790 = vmatprep.subr.bf16.mxu0 0
  %791 = vmatpush1.bf16.xpose.msra.mxu0 0
  %792 = vmatprep.subr.bf16.mxu0 0
  %793 = vmatpush1.bf16.xpose.msra.mxu0 0
  %794 = vmatprep.subr.bf16.mxu0 0
  %795 = vmatpush1.bf16.xpose.msra.mxu0 0
  %796 = vmatprep.subr.bf16.mxu0 0
  %797 = vmatpush1.bf16.xpose.msra.mxu0 0
  %798 = vmatprep.subr.bf16.mxu0 0
  %799 = vmatpush1.bf16.xpose.msra.mxu0 0
  %800 = vmatprep.subr.bf16.mxu0 0
  %801 = vmatpush1.bf16.xpose.msra.mxu0 0
  %802 = vmatprep.subr.bf16.mxu0 0
  %803 = vmatpush1.bf16.xpose.msra.mxu0 0
  %804 = vmatprep.subr.bf16.mxu0 0
  %805 = vmatpush1.bf16.xpose.msra.mxu0 0
  %806 = vmatprep.subr.bf16.mxu0 0
  %807 = vmatpush1.bf16.xpose.msra.mxu0 0
  %808 = vmatprep.subr.bf16.mxu0 0
  %809 = vmatpush1.bf16.xpose.msra.mxu0 0
  %810 = vmatprep.mubr.bf16.mxu0 0
  %811 = vmatmul.mubr.bf16.gmra.mrb[0].mxu0 %v773
  %v812 = vpop.f32.mrb[0].mxu0
  %v813 = vadd.f32 %v415, %v812
  %v814 = vpop.f32.mrb[0].mxu0
  %v815 = vpop.f32.mrb[0].mxu0
  %v816 = vpop.f32.mrb[0].mxu0
  %817 = vdwg.mxu0
  %v819 = vsel %vm328, %v761, 0
  %v822 = vsel %vm328, %v765, 0
  %824 = vmatprep.subr.bf16.mxu0 0
  %825 = vmatpush1.bf16.xpose.msra.mxu0 %v822
  %826 = vmatprep.subr.bf16.mxu0 0
  %827 = vmatpush1.bf16.xpose.msra.mxu0 0
  %828 = vmatprep.subr.bf16.mxu0 0
  %829 = vmatpush1.bf16.xpose.msra.mxu0 0
  %830 = vmatprep.subr.bf16.mxu0 0
  %831 = vmatpush1.bf16.xpose.msra.mxu0 0
  %832 = vmatprep.subr.bf16.mxu0 0
  %833 = vmatpush1.bf16.xpose.msra.mxu0 0
  %834 = vmatprep.subr.bf16.mxu0 0
  %835 = vmatpush1.bf16.xpose.msra.mxu0 0
  %836 = vmatprep.subr.bf16.mxu0 0
  %837 = vmatpush1.bf16.xpose.msra.mxu0 0
  %838 = vmatprep.subr.bf16.mxu0 0
  %839 = vmatpush1.bf16.xpose.msra.mxu0 0
  %840 = vmatprep.subr.bf16.mxu0 0
  %841 = vmatpush1.bf16.xpose.msra.mxu0 0
  %842 = vmatprep.subr.bf16.mxu0 0
  %843 = vmatpush1.bf16.xpose.msra.mxu0 0
  %844 = vmatprep.subr.bf16.mxu0 0
  %845 = vmatpush1.bf16.xpose.msra.mxu0 0
  %846 = vmatprep.subr.bf16.mxu0 0
  %847 = vmatpush1.bf16.xpose.msra.mxu0 0
  %848 = vmatprep.subr.bf16.mxu0 0
  %849 = vmatpush1.bf16.xpose.msra.mxu0 0
  %850 = vmatprep.subr.bf16.mxu0 0
  %851 = vmatpush1.bf16.xpose.msra.mxu0 0
  %852 = vmatprep.subr.bf16.mxu0 0
  %853 = vmatpush1.bf16.xpose.msra.mxu0 0
  %854 = vmatprep.subr.bf16.mxu0 0
  %855 = vmatpush1.bf16.xpose.msra.mxu0 0
  %856 = vmatprep.mubr.bf16.mxu0 0
  %857 = vmatmul.mubr.bf16.gmra.mrb[0].mxu0 %v819
  %v858 = vpop.f32.mrb[0].mxu0
  %v859 = vadd.f32 %v418, %v858
  %v860 = vpop.f32.mrb[0].mxu0
  %v861 = vpop.f32.mrb[0].mxu0
  %v862 = vpop.f32.mrb[0].mxu0
  %863 = vdwg.mxu0
  %v865 = vsel %vm328, %v762, 0
  %v868 = vsel %vm328, %v766, 0
  %870 = vmatprep.subr.bf16.mxu0 0
  %871 = vmatpush1.bf16.xpose.msra.mxu0 %v868
  %872 = vmatprep.subr.bf16.mxu0 0
  %873 = vmatpush1.bf16.xpose.msra.mxu0 0
  %874 = vmatprep.subr.bf16.mxu0 0
  %875 = vmatpush1.bf16.xpose.msra.mxu0 0
  %876 = vmatprep.subr.bf16.mxu0 0
  %877 = vmatpush1.bf16.xpose.msra.mxu0 0
  %878 = vmatprep.subr.bf16.mxu0 0
  %879 = vmatpush1.bf16.xpose.msra.mxu0 0
  %880 = vmatprep.subr.bf16.mxu0 0
  %881 = vmatpush1.bf16.xpose.msra.mxu0 0
  %882 = vmatprep.subr.bf16.mxu0 0
  %883 = vmatpush1.bf16.xpose.msra.mxu0 0
  %884 = vmatprep.subr.bf16.mxu0 0
  %885 = vmatpush1.bf16.xpose.msra.mxu0 0
  %886 = vmatprep.subr.bf16.mxu0 0
  %887 = vmatpush1.bf16.xpose.msra.mxu0 0
  %888 = vmatprep.subr.bf16.mxu0 0
  %889 = vmatpush1.bf16.xpose.msra.mxu0 0
  %890 = vmatprep.subr.bf16.mxu0 0
  %891 = vmatpush1.bf16.xpose.msra.mxu0 0
  %892 = vmatprep.subr.bf16.mxu0 0
  %893 = vmatpush1.bf16.xpose.msra.mxu0 0
  %894 = vmatprep.subr.bf16.mxu0 0
  %895 = vmatpush1.bf16.xpose.msra.mxu0 0
  %896 = vmatprep.subr.bf16.mxu0 0
  %897 = vmatpush1.bf16.xpose.msra.mxu0 0
  %898 = vmatprep.subr.bf16.mxu0 0
  %899 = vmatpush1.bf16.xpose.msra.mxu0 0
  %900 = vmatprep.subr.bf16.mxu0 0
  %901 = vmatpush1.bf16.xpose.msra.mxu0 0
  %902 = vmatprep.mubr.bf16.mxu0 0
  %903 = vmatmul.mubr.bf16.gmra.mrb[0].mxu0 %v865
  %v904 = vpop.f32.mrb[0].mxu0
  %v905 = vadd.f32 %v754, %v904
  %v906 = vpop.f32.mrb[0].mxu0
  %v907 = vpop.f32.mrb[0].mxu0
  %v908 = vpop.f32.mrb[0].mxu0
  %909 = vdwg.mxu0
  %v911 = vsel %vm328, %v763, 0
  %v914 = vsel %vm328, %v767, 0
  %916 = vmatprep.subr.bf16.mxu0 0
  %917 = vmatpush1.bf16.xpose.msra.mxu0 %v914
  %918 = vmatprep.subr.bf16.mxu0 0
  %919 = vmatpush1.bf16.xpose.msra.mxu0 0
  %920 = vmatprep.subr.bf16.mxu0 0
  %921 = vmatpush1.bf16.xpose.msra.mxu0 0
  %922 = vmatprep.subr.bf16.mxu0 0
  %923 = vmatpush1.bf16.xpose.msra.mxu0 0
  %924 = vmatprep.subr.bf16.mxu0 0
  %925 = vmatpush1.bf16.xpose.msra.mxu0 0
  %926 = vmatprep.subr.bf16.mxu0 0
  %927 = vmatpush1.bf16.xpose.msra.mxu0 0
  %928 = vmatprep.subr.bf16.mxu0 0
  %929 = vmatpush1.bf16.xpose.msra.mxu0 0
  %930 = vmatprep.subr.bf16.mxu0 0
  %931 = vmatpush1.bf16.xpose.msra.mxu0 0
  %932 = vmatprep.subr.bf16.mxu0 0
  %933 = vmatpush1.bf16.xpose.msra.mxu0 0
  %934 = vmatprep.subr.bf16.mxu0 0
  %935 = vmatpush1.bf16.xpose.msra.mxu0 0
  %936 = vmatprep.subr.bf16.mxu0 0
  %937 = vmatpush1.bf16.xpose.msra.mxu0 0
  %938 = vmatprep.subr.bf16.mxu0 0
  %939 = vmatpush1.bf16.xpose.msra.mxu0 0
  %940 = vmatprep.subr.bf16.mxu0 0
  %941 = vmatpush1.bf16.xpose.msra.mxu0 0
  %942 = vmatprep.subr.bf16.mxu0 0
  %943 = vmatpush1.bf16.xpose.msra.mxu0 0
  %944 = vmatprep.subr.bf16.mxu0 0
  %945 = vmatpush1.bf16.xpose.msra.mxu0 0
  %946 = vmatprep.subr.bf16.mxu0 0
  %947 = vmatpush1.bf16.xpose.msra.mxu0 0
  %948 = vmatprep.mubr.bf16.mxu0 0
  %949 = vmatmul.mubr.bf16.gmra.mrb[0].mxu0 %v911
  %v950 = vpop.f32.mrb[0].mxu0
  %v951 = vadd.f32 %v757, %v950
  %v952 = vpop.f32.mrb[0].mxu0
  %v953 = vpop.f32.mrb[0].mxu0
  %v954 = vpop.f32.mrb[0].mxu0
  %955 = vdwg.mxu0
  %v956 = vmul.f32 %v813, 0.25
  %v957 = vmul.f32 %v859, 0.25
  %v958 = vmul.f32 %v905, 0.25
  %v959 = vmul.f32 %v951, 0.25
  %v960 = vadd.f32 %v956, %v56
  %v961 = vadd.f32 %v957, %v56
  %v962 = vadd.f32 %v958, %v56
  %v963 = vadd.f32 %v959, %v56
  %vm964 = vcmask 64512
  %v965 = vsel %vm964, %v960, -inf
  %966 = vmax.xlane.f32.xlu0 %v965
  %v967 = vpop.xlane.xlu0 %966
  %v968 = vsel %vm964, %v961, -inf
  %969 = vmax.xlane.f32.xlu0 %v968
  %v970 = vpop.xlane.xlu0 %969
  %v971 = vsel %vm964, %v962, -inf
  %972 = vmax.xlane.f32.xlu0 %v971
  %v973 = vpop.xlane.xlu0 %972
  %v974 = vsel %vm964, %v963, -inf
  %975 = vmax.xlane.f32.xlu0 %v974
  %v976 = vpop.xlane.xlu0 %975
  %v977 = vsub.f32 %v960, %v967
  %v978 = vsub.f32 %v961, %v970
  %v979 = vsub.f32 %v962, %v973
  %v980 = vsub.f32 %v963, %v976
  %v981 = vmul.f32 %v977, 1.442695
  %v982 = vpow.pop %v981
  %v983 = vmul.f32 %v978, 1.442695
  %v984 = vpow.pop %v983
  %v985 = vmul.f32 %v979, 1.442695
  %v986 = vpow.pop %v985
  %v987 = vmul.f32 %v980, 1.442695
  %v988 = vpow.pop %v987
  %v989 = vsel %vm964, %v982, 0.0
  %990 = vadd.xlane.f32.xlu0 %v989
  %v991 = vpop.xlane.xlu0 %990
  %v992 = vsel %vm964, %v984, 0.0
  %993 = vadd.xlane.f32.xlu0 %v992
  %v994 = vpop.xlane.xlu0 %993
  %v995 = vsel %vm964, %v986, 0.0
  %996 = vadd.xlane.f32.xlu0 %v995
  %v997 = vpop.xlane.xlu0 %996
  %v998 = vsel %vm964, %v988, 0.0
  %999 = vadd.xlane.f32.xlu0 %v998
  %v1000 = vpop.xlane.xlu0 %999
  %v1001 = vrcp.pop %v991
  %v1002 = vrcp.pop %v994
  %v1003 = vrcp.pop %v997
  %v1004 = vrcp.pop %v1000
  %v1005 = vmul.f32 %v982, %v1001
  %v1006 = vmul.f32 %v984, %v1002
  %v1007 = vmul.f32 %v986, %v1003
  %v1008 = vmul.f32 %v988, %v1004
  %v1009 = vpack.c.bf16 %v1005, %v1005
  %v1010 = vpack.c.bf16 %v1006, %v1006
  %v1011 = vpack.c.bf16 %v1007, %v1007
  %v1012 = vpack.c.bf16 %v1008, %v1008
  %v1014 = vsel %vm964, %v1009, 0
  %vm1016 = vcmask 1043456
  %v1018 = vsel %vm1016, %v768, 0
  %1020 = vmatprep.subr.bf16.mxu0 0
  %1021 = vmatpush1.bf16.msra.mxu0 %v1018
  %1022 = vmatprep.subr.bf16.mxu0 0
  %1023 = vmatpush1.bf16.msra.mxu0 0
  %1024 = vmatprep.subr.bf16.mxu0 0
  %1025 = vmatpush1.bf16.msra.mxu0 0
  %1026 = vmatprep.subr.bf16.mxu0 0
  %1027 = vmatpush1.bf16.msra.mxu0 0
  %1028 = vmatprep.subr.bf16.mxu0 0
  %1029 = vmatpush1.bf16.msra.mxu0 0
  %1030 = vmatprep.subr.bf16.mxu0 0
  %1031 = vmatpush1.bf16.msra.mxu0 0
  %1032 = vmatprep.subr.bf16.mxu0 0
  %1033 = vmatpush1.bf16.msra.mxu0 0
  %1034 = vmatprep.subr.bf16.mxu0 0
  %1035 = vmatpush1.bf16.msra.mxu0 0
  %1036 = vmatprep.subr.bf16.mxu0 0
  %1037 = vmatpush1.bf16.msra.mxu0 0
  %1038 = vmatprep.subr.bf16.mxu0 0
  %1039 = vmatpush1.bf16.msra.mxu0 0
  %1040 = vmatprep.subr.bf16.mxu0 0
  %1041 = vmatpush1.bf16.msra.mxu0 0
  %1042 = vmatprep.subr.bf16.mxu0 0
  %1043 = vmatpush1.bf16.msra.mxu0 0
  %1044 = vmatprep.subr.bf16.mxu0 0
  %1045 = vmatpush1.bf16.msra.mxu0 0
  %1046 = vmatprep.subr.bf16.mxu0 0
  %1047 = vmatpush1.bf16.msra.mxu0 0
  %1048 = vmatprep.subr.bf16.mxu0 0
  %1049 = vmatpush1.bf16.msra.mxu0 0
  %1050 = vmatprep.subr.bf16.mxu0 0
  %1051 = vmatpush1.bf16.msra.mxu0 0
  %1052 = vmatprep.mubr.bf16.mxu0 0
  %1053 = vmatmul.mubr.bf16.gmra.mrb[0].mxu0 %v1014
  %v1054 = vpop.f32.mrb[0].mxu0
  %v1055 = vadd.f32 0.0, %v1054
  %v1056 = vpop.f32.mrb[0].mxu0
  %v1057 = vpop.f32.mrb[0].mxu0
  %v1058 = vpop.f32.mrb[0].mxu0
  %1059 = vdwg.mxu0
  %v1061 = vsel %vm964, %v1010, 0
  %v1064 = vsel %vm1016, %v769, 0
  %1066 = vmatprep.subr.bf16.mxu0 0
  %1067 = vmatpush1.bf16.msra.mxu0 %v1064
  %1068 = vmatprep.subr.bf16.mxu0 0
  %1069 = vmatpush1.bf16.msra.mxu0 0
  %1070 = vmatprep.subr.bf16.mxu0 0
  %1071 = vmatpush1.bf16.msra.mxu0 0
  %1072 = vmatprep.subr.bf16.mxu0 0
  %1073 = vmatpush1.bf16.msra.mxu0 0
  %1074 = vmatprep.subr.bf16.mxu0 0
  %1075 = vmatpush1.bf16.msra.mxu0 0
  %1076 = vmatprep.subr.bf16.mxu0 0
  %1077 = vmatpush1.bf16.msra.mxu0 0
  %1078 = vmatprep.subr.bf16.mxu0 0
  %1079 = vmatpush1.bf16.msra.mxu0 0
  %1080 = vmatprep.subr.bf16.mxu0 0
  %1081 = vmatpush1.bf16.msra.mxu0 0
  %1082 = vmatprep.subr.bf16.mxu0 0
  %1083 = vmatpush1.bf16.msra.mxu0 0
  %1084 = vmatprep.subr.bf16.mxu0 0
  %1085 = vmatpush1.bf16.msra.mxu0 0
  %1086 = vmatprep.subr.bf16.mxu0 0
  %1087 = vmatpush1.bf16.msra.mxu0 0
  %1088 = vmatprep.subr.bf16.mxu0 0
  %1089 = vmatpush1.bf16.msra.mxu0 0
  %1090 = vmatprep.subr.bf16.mxu0 0
  %1091 = vmatpush1.bf16.msra.mxu0 0
  %1092 = vmatprep.subr.bf16.mxu0 0
  %1093 = vmatpush1.bf16.msra.mxu0 0
  %1094 = vmatprep.subr.bf16.mxu0 0
  %1095 = vmatpush1.bf16.msra.mxu0 0
  %1096 = vmatprep.subr.bf16.mxu0 0
  %1097 = vmatpush1.bf16.msra.mxu0 0
  %1098 = vmatprep.mubr.bf16.mxu0 0
  %1099 = vmatmul.mubr.bf16.gmra.mrb[0].mxu0 %v1061
  %v1100 = vpop.f32.mrb[0].mxu0
  %v1101 = vadd.f32 0.0, %v1100
  %v1102 = vpop.f32.mrb[0].mxu0
  %v1103 = vpop.f32.mrb[0].mxu0
  %v1104 = vpop.f32.mrb[0].mxu0
  %1105 = vdwg.mxu0
  %v1107 = vsel %vm964, %v1011, 0
  %v1110 = vsel %vm1016, %v770, 0
  %1112 = vmatprep.subr.bf16.mxu0 0
  %1113 = vmatpush1.bf16.msra.mxu0 %v1110
  %1114 = vmatprep.subr.bf16.mxu0 0
  %1115 = vmatpush1.bf16.msra.mxu0 0
  %1116 = vmatprep.subr.bf16.mxu0 0
  %1117 = vmatpush1.bf16.msra.mxu0 0
  %1118 = vmatprep.subr.bf16.mxu0 0
  %1119 = vmatpush1.bf16.msra.mxu0 0
  %1120 = vmatprep.subr.bf16.mxu0 0
  %1121 = vmatpush1.bf16.msra.mxu0 0
  %1122 = vmatprep.subr.bf16.mxu0 0
  %1123 = vmatpush1.bf16.msra.mxu0 0
  %1124 = vmatprep.subr.bf16.mxu0 0
  %1125 = vmatpush1.bf16.msra.mxu0 0
  %1126 = vmatprep.subr.bf16.mxu0 0
  %1127 = vmatpush1.bf16.msra.mxu0 0
  %1128 = vmatprep.subr.bf16.mxu0 0
  %1129 = vmatpush1.bf16.msra.mxu0 0
  %1130 = vmatprep.subr.bf16.mxu0 0
  %1131 = vmatpush1.bf16.msra.mxu0 0
  %1132 = vmatprep.subr.bf16.mxu0 0
  %1133 = vmatpush1.bf16.msra.mxu0 0
  %1134 = vmatprep.subr.bf16.mxu0 0
  %1135 = vmatpush1.bf16.msra.mxu0 0
  %1136 = vmatprep.subr.bf16.mxu0 0
  %1137 = vmatpush1.bf16.msra.mxu0 0
  %1138 = vmatprep.subr.bf16.mxu0 0
  %1139 = vmatpush1.bf16.msra.mxu0 0
  %1140 = vmatprep.subr.bf16.mxu0 0
  %1141 = vmatpush1.bf16.msra.mxu0 0
  %1142 = vmatprep.subr.bf16.mxu0 0
  %1143 = vmatpush1.bf16.msra.mxu0 0
  %1144 = vmatprep.mubr.bf16.mxu0 0
  %1145 = vmatmul.mubr.bf16.gmra.mrb[0].mxu0 %v1107
  %v1146 = vpop.f32.mrb[0].mxu0
  %v1147 = vadd.f32 0.0, %v1146
  %v1148 = vpop.f32.mrb[0].mxu0
  %v1149 = vpop.f32.mrb[0].mxu0
  %v1150 = vpop.f32.mrb[0].mxu0
  %1151 = vdwg.mxu0
  %v1153 = vsel %vm964, %v1012, 0
  %v1156 = vsel %vm1016, %v771, 0
  %1158 = vmatprep.subr.bf16.mxu0 0
  %1159 = vmatpush1.bf16.msra.mxu0 %v1156
  %1160 = vmatprep.subr.bf16.mxu0 0
  %1161 = vmatpush1.bf16.msra.mxu0 0
  %1162 = vmatprep.subr.bf16.mxu0 0
  %1163 = vmatpush1.bf16.msra.mxu0 0
  %1164 = vmatprep.subr.bf16.mxu0 0
  %1165 = vmatpush1.bf16.msra.mxu0 0
  %1166 = vmatprep.subr.bf16.mxu0 0
  %1167 = vmatpush1.bf16.msra.mxu0 0
  %1168 = vmatprep.subr.bf16.mxu0 0
  %1169 = vmatpush1.bf16.msra.mxu0 0
  %1170 = vmatprep.subr.bf16.mxu0 0
  %1171 = vmatpush1.bf16.msra.mxu0 0
  %1172 = vmatprep.subr.bf16.mxu0 0
  %1173 = vmatpush1.bf16.msra.mxu0 0
  %1174 = vmatprep.subr.bf16.mxu0 0
  %1175 = vmatpush1.bf16.msra.mxu0 0
  %1176 = vmatprep.subr.bf16.mxu0 0
  %1177 = vmatpush1.bf16.msra.mxu0 0
  %1178 = vmatprep.subr.bf16.mxu0 0
  %1179 = vmatpush1.bf16.msra.mxu0 0
  %1180 = vmatprep.subr.bf16.mxu0 0
  %1181 = vmatpush1.bf16.msra.mxu0 0
  %1182 = vmatprep.subr.bf16.mxu0 0
  %1183 = vmatpush1.bf16.msra.mxu0 0
  %1184 = vmatprep.subr.bf16.mxu0 0
  %1185 = vmatpush1.bf16.msra.mxu0 0
  %1186 = vmatprep.subr.bf16.mxu0 0
  %1187 = vmatpush1.bf16.msra.mxu0 0
  %1188 = vmatprep.subr.bf16.mxu0 0
  %1189 = vmatpush1.bf16.msra.mxu0 0
  %1190 = vmatprep.mubr.bf16.mxu0 0
  %1191 = vmatmul.mubr.bf16.gmra.mrb[0].mxu0 %v1153
  %v1192 = vpop.f32.mrb[0].mxu0
  %v1193 = vadd.f32 0.0, %v1192
  %v1194 = vpop.f32.mrb[0].mxu0
  %v1195 = vpop.f32.mrb[0].mxu0
  %v1196 = vpop.f32.mrb[0].mxu0
  %1197 = vdwg.mxu0
  %v1198 = vpack.c.bf16 %v1101, %v1055
  %v1199 = vld [vmem:[%s5] sm:$0xf]
  %v1200 = vld [vmem:[%s5 + $0x4] sm:$0xf]
  %v1201 = vpack.c.bf16 %v1193, %v1147
  %s1202 = scalar_lea.vmem %s5, 8
  %v1203 = vld [vmem:[%s1202] sm:$0xf]
  %v1204 = vld [vmem:[%s1202 + $0x4] sm:$0xf]
  %v1207 = vunpack.c.l.b16 %v1203
  %v1208 = vunpack.c.l.b16 %v1204
  %v1209 = vpack.c.b16 %v1208, %v1207
  %v1212 = vsel %vm328, %v1201, 0
  %1214 = vmatprep.subr.bf16.mxu0 0
  %1215 = vmatpush1.bf16.msra.mxu0 %v1209
  %1216 = vmatprep.subr.bf16.mxu0 0
  %1217 = vmatpush1.bf16.msra.mxu0 0
  %1218 = vmatprep.subr.bf16.mxu0 0
  %1219 = vmatpush1.bf16.msra.mxu0 0
  %1220 = vmatprep.subr.bf16.mxu0 0
  %1221 = vmatpush1.bf16.msra.mxu0 0
  %1222 = vmatprep.subr.bf16.mxu0 0
  %1223 = vmatpush1.bf16.msra.mxu0 0
  %1224 = vmatprep.subr.bf16.mxu0 0
  %1225 = vmatpush1.bf16.msra.mxu0 0
  %1226 = vmatprep.subr.bf16.mxu0 0
  %1227 = vmatpush1.bf16.msra.mxu0 0
  %1228 = vmatprep.subr.bf16.mxu0 0
  %1229 = vmatpush1.bf16.msra.mxu0 0
  %1230 = vmatprep.subr.bf16.mxu0 0
  %1231 = vmatpush1.bf16.msra.mxu0 0
  %1232 = vmatprep.subr.bf16.mxu0 0
  %1233 = vmatpush1.bf16.msra.mxu0 0
  %1234 = vmatprep.subr.bf16.mxu0 0
  %1235 = vmatpush1.bf16.msra.mxu0 0
  %1236 = vmatprep.subr.bf16.mxu0 0
  %1237 = vmatpush1.bf16.msra.mxu0 0
  %1238 = vmatprep.subr.bf16.mxu0 0
  %1239 = vmatpush1.bf16.msra.mxu0 0
  %1240 = vmatprep.subr.bf16.mxu0 0
  %1241 = vmatpush1.bf16.msra.mxu0 0
  %1242 = vmatprep.subr.bf16.mxu0 0
  %1243 = vmatpush1.bf16.msra.mxu0 0
  %1244 = vmatprep.subr.bf16.mxu0 0
  %1245 = vmatpush1.bf16.msra.mxu0 0
  %1246 = vmatprep.mubr.bf16.mxu0 0
  %1247 = vmatmul.mubr.bf16.gmra.mrb[0].mxu0 %v1212
  %v1248 = vpop.f32.mrb[0].mxu0
  %v1249 = vadd.f32 0.0, %v1248
  %v1250 = vpop.f32.mrb[0].mxu0
  %v1251 = vpop.f32.mrb[0].mxu0
  %v1252 = vadd.f32 0.0, %v1251
  %v1253 = vpop.f32.mrb[0].mxu0
  %1254 = vdwg.mxu0
  %v1257 = vunpack.c.l.b16 %v1199
  %v1258 = vunpack.c.l.b16 %v1200
  %v1259 = vpack.c.b16 %v1258, %v1257
  %v1262 = vsel %vm328, %v1198, 0
  %1264 = vmatprep.subr.bf16.mxu0 0
  %1265 = vmatpush1.bf16.msra.mxu0 %v1259
  %1266 = vmatprep.subr.bf16.mxu0 0
  %1267 = vmatpush1.bf16.msra.mxu0 0
  %1268 = vmatprep.subr.bf16.mxu0 0
  %1269 = vmatpush1.bf16.msra.mxu0 0
  %1270 = vmatprep.subr.bf16.mxu0 0
  %1271 = vmatpush1.bf16.msra.mxu0 0
  %1272 = vmatprep.subr.bf16.mxu0 0
  %1273 = vmatpush1.bf16.msra.mxu0 0
  %1274 = vmatprep.subr.bf16.mxu0 0
  %1275 = vmatpush1.bf16.msra.mxu0 0
  %1276 = vmatprep.subr.bf16.mxu0 0
  %1277 = vmatpush1.bf16.msra.mxu0 0
  %1278 = vmatprep.subr.bf16.mxu0 0
  %1279 = vmatpush1.bf16.msra.mxu0 0
  %1280 = vmatprep.subr.bf16.mxu0 0
  %1281 = vmatpush1.bf16.msra.mxu0 0
  %1282 = vmatprep.subr.bf16.mxu0 0
  %1283 = vmatpush1.bf16.msra.mxu0 0
  %1284 = vmatprep.subr.bf16.mxu0 0
  %1285 = vmatpush1.bf16.msra.mxu0 0
  %1286 = vmatprep.subr.bf16.mxu0 0
  %1287 = vmatpush1.bf16.msra.mxu0 0
  %1288 = vmatprep.subr.bf16.mxu0 0
  %1289 = vmatpush1.bf16.msra.mxu0 0
  %1290 = vmatprep.subr.bf16.mxu0 0
  %1291 = vmatpush1.bf16.msra.mxu0 0
  %1292 = vmatprep.subr.bf16.mxu0 0
  %1293 = vmatpush1.bf16.msra.mxu0 0
  %1294 = vmatprep.subr.bf16.mxu0 0
  %1295 = vmatpush1.bf16.msra.mxu0 0
  %1296 = vmatprep.mubr.bf16.mxu0 0
  %1297 = vmatmul.mubr.bf16.gmra.mrb[0].mxu0 %v1262
  %v1298 = vpop.f32.mrb[0].mxu0
  %v1299 = vadd.f32 %v1249, %v1298
  %v1300 = vpop.f32.mrb[0].mxu0
  %v1301 = vpop.f32.mrb[0].mxu0
  %v1302 = vadd.f32 %v1252, %v1301
  %v1303 = vpop.f32.mrb[0].mxu0
  %1304 = vdwg.mxu0
  %v1305 = vadd.f32 %v45, %v1299
  %v1306 = vadd.f32 %v46, %v1302
  %v1307 = vld [vmem:[%s6] sm:$0x1]
  %s1308 = scalar_lea.vmem %s6, 1
  %v1309 = vld [vmem:[%s1308] sm:$0x1]
  %v1310 = vsel %vm93, %v1305, 0.0
  %1311 = vadd.xlane.f32.xlu0 %v1310
  %v1312 = vpop.xlane.xlu0 %1311
  %v1313 = vsel %vm93, %v1306, 0.0
  %1314 = vadd.xlane.f32.xlu0 %v1313
  %v1315 = vpop.xlane.xlu0 %1314
  %v1316 = vrcp.pop 32.0
  %v1317 = vmul.f32 %v1312, %v1316
  %v1318 = vmul.f32 %v1315, %v1316
  %v1319 = vmul.f32 %v1305, %v1305
  %v1320 = vmul.f32 %v1306, %v1306
  %v1321 = vsel %vm93, %v1319, 0.0
  %1322 = vadd.xlane.f32.xlu0 %v1321
  %v1323 = vpop.xlane.xlu0 %1322
  %v1324 = vsel %vm93, %v1320, 0.0
  %1325 = vadd.xlane.f32.xlu0 %v1324
  %v1326 = vpop.xlane.xlu0 %1325
  %v1327 = vmul.f32 %v1323, %v1316
  %v1328 = vmul.f32 %v1326, %v1316
  %v1329 = vmul.f32 %v1317, %v1317
  %v1330 = vmul.f32 %v1318, %v1318
  %v1331 = vsub.f32 %v1327, %v1329
  %v1332 = vsub.f32 %v1328, %v1330
  %v1333 = vmax.f32 %v1331, 0.0
  %v1334 = vmax.f32 %v1332, 0.0
  %v1335 = vsub.f32 %v1305, %v1317
  %v1336 = vsub.f32 %v1306, %v1318
  %v1337 = vadd.f32 %v1333, 1e-05
  %v1338 = vadd.f32 %v1334, 1e-05
  %v1339 = vrsqrt.pop %v1337
  %v1340 = vrsqrt.pop %v1338
  %v1341 = vmul.f32 %v1335, %v1339
  %v1342 = vmul.f32 %v1336, %v1340
  %v1344 = vlaneseq
  %v1345 = vshrl.u32 %v1344, 7
  %v1346 = vsub.s32 0, %v1345
  %v1347 = vrot.slane %v1307, %v1346
  %v1349 = vmul.f32 %v1341, %v1347
  %v1350 = vmul.f32 %v1342, %v1347
  %v1352 = vlaneseq
  %v1353 = vshrl.u32 %v1352, 7
  %v1354 = vsub.s32 0, %v1353
  %v1355 = vrot.slane %v1309, %v1354
  %v1357 = vadd.f32 %v1349, %v1355
  %v1358 = vadd.f32 %v1350, %v1355
  %v1359 = vpack.c.bf16 %v1358, %v1357
  %v1360 = vld [vmem:[%s8] sm:$0xf]
  %v1361 = vld [vmem:[%s8 + $0x4] sm:$0xf]
  %v1362 = vld [vmem:[%s8 + $0x8] sm:$0xf]
  %v1363 = vld [vmem:[%s8 + $0xc] sm:$0xf]
  %v1364 = vld [vmem:[%s7] sm:$0x1]
  %v1366 = vlaneseq
  %v1367 = vshrl.u32 %v1366, 7
  %v1368 = vsub.s32 0, %v1367
  %v1369 = vrot.slane %v1364, %v1368
  %v1375 = vunpack.c.l.b16 %v1360
  %v1376 = vunpack.c.l.b16 %v1361
  %v1377 = vunpack.c.l.b16 %v1362
  %v1378 = vunpack.c.l.b16 %v1363
  %v1379 = vpack.c.b16 %v1376, %v1375
  %v1380 = vpack.c.b16 %v1378, %v1377
  %v1384 = vsel %vm93, %v1359, 0
  %1386 = vmatprep.subr.bf16.mxu0 0
  %1387 = vmatpush1.bf16.msra.mxu0 %v1379
  %1388 = vmatprep.subr.bf16.mxu0 0
  %1389 = vmatpush1.bf16.msra.mxu0 %v1380
  %1390 = vmatprep.subr.bf16.mxu0 0
  %1391 = vmatpush1.bf16.msra.mxu0 0
  %1392 = vmatprep.subr.bf16.mxu0 0
  %1393 = vmatpush1.bf16.msra.mxu0 0
  %1394 = vmatprep.subr.bf16.mxu0 0
  %1395 = vmatpush1.bf16.msra.mxu0 0
  %1396 = vmatprep.subr.bf16.mxu0 0
  %1397 = vmatpush1.bf16.msra.mxu0 0
  %1398 = vmatprep.subr.bf16.mxu0 0
  %1399 = vmatpush1.bf16.msra.mxu0 0
  %1400 = vmatprep.subr.bf16.mxu0 0
  %1401 = vmatpush1.bf16.msra.mxu0 0
  %1402 = vmatprep.subr.bf16.mxu0 0
  %1403 = vmatpush1.bf16.msra.mxu0 0
  %1404 = vmatprep.subr.bf16.mxu0 0
  %1405 = vmatpush1.bf16.msra.mxu0 0
  %1406 = vmatprep.subr.bf16.mxu0 0
  %1407 = vmatpush1.bf16.msra.mxu0 0
  %1408 = vmatprep.subr.bf16.mxu0 0
  %1409 = vmatpush1.bf16.msra.mxu0 0
  %1410 = vmatprep.subr.bf16.mxu0 0
  %1411 = vmatpush1.bf16.msra.mxu0 0
  %1412 = vmatprep.subr.bf16.mxu0 0
  %1413 = vmatpush1.bf16.msra.mxu0 0
  %1414 = vmatprep.subr.bf16.mxu0 0
  %1415 = vmatpush1.bf16.msra.mxu0 0
  %1416 = vmatprep.subr.bf16.mxu0 0
  %1417 = vmatpush1.bf16.msra.mxu0 0
  %1418 = vmatprep.mubr.bf16.mxu0 0
  %1419 = vmatmul.mubr.bf16.gmra.mrb[0].mxu0 %v1384
  %v1420 = vpop.f32.mrb[0].mxu0
  %v1421 = vadd.f32 %v1369, %v1420
  %v1422 = vpop.f32.mrb[0].mxu0
  %v1423 = vpop.f32.mrb[0].mxu0
  %v1424 = vadd.f32 %v1369, %v1423
  %v1425 = vpop.f32.mrb[0].mxu0
  %1426 = vdwg.mxu0
  %v1427 = vmax.f32 %v1421, 0.0
  %v1428 = vmax.f32 %v1424, 0.0
  %v1429 = vpack.c.bf16 %v1428, %v1427
  %v1430 = vld [vmem:[%s9] sm:$0xf]
  %v1431 = vld [vmem:[%s9 + $0x4] sm:$0xf]
  %v1432 = vld [vmem:[%s9 + $0x8] sm:$0xf]
  %v1433 = vld [vmem:[%s9 + $0xc] sm:$0xf]
  %v1434 = vld [vmem:[%s9 + $0x10] sm:$0xf]
  %v1435 = vld [vmem:[%s9 + $0x14] sm:$0xf]
  %v1436 = vld [vmem:[%s9 + $0x18] sm:$0xf]
  %v1437 = vld [vmem:[%s9 + $0x1c] sm:$0xf]
  %v1438 = vld [vmem:[%s9 + $0x20] sm:$0xf]
  %v1439 = vld [vmem:[%s9 + $0x24] sm:$0xf]
  %v1440 = vld [vmem:[%s9 + $0x28] sm:$0xf]
  %v1441 = vld [vmem:[%s9 + $0x2c] sm:$0xf]
  %v1442 = vld [vmem:[%s9 + $0x30] sm:$0xf]
  %v1443 = vld [vmem:[%s9 + $0x34] sm:$0xf]
  %v1444 = vld [vmem:[%s9 + $0x38] sm:$0xf]
  %v1445 = vld [vmem:[%s9 + $0x3c] sm:$0xf]
  %s1446 = scalar_lea.vmem %s6, 4
  %v1447 = vld [vmem:[%s1446] sm:$0x1]
  %v1449 = vlaneseq
  %v1450 = vshrl.u32 %v1449, 7
  %v1451 = vsub.s32 0, %v1450
  %v1452 = vrot.slane %v1447, %v1451
  %v1470 = vunpack.c.l.b16 %v1430
  %v1471 = vunpack.c.l.b16 %v1431
  %v1472 = vunpack.c.l.b16 %v1432
  %v1473 = vunpack.c.l.b16 %v1433
  %v1474 = vunpack.c.l.b16 %v1434
  %v1475 = vunpack.c.l.b16 %v1435
  %v1476 = vunpack.c.l.b16 %v1436
  %v1477 = vunpack.c.l.b16 %v1437
  %v1478 = vunpack.c.l.b16 %v1438
  %v1479 = vunpack.c.l.b16 %v1439
  %v1480 = vunpack.c.l.b16 %v1440
  %v1481 = vunpack.c.l.b16 %v1441
  %v1482 = vunpack.c.l.b16 %v1442
  %v1483 = vunpack.c.l.b16 %v1443
  %v1484 = vunpack.c.l.b16 %v1444
  %v1485 = vunpack.c.l.b16 %v1445
  %v1486 = vpack.c.b16 %v1471, %v1470
  %v1487 = vpack.c.b16 %v1473, %v1472
  %v1488 = vpack.c.b16 %v1475, %v1474
  %v1489 = vpack.c.b16 %v1477, %v1476
  %v1490 = vpack.c.b16 %v1479, %v1478
  %v1491 = vpack.c.b16 %v1481, %v1480
  %v1492 = vpack.c.b16 %v1483, %v1482
  %v1493 = vpack.c.b16 %v1485, %v1484
  %1502 = vmatprep.subr.bf16.mxu0 0
  %1503 = vmatpush1.bf16.msra.mxu0 %v1486
  %1504 = vmatprep.subr.bf16.mxu0 0
  %1505 = vmatpush1.bf16.msra.mxu0 %v1487
  %1506 = vmatprep.subr.bf16.mxu0 0
  %1507 = vmatpush1.bf16.msra.mxu0 %v1488
  %1508 = vmatprep.subr.bf16.mxu0 0
  %1509 = vmatpush1.bf16.msra.mxu0 %v1489
  %1510 = vmatprep.subr.bf16.mxu0 0
  %1511 = vmatpush1.bf16.msra.mxu0 %v1490
  %1512 = vmatprep.subr.bf16.mxu0 0
  %1513 = vmatpush1.bf16.msra.mxu0 %v1491
  %1514 = vmatprep.subr.bf16.mxu0 0
  %1515 = vmatpush1.bf16.msra.mxu0 %v1492
  %1516 = vmatprep.subr.bf16.mxu0 0
  %1517 = vmatpush1.bf16.msra.mxu0 %v1493
  %1518 = vmatprep.subr.bf16.mxu0 0
  %1519 = vmatpush1.bf16.msra.mxu0 0
  %1520 = vmatprep.subr.bf16.mxu0 0
  %1521 = vmatpush1.bf16.msra.mxu0 0
  %1522 = vmatprep.subr.bf16.mxu0 0
  %1523 = vmatpush1.bf16.msra.mxu0 0
  %1524 = vmatprep.subr.bf16.mxu0 0
  %1525 = vmatpush1.bf16.msra.mxu0 0
  %1526 = vmatprep.subr.bf16.mxu0 0
  %1527 = vmatpush1.bf16.msra.mxu0 0
  %1528 = vmatprep.subr.bf16.mxu0 0
  %1529 = vmatpush1.bf16.msra.mxu0 0
  %1530 = vmatprep.subr.bf16.mxu0 0
  %1531 = vmatpush1.bf16.msra.mxu0 0
  %1532 = vmatprep.subr.bf16.mxu0 0
  %1533 = vmatpush1.bf16.msra.mxu0 0
  %1534 = vmatprep.mubr.bf16.mxu0 0
  %1535 = vmatmul.mubr.bf16.gmra.mrb[0].mxu0 %v1429
  %v1536 = vpop.f32.mrb[0].mxu0
  %v1537 = vadd.f32 %v1452, %v1536
  %v1538 = vpop.f32.mrb[0].mxu0
  %v1539 = vpop.f32.mrb[0].mxu0
  %v1540 = vadd.f32 %v1452, %v1539
  %v1541 = vpop.f32.mrb[0].mxu0
  %1542 = vdwg.mxu0
  %v1543 = vadd.f32 %v1357, %v1537
  %v1544 = vadd.f32 %v1358, %v1540
  %s1545 = scalar_lea.vmem %s6, 2
  %v1546 = vld [vmem:[%s1545] sm:$0x1]
  %s1547 = scalar_lea.vmem %s6, 3
  %v1548 = vld [vmem:[%s1547] sm:$0x1]
  %v1549 = vsel %vm93, %v1543, 0.0
  %1550 = vadd.xlane.f32.xlu0 %v1549
  %v1551 = vpop.xlane.xlu0 %1550
  %v1552 = vsel %vm93, %v1544, 0.0
  %1553 = vadd.xlane.f32.xlu0 %v1552
  %v1554 = vpop.xlane.xlu0 %1553
  %v1555 = vmul.f32 %v1551, %v1316
  %v1556 = vmul.f32 %v1554, %v1316
  %v1557 = vmul.f32 %v1543, %v1543
  %v1558 = vmul.f32 %v1544, %v1544
  %v1559 = vsel %vm93, %v1557, 0.0
  %1560 = vadd.xlane.f32.xlu0 %v1559
  %v1561 = vpop.xlane.xlu0 %1560
  %v1562 = vsel %vm93, %v1558, 0.0
  %1563 = vadd.xlane.f32.xlu0 %v1562
  %v1564 = vpop.xlane.xlu0 %1563
  %v1565 = vmul.f32 %v1561, %v1316
  %v1566 = vmul.f32 %v1564, %v1316
  %v1567 = vmul.f32 %v1555, %v1555
  %v1568 = vmul.f32 %v1556, %v1556
  %v1569 = vsub.f32 %v1565, %v1567
  %v1570 = vsub.f32 %v1566, %v1568
  %v1571 = vmax.f32 %v1569, 0.0
  %v1572 = vmax.f32 %v1570, 0.0
  %v1573 = vsub.f32 %v1543, %v1555
  %v1574 = vsub.f32 %v1544, %v1556
  %v1575 = vadd.f32 %v1571, 1e-05
  %v1576 = vadd.f32 %v1572, 1e-05
  %v1577 = vrsqrt.pop %v1575
  %v1578 = vrsqrt.pop %v1576
  %v1579 = vmul.f32 %v1573, %v1577
  %v1580 = vmul.f32 %v1574, %v1578
  %v1582 = vlaneseq
  %v1583 = vshrl.u32 %v1582, 7
  %v1584 = vsub.s32 0, %v1583
  %v1585 = vrot.slane %v1546, %v1584
  %v1587 = vmul.f32 %v1579, %v1585
  %v1588 = vmul.f32 %v1580, %v1585
  %v1590 = vlaneseq
  %v1591 = vshrl.u32 %v1590, 7
  %v1592 = vsub.s32 0, %v1591
  %v1593 = vrot.slane %v1548, %v1592
  %v1595 = vadd.f32 %v1587, %v1593
  %v1596 = vadd.f32 %v1588, %v1593
  %v1597 = vpack.c.bf16 %v1596, %v1595
  %s1598 = scalar_lea.vmem %s3, 96
  %v1599 = vld [vmem:[%s1598] sm:$0xf]
  %v1600 = vld [vmem:[%s1598 + $0x4] sm:$0xf]
  %v1601 = vld [vmem:[%s1598 + $0x8] sm:$0xf]
  %v1602 = vld [vmem:[%s1598 + $0xc] sm:$0xf]
  %s1603 = scalar_lea.vmem %s3, 128
  %v1604 = vld [vmem:[%s1603] sm:$0xf]
  %v1605 = vld [vmem:[%s1603 + $0x4] sm:$0xf]
  %v1606 = vld [vmem:[%s1603 + $0x8] sm:$0xf]
  %v1607 = vld [vmem:[%s1603 + $0xc] sm:$0xf]
  %s1608 = scalar_lea.vmem %s3, 160
  %v1609 = vld [vmem:[%s1608] sm:$0xf]
  %v1610 = vld [vmem:[%s1608 + $0x4] sm:$0xf]
  %v1611 = vld [vmem:[%s1608 + $0x8] sm:$0xf]
  %v1612 = vld [vmem:[%s1608 + $0xc] sm:$0xf]
  %v1617 = vunpack.c.l.b16 %v1599
  %v1618 = vunpack.c.l.b16 %v1600
  %v1619 = vunpack.c.l.b16 %v1601
  %v1620 = vunpack.c.l.b16 %v1602
  %v1621 = vpack.c.b16 %v1618, %v1617
  %v1622 = vpack.c.b16 %v1620, %v1619
  %v1626 = vsel %vm93, %v1597, 0
  %1628 = vmatprep.subr.bf16.mxu0 0
  %1629 = vmatpush1.bf16.msra.mxu0 %v1621
  %1630 = vmatprep.subr.bf16.mxu0 0
  %1631 = vmatpush1.bf16.msra.mxu0 %v1622
  %1632 = vmatprep.subr.bf16.mxu0 0
  %1633 = vmatpush1.bf16.msra.mxu0 0
  %1634 = vmatprep.subr.bf16.mxu0 0
  %1635 = vmatpush1.bf16.msra.mxu0 0
  %1636 = vmatprep.subr.bf16.mxu0 0
  %1637 = vmatpush1.bf16.msra.mxu0 0
  %1638 = vmatprep.subr.bf16.mxu0 0
  %1639 = vmatpush1.bf16.msra.mxu0 0
  %1640 = vmatprep.subr.bf16.mxu0 0
  %1641 = vmatpush1.bf16.msra.mxu0 0
  %1642 = vmatprep.subr.bf16.mxu0 0
  %1643 = vmatpush1.bf16.msra.mxu0 0
  %1644 = vmatprep.subr.bf16.mxu0 0
  %1645 = vmatpush1.bf16.msra.mxu0 0
  %1646 = vmatprep.subr.bf16.mxu0 0
  %1647 = vmatpush1.bf16.msra.mxu0 0
  %1648 = vmatprep.subr.bf16.mxu0 0
  %1649 = vmatpush1.bf16.msra.mxu0 0
  %1650 = vmatprep.subr.bf16.mxu0 0
  %1651 = vmatpush1.bf16.msra.mxu0 0
  %1652 = vmatprep.subr.bf16.mxu0 0
  %1653 = vmatpush1.bf16.msra.mxu0 0
  %1654 = vmatprep.subr.bf16.mxu0 0
  %1655 = vmatpush1.bf16.msra.mxu0 0
  %1656 = vmatprep.subr.bf16.mxu0 0
  %1657 = vmatpush1.bf16.msra.mxu0 0
  %1658 = vmatprep.subr.bf16.mxu0 0
  %1659 = vmatpush1.bf16.msra.mxu0 0
  %1660 = vmatprep.mubr.bf16.mxu0 0
  %1661 = vmatmul.mubr.bf16.gmra.mrb[0].mxu0 %v1626
  %v1662 = vpop.f32.mrb[0].mxu0
  %v1663 = vadd.f32 0.0, %v1662
  %v1664 = vpop.f32.mrb[0].mxu0
  %v1665 = vpop.f32.mrb[0].mxu0
  %v1666 = vadd.f32 0.0, %v1665
  %v1667 = vpop.f32.mrb[0].mxu0
  %1668 = vdwg.mxu0
  %v1673 = vunpack.c.l.b16 %v1604
  %v1674 = vunpack.c.l.b16 %v1605
  %v1675 = vunpack.c.l.b16 %v1606
  %v1676 = vunpack.c.l.b16 %v1607
  %v1677 = vpack.c.b16 %v1674, %v1673
  %v1678 = vpack.c.b16 %v1676, %v1675
  %1681 = vmatprep.subr.bf16.mxu0 0
  %1682 = vmatpush1.bf16.msra.mxu0 %v1677
  %1683 = vmatprep.subr.bf16.mxu0 0
  %1684 = vmatpush1.bf16.msra.mxu0 %v1678
  %1685 = vmatprep.subr.bf16.mxu0 0
  %1686 = vmatpush1.bf16.msra.mxu0 0
  %1687 = vmatprep.subr.bf16.mxu0 0
  %1688 = vmatpush1.bf16.msra.mxu0 0
  %1689 = vmatprep.subr.bf16.mxu0 0
  %1690 = vmatpush1.bf16.msra.mxu0 0
  %1691 = vmatprep.subr.bf16.mxu0 0
  %1692 = vmatpush1.bf16.msra.mxu0 0
  %1693 = vmatprep.subr.bf16.mxu0 0
  %1694 = vmatpush1.bf16.msra.mxu0 0
  %1695 = vmatprep.subr.bf16.mxu0 0
  %1696 = vmatpush1.bf16.msra.mxu0 0
  %1697 = vmatprep.subr.bf16.mxu0 0
  %1698 = vmatpush1.bf16.msra.mxu0 0
  %1699 = vmatprep.subr.bf16.mxu0 0
  %1700 = vmatpush1.bf16.msra.mxu0 0
  %1701 = vmatprep.subr.bf16.mxu0 0
  %1702 = vmatpush1.bf16.msra.mxu0 0
  %1703 = vmatprep.subr.bf16.mxu0 0
  %1704 = vmatpush1.bf16.msra.mxu0 0
  %1705 = vmatprep.subr.bf16.mxu0 0
  %1706 = vmatpush1.bf16.msra.mxu0 0
  %1707 = vmatprep.subr.bf16.mxu0 0
  %1708 = vmatpush1.bf16.msra.mxu0 0
  %1709 = vmatprep.subr.bf16.mxu0 0
  %1710 = vmatpush1.bf16.msra.mxu0 0
  %1711 = vmatprep.subr.bf16.mxu0 0
  %1712 = vmatpush1.bf16.msra.mxu0 0
  %1713 = vmatprep.mubr.bf16.mxu0 0
  %1714 = vmatmul.mubr.bf16.gmra.mrb[0].mxu0 %v1626
  %v1715 = vpop.f32.mrb[0].mxu0
  %v1716 = vadd.f32 0.0, %v1715
  %v1717 = vpop.f32.mrb[0].mxu0
  %v1718 = vpop.f32.mrb[0].mxu0
  %v1719 = vadd.f32 0.0, %v1718
  %v1720 = vpop.f32.mrb[0].mxu0
  %1721 = vdwg.mxu0
  %v1726 = vunpack.c.l.b16 %v1609
  %v1727 = vunpack.c.l.b16 %v1610
  %v1728 = vunpack.c.l.b16 %v1611
  %v1729 = vunpack.c.l.b16 %v1612
  %v1730 = vpack.c.b16 %v1727, %v1726
  %v1731 = vpack.c.b16 %v1729, %v1728
  %1734 = vmatprep.subr.bf16.mxu0 0
  %1735 = vmatpush1.bf16.msra.mxu0 %v1730
  %1736 = vmatprep.subr.bf16.mxu0 0
  %1737 = vmatpush1.bf16.msra.mxu0 %v1731
  %1738 = vmatprep.subr.bf16.mxu0 0
  %1739 = vmatpush1.bf16.msra.mxu0 0
  %1740 = vmatprep.subr.bf16.mxu0 0
  %1741 = vmatpush1.bf16.msra.mxu0 0
  %1742 = vmatprep.subr.bf16.mxu0 0
  %1743 = vmatpush1.bf16.msra.mxu0 0
  %1744 = vmatprep.subr.bf16.mxu0 0
  %1745 = vmatpush1.bf16.msra.mxu0 0
  %1746 = vmatprep.subr.bf16.mxu0 0
  %1747 = vmatpush1.bf16.msra.mxu0 0
  %1748 = vmatprep.subr.bf16.mxu0 0
  %1749 = vmatpush1.bf16.msra.mxu0 0
  %1750 = vmatprep.subr.bf16.mxu0 0
  %1751 = vmatpush1.bf16.msra.mxu0 0
  %1752 = vmatprep.subr.bf16.mxu0 0
  %1753 = vmatpush1.bf16.msra.mxu0 0
  %1754 = vmatprep.subr.bf16.mxu0 0
  %1755 = vmatpush1.bf16.msra.mxu0 0
  %1756 = vmatprep.subr.bf16.mxu0 0
  %1757 = vmatpush1.bf16.msra.mxu0 0
  %1758 = vmatprep.subr.bf16.mxu0 0
  %1759 = vmatpush1.bf16.msra.mxu0 0
  %1760 = vmatprep.subr.bf16.mxu0 0
  %1761 = vmatpush1.bf16.msra.mxu0 0
  %1762 = vmatprep.subr.bf16.mxu0 0
  %1763 = vmatpush1.bf16.msra.mxu0 0
  %1764 = vmatprep.subr.bf16.mxu0 0
  %1765 = vmatpush1.bf16.msra.mxu0 0
  %1766 = vmatprep.mubr.bf16.mxu0 0
  %1767 = vmatmul.mubr.bf16.gmra.mrb[0].mxu0 %v1626
  %v1768 = vpop.f32.mrb[0].mxu0
  %v1769 = vadd.f32 0.0, %v1768
  %v1770 = vpop.f32.mrb[0].mxu0
  %v1771 = vpop.f32.mrb[0].mxu0
  %v1772 = vadd.f32 0.0, %v1771
  %v1773 = vpop.f32.mrb[0].mxu0
  %1774 = vdwg.mxu0
  %v1775 = vld [vmem:[%s2] sm:$0x1]
  %v1777 = vlaneseq
  %v1778 = vshrl.u32 %v1777, 7
  %v1779 = vsub.s32 0, %v1778
  %v1780 = vrot.slane %v1775, %v1779
  %v1782 = vadd.f32 %v1663, %v1780
  %v1783 = vadd.f32 %v1666, %v1780
  %v1784 = vld [vmem:[%s253] sm:$0x1]
  %v1786 = vlaneseq
  %v1787 = vshrl.u32 %v1786, 7
  %v1788 = vsub.s32 0, %v1787
  %v1789 = vrot.slane %v1784, %v1788
  %v1791 = vadd.f32 %v1663, %v1789
  %v1792 = vadd.f32 %v1666, %v1789
  %s1793 = scalar_lea.vmem %s4, 16
  %v1794 = vld [vmem:[%s1793] sm:$0xf]
  %v1795 = vld [vmem:[%s1793 + $0x4] sm:$0xf]
  %v1798 = vunpack.c.l.b16 %v1794
  %v1799 = vunpack.c.l.b16 %v1795
  %v1800 = vpack.c.b16 %v1799, %v1798
  %v1802 = vsel %vm93, %v1800, 0
  %1804 = vmatprep.subr.bf16.mxu0 0
  %1805 = vmatpush1.bf16.msra.mxu0 %v278
  %1806 = vmatprep.subr.bf16.mxu0 0
  %1807 = vmatpush1.bf16.msra.mxu0 %v279
  %1808 = vmatprep.subr.bf16.mxu0 0
  %1809 = vmatpush1.bf16.msra.mxu0 0
  %1810 = vmatprep.subr.bf16.mxu0 0
  %1811 = vmatpush1.bf16.msra.mxu0 0
  %1812 = vmatprep.subr.bf16.mxu0 0
  %1813 = vmatpush1.bf16.msra.mxu0 0
  %1814 = vmatprep.subr.bf16.mxu0 0
  %1815 = vmatpush1.bf16.msra.mxu0 0
  %1816 = vmatprep.subr.bf16.mxu0 0
  %1817 = vmatpush1.bf16.msra.mxu0 0
  %1818 = vmatprep.subr.bf16.mxu0 0
  %1819 = vmatpush1.bf16.msra.mxu0 0
  %1820 = vmatprep.subr.bf16.mxu0 0
  %1821 = vmatpush1.bf16.msra.mxu0 0
  %1822 = vmatprep.subr.bf16.mxu0 0
  %1823 = vmatpush1.bf16.msra.mxu0 0
  %1824 = vmatprep.subr.bf16.mxu0 0
  %1825 = vmatpush1.bf16.msra.mxu0 0
  %1826 = vmatprep.subr.bf16.mxu0 0
  %1827 = vmatpush1.bf16.msra.mxu0 0
  %1828 = vmatprep.subr.bf16.mxu0 0
  %1829 = vmatpush1.bf16.msra.mxu0 0
  %1830 = vmatprep.subr.bf16.mxu0 0
  %1831 = vmatpush1.bf16.msra.mxu0 0
  %1832 = vmatprep.subr.bf16.mxu0 0
  %1833 = vmatpush1.bf16.msra.mxu0 0
  %1834 = vmatprep.subr.bf16.mxu0 0
  %1835 = vmatpush1.bf16.msra.mxu0 0
  %1836 = vmatprep.mubr.bf16.mxu0 0
  %1837 = vmatmul.mubr.bf16.gmra.mrb[0].mxu0 %v1802
  %v1838 = vpop.f32.mrb[0].mxu0
  %v1839 = vadd.f32 0.0, %v1838
  %v1840 = vpop.f32.mrb[0].mxu0
  %v1841 = vpop.f32.mrb[0].mxu0
  %v1842 = vadd.f32 0.0, %v1841
  %v1843 = vpop.f32.mrb[0].mxu0
  %1844 = vdwg.mxu0
  %v1845 = vpack.c.bf16 %v1792, %v1791
  %v1846 = vpack.c.bf16 %v1842, %v1839
  %v1848 = vsel %vm328, %v1845, 0
  %1850 = vmatprep.subr.bf16.mxu0 0
  %1851 = vmatpush1.bf16.msra.mxu0 %v1846
  %1852 = vmatprep.subr.bf16.mxu0 0
  %1853 = vmatpush1.bf16.msra.mxu0 0
  %1854 = vmatprep.subr.bf16.mxu0 0
  %1855 = vmatpush1.bf16.msra.mxu0 0
  %1856 = vmatprep.subr.bf16.mxu0 0
  %1857 = vmatpush1.bf16.msra.mxu0 0
  %1858 = vmatprep.subr.bf16.mxu0 0
  %1859 = vmatpush1.bf16.msra.mxu0 0
  %1860 = vmatprep.subr.bf16.mxu0 0
  %1861 = vmatpush1.bf16.msra.mxu0 0
  %1862 = vmatprep.subr.bf16.mxu0 0
  %1863 = vmatpush1.bf16.msra.mxu0 0
  %1864 = vmatprep.subr.bf16.mxu0 0
  %1865 = vmatpush1.bf16.msra.mxu0 0
  %1866 = vmatprep.subr.bf16.mxu0 0
  %1867 = vmatpush1.bf16.msra.mxu0 0
  %1868 = vmatprep.subr.bf16.mxu0 0
  %1869 = vmatpush1.bf16.msra.mxu0 0
  %1870 = vmatprep.subr.bf16.mxu0 0
  %1871 = vmatpush1.bf16.msra.mxu0 0
  %1872 = vmatprep.subr.bf16.mxu0 0
  %1873 = vmatpush1.bf16.msra.mxu0 0
  %1874 = vmatprep.subr.bf16.mxu0 0
  %1875 = vmatpush1.bf16.msra.mxu0 0
  %1876 = vmatprep.subr.bf16.mxu0 0
  %1877 = vmatpush1.bf16.msra.mxu0 0
  %1878 = vmatprep.subr.bf16.mxu0 0
  %1879 = vmatpush1.bf16.msra.mxu0 0
  %1880 = vmatprep.subr.bf16.mxu0 0
  %1881 = vmatpush1.bf16.msra.mxu0 0
  %1882 = vmatprep.mubr.bf16.mxu0 0
  %1883 = vmatmul.mubr.bf16.gmra.mrb[0].mxu0 %v1848
  %v1884 = vpop.f32.mrb[0].mxu0
  %v1885 = vadd.f32 0.0, %v1884
  %v1886 = vpop.f32.mrb[0].mxu0
  %v1887 = vpop.f32.mrb[0].mxu0
  %v1888 = vadd.f32 0.0, %v1887
  %v1889 = vpop.f32.mrb[0].mxu0
  %1890 = vdwg.mxu0
  %v1891 = vmul.f32 %v1885, %v62
  %v1892 = vmul.f32 %v1888, %v62
  %v1893 = vpack.c.bf16 %v1892, %v1891
  %v1895 = vsel %vm376, %v1893, 0
  %1897 = vmatprep.subr.bf16.mxu0 0
  %1898 = vmatpush1.bf16.msra.mxu0 %v65
  %1899 = vmatprep.subr.bf16.mxu0 0
  %1900 = vmatpush1.bf16.msra.mxu0 %v65
  %1901 = vmatprep.subr.bf16.mxu0 0
  %1902 = vmatpush1.bf16.msra.mxu0 %v65
  %1903 = vmatprep.subr.bf16.mxu0 0
  %1904 = vmatpush1.bf16.msra.mxu0 %v65
  %1905 = vmatprep.subr.bf16.mxu0 0
  %1906 = vmatpush1.bf16.msra.mxu0 0
  %1907 = vmatprep.subr.bf16.mxu0 0
  %1908 = vmatpush1.bf16.msra.mxu0 0
  %1909 = vmatprep.subr.bf16.mxu0 0
  %1910 = vmatpush1.bf16.msra.mxu0 0
  %1911 = vmatprep.subr.bf16.mxu0 0
  %1912 = vmatpush1.bf16.msra.mxu0 0
  %1913 = vmatprep.subr.bf16.mxu0 0
  %1914 = vmatpush1.bf16.msra.mxu0 0
  %1915 = vmatprep.subr.bf16.mxu0 0
  %1916 = vmatpush1.bf16.msra.mxu0 0
  %1917 = vmatprep.subr.bf16.mxu0 0
  %1918 = vmatpush1.bf16.msra.mxu0 0
  %1919 = vmatprep.subr.bf16.mxu0 0
  %1920 = vmatpush1.bf16.msra.mxu0 0
  %1921 = vmatprep.subr.bf16.mxu0 0
  %1922 = vmatpush1.bf16.msra.mxu0 0
  %1923 = vmatprep.subr.bf16.mxu0 0
  %1924 = vmatpush1.bf16.msra.mxu0 0
  %1925 = vmatprep.subr.bf16.mxu0 0
  %1926 = vmatpush1.bf16.msra.mxu0 0
  %1927 = vmatprep.subr.bf16.mxu0 0
  %1928 = vmatpush1.bf16.msra.mxu0 0
  %1929 = vmatprep.mubr.bf16.mxu0 0
  %1930 = vmatmul.mubr.bf16.gmra.mrb[0].mxu0 %v1895
  %v1931 = vpop.f32.mrb[0].mxu0
  %v1932 = vadd.f32 0.0, %v1931
  %v1933 = vpop.f32.mrb[0].mxu0
  %v1934 = vpop.f32.mrb[0].mxu0
  %v1935 = vadd.f32 0.0, %v1934
  %v1936 = vpop.f32.mrb[0].mxu0
  %1937 = vdwg.mxu0
  %s1938 = scalar_lea.vmem %s3, 112
  %v1939 = vld [vmem:[%s1938] sm:$0xf]
  %v1940 = vld [vmem:[%s1938 + $0x4] sm:$0xf]
  %v1941 = vld [vmem:[%s1938 + $0x8] sm:$0xf]
  %v1942 = vld [vmem:[%s1938 + $0xc] sm:$0xf]
  %s1943 = scalar_lea.vmem %s3, 144
  %v1944 = vld [vmem:[%s1943] sm:$0xf]
  %v1945 = vld [vmem:[%s1943 + $0x4] sm:$0xf]
  %v1946 = vld [vmem:[%s1943 + $0x8] sm:$0xf]
  %v1947 = vld [vmem:[%s1943 + $0xc] sm:$0xf]
  %s1948 = scalar_lea.vmem %s3, 176
  %v1949 = vld [vmem:[%s1948] sm:$0xf]
  %v1950 = vld [vmem:[%s1948 + $0x4] sm:$0xf]
  %v1951 = vld [vmem:[%s1948 + $0x8] sm:$0xf]
  %v1952 = vld [vmem:[%s1948 + $0xc] sm:$0xf]
  %v1957 = vunpack.c.l.b16 %v1939
  %v1958 = vunpack.c.l.b16 %v1940
  %v1959 = vunpack.c.l.b16 %v1941
  %v1960 = vunpack.c.l.b16 %v1942
  %v1961 = vpack.c.b16 %v1958, %v1957
  %v1962 = vpack.c.b16 %v1960, %v1959
  %1965 = vmatprep.subr.bf16.mxu0 0
  %1966 = vmatpush1.bf16.msra.mxu0 %v1961
  %1967 = vmatprep.subr.bf16.mxu0 0
  %1968 = vmatpush1.bf16.msra.mxu0 %v1962
  %1969 = vmatprep.subr.bf16.mxu0 0
  %1970 = vmatpush1.bf16.msra.mxu0 0
  %1971 = vmatprep.subr.bf16.mxu0 0
  %1972 = vmatpush1.bf16.msra.mxu0 0
  %1973 = vmatprep.subr.bf16.mxu0 0
  %1974 = vmatpush1.bf16.msra.mxu0 0
  %1975 = vmatprep.subr.bf16.mxu0 0
  %1976 = vmatpush1.bf16.msra.mxu0 0
  %1977 = vmatprep.subr.bf16.mxu0 0
  %1978 = vmatpush1.bf16.msra.mxu0 0
  %1979 = vmatprep.subr.bf16.mxu0 0
  %1980 = vmatpush1.bf16.msra.mxu0 0
  %1981 = vmatprep.subr.bf16.mxu0 0
  %1982 = vmatpush1.bf16.msra.mxu0 0
  %1983 = vmatprep.subr.bf16.mxu0 0
  %1984 = vmatpush1.bf16.msra.mxu0 0
  %1985 = vmatprep.subr.bf16.mxu0 0
  %1986 = vmatpush1.bf16.msra.mxu0 0
  %1987 = vmatprep.subr.bf16.mxu0 0
  %1988 = vmatpush1.bf16.msra.mxu0 0
  %1989 = vmatprep.subr.bf16.mxu0 0
  %1990 = vmatpush1.bf16.msra.mxu0 0
  %1991 = vmatprep.subr.bf16.mxu0 0
  %1992 = vmatpush1.bf16.msra.mxu0 0
  %1993 = vmatprep.subr.bf16.mxu0 0
  %1994 = vmatpush1.bf16.msra.mxu0 0
  %1995 = vmatprep.subr.bf16.mxu0 0
  %1996 = vmatpush1.bf16.msra.mxu0 0
  %1997 = vmatprep.mubr.bf16.mxu0 0
  %1998 = vmatmul.mubr.bf16.gmra.mrb[0].mxu0 %v1626
  %v1999 = vpop.f32.mrb[0].mxu0
  %v2000 = vadd.f32 0.0, %v1999
  %v2001 = vpop.f32.mrb[0].mxu0
  %v2002 = vpop.f32.mrb[0].mxu0
  %v2003 = vadd.f32 0.0, %v2002
  %v2004 = vpop.f32.mrb[0].mxu0
  %2005 = vdwg.mxu0
  %v2010 = vunpack.c.l.b16 %v1944
  %v2011 = vunpack.c.l.b16 %v1945
  %v2012 = vunpack.c.l.b16 %v1946
  %v2013 = vunpack.c.l.b16 %v1947
  %v2014 = vpack.c.b16 %v2011, %v2010
  %v2015 = vpack.c.b16 %v2013, %v2012
  %2018 = vmatprep.subr.bf16.mxu0 0
  %2019 = vmatpush1.bf16.msra.mxu0 %v2014
  %2020 = vmatprep.subr.bf16.mxu0 0
  %2021 = vmatpush1.bf16.msra.mxu0 %v2015
  %2022 = vmatprep.subr.bf16.mxu0 0
  %2023 = vmatpush1.bf16.msra.mxu0 0
  %2024 = vmatprep.subr.bf16.mxu0 0
  %2025 = vmatpush1.bf16.msra.mxu0 0
  %2026 = vmatprep.subr.bf16.mxu0 0
  %2027 = vmatpush1.bf16.msra.mxu0 0
  %2028 = vmatprep.subr.bf16.mxu0 0
  %2029 = vmatpush1.bf16.msra.mxu0 0
  %2030 = vmatprep.subr.bf16.mxu0 0
  %2031 = vmatpush1.bf16.msra.mxu0 0
  %2032 = vmatprep.subr.bf16.mxu0 0
  %2033 = vmatpush1.bf16.msra.mxu0 0
  %2034 = vmatprep.subr.bf16.mxu0 0
  %2035 = vmatpush1.bf16.msra.mxu0 0
  %2036 = vmatprep.subr.bf16.mxu0 0
  %2037 = vmatpush1.bf16.msra.mxu0 0
  %2038 = vmatprep.subr.bf16.mxu0 0
  %2039 = vmatpush1.bf16.msra.mxu0 0
  %2040 = vmatprep.subr.bf16.mxu0 0
  %2041 = vmatpush1.bf16.msra.mxu0 0
  %2042 = vmatprep.subr.bf16.mxu0 0
  %2043 = vmatpush1.bf16.msra.mxu0 0
  %2044 = vmatprep.subr.bf16.mxu0 0
  %2045 = vmatpush1.bf16.msra.mxu0 0
  %2046 = vmatprep.subr.bf16.mxu0 0
  %2047 = vmatpush1.bf16.msra.mxu0 0
  %2048 = vmatprep.subr.bf16.mxu0 0
  %2049 = vmatpush1.bf16.msra.mxu0 0
  %2050 = vmatprep.mubr.bf16.mxu0 0
  %2051 = vmatmul.mubr.bf16.gmra.mrb[0].mxu0 %v1626
  %v2052 = vpop.f32.mrb[0].mxu0
  %v2053 = vadd.f32 0.0, %v2052
  %v2054 = vpop.f32.mrb[0].mxu0
  %v2055 = vpop.f32.mrb[0].mxu0
  %v2056 = vadd.f32 0.0, %v2055
  %v2057 = vpop.f32.mrb[0].mxu0
  %2058 = vdwg.mxu0
  %v2063 = vunpack.c.l.b16 %v1949
  %v2064 = vunpack.c.l.b16 %v1950
  %v2065 = vunpack.c.l.b16 %v1951
  %v2066 = vunpack.c.l.b16 %v1952
  %v2067 = vpack.c.b16 %v2064, %v2063
  %v2068 = vpack.c.b16 %v2066, %v2065
  %2071 = vmatprep.subr.bf16.mxu0 0
  %2072 = vmatpush1.bf16.msra.mxu0 %v2067
  %2073 = vmatprep.subr.bf16.mxu0 0
  %2074 = vmatpush1.bf16.msra.mxu0 %v2068
  %2075 = vmatprep.subr.bf16.mxu0 0
  %2076 = vmatpush1.bf16.msra.mxu0 0
  %2077 = vmatprep.subr.bf16.mxu0 0
  %2078 = vmatpush1.bf16.msra.mxu0 0
  %2079 = vmatprep.subr.bf16.mxu0 0
  %2080 = vmatpush1.bf16.msra.mxu0 0
  %2081 = vmatprep.subr.bf16.mxu0 0
  %2082 = vmatpush1.bf16.msra.mxu0 0
  %2083 = vmatprep.subr.bf16.mxu0 0
  %2084 = vmatpush1.bf16.msra.mxu0 0
  %2085 = vmatprep.subr.bf16.mxu0 0
  %2086 = vmatpush1.bf16.msra.mxu0 0
  %2087 = vmatprep.subr.bf16.mxu0 0
  %2088 = vmatpush1.bf16.msra.mxu0 0
  %2089 = vmatprep.subr.bf16.mxu0 0
  %2090 = vmatpush1.bf16.msra.mxu0 0
  %2091 = vmatprep.subr.bf16.mxu0 0
  %2092 = vmatpush1.bf16.msra.mxu0 0
  %2093 = vmatprep.subr.bf16.mxu0 0
  %2094 = vmatpush1.bf16.msra.mxu0 0
  %2095 = vmatprep.subr.bf16.mxu0 0
  %2096 = vmatpush1.bf16.msra.mxu0 0
  %2097 = vmatprep.subr.bf16.mxu0 0
  %2098 = vmatpush1.bf16.msra.mxu0 0
  %2099 = vmatprep.subr.bf16.mxu0 0
  %2100 = vmatpush1.bf16.msra.mxu0 0
  %2101 = vmatprep.subr.bf16.mxu0 0
  %2102 = vmatpush1.bf16.msra.mxu0 0
  %2103 = vmatprep.mubr.bf16.mxu0 0
  %2104 = vmatmul.mubr.bf16.gmra.mrb[0].mxu0 %v1626
  %v2105 = vpop.f32.mrb[0].mxu0
  %v2106 = vadd.f32 0.0, %v2105
  %v2107 = vpop.f32.mrb[0].mxu0
  %v2108 = vpop.f32.mrb[0].mxu0
  %v2109 = vadd.f32 0.0, %v2108
  %v2110 = vpop.f32.mrb[0].mxu0
  %2111 = vdwg.mxu0
  %v2112 = vld [vmem:[%s595] sm:$0x1]
  %v2114 = vlaneseq
  %v2115 = vshrl.u32 %v2114, 7
  %v2116 = vsub.s32 0, %v2115
  %v2117 = vrot.slane %v2112, %v2116
  %v2119 = vadd.f32 %v2000, %v2117
  %v2120 = vadd.f32 %v2003, %v2117
  %v2121 = vld [vmem:[%s605] sm:$0x1]
  %v2123 = vlaneseq
  %v2124 = vshrl.u32 %v2123, 7
  %v2125 = vsub.s32 0, %v2124
  %v2126 = vrot.slane %v2121, %v2125
  %v2128 = vadd.f32 %v2000, %v2126
  %v2129 = vadd.f32 %v2003, %v2126
  %s2130 = scalar_lea.vmem %s4, 24
  %v2131 = vld [vmem:[%s2130] sm:$0xf]
  %v2132 = vld [vmem:[%s2130 + $0x4] sm:$0xf]
  %v2135 = vunpack.c.l.b16 %v2131
  %v2136 = vunpack.c.l.b16 %v2132
  %v2137 = vpack.c.b16 %v2136, %v2135
  %v2139 = vsel %vm93, %v2137, 0
  %2141 = vmatprep.subr.bf16.mxu0 0
  %2142 = vmatpush1.bf16.msra.mxu0 %v278
  %2143 = vmatprep.subr.bf16.mxu0 0
  %2144 = vmatpush1.bf16.msra.mxu0 %v279
  %2145 = vmatprep.subr.bf16.mxu0 0
  %2146 = vmatpush1.bf16.msra.mxu0 0
  %2147 = vmatprep.subr.bf16.mxu0 0
  %2148 = vmatpush1.bf16.msra.mxu0 0
  %2149 = vmatprep.subr.bf16.mxu0 0
  %2150 = vmatpush1.bf16.msra.mxu0 0
  %2151 = vmatprep.subr.bf16.mxu0 0
  %2152 = vmatpush1.bf16.msra.mxu0 0
  %2153 = vmatprep.subr.bf16.mxu0 0
  %2154 = vmatpush1.bf16.msra.mxu0 0
  %2155 = vmatprep.subr.bf16.mxu0 0
  %2156 = vmatpush1.bf16.msra.mxu0 0
  %2157 = vmatprep.subr.bf16.mxu0 0
  %2158 = vmatpush1.bf16.msra.mxu0 0
  %2159 = vmatprep.subr.bf16.mxu0 0
  %2160 = vmatpush1.bf16.msra.mxu0 0
  %2161 = vmatprep.subr.bf16.mxu0 0
  %2162 = vmatpush1.bf16.msra.mxu0 0
  %2163 = vmatprep.subr.bf16.mxu0 0
  %2164 = vmatpush1.bf16.msra.mxu0 0
  %2165 = vmatprep.subr.bf16.mxu0 0
  %2166 = vmatpush1.bf16.msra.mxu0 0
  %2167 = vmatprep.subr.bf16.mxu0 0
  %2168 = vmatpush1.bf16.msra.mxu0 0
  %2169 = vmatprep.subr.bf16.mxu0 0
  %2170 = vmatpush1.bf16.msra.mxu0 0
  %2171 = vmatprep.subr.bf16.mxu0 0
  %2172 = vmatpush1.bf16.msra.mxu0 0
  %2173 = vmatprep.mubr.bf16.mxu0 0
  %2174 = vmatmul.mubr.bf16.gmra.mrb[0].mxu0 %v2139
  %v2175 = vpop.f32.mrb[0].mxu0
  %v2176 = vadd.f32 0.0, %v2175
  %v2177 = vpop.f32.mrb[0].mxu0
  %v2178 = vpop.f32.mrb[0].mxu0
  %v2179 = vadd.f32 0.0, %v2178
  %v2180 = vpop.f32.mrb[0].mxu0
  %2181 = vdwg.mxu0
  %v2182 = vpack.c.bf16 %v2129, %v2128
  %v2183 = vpack.c.bf16 %v2179, %v2176
  %v2185 = vsel %vm328, %v2182, 0
  %2187 = vmatprep.subr.bf16.mxu0 0
  %2188 = vmatpush1.bf16.msra.mxu0 %v2183
  %2189 = vmatprep.subr.bf16.mxu0 0
  %2190 = vmatpush1.bf16.msra.mxu0 0
  %2191 = vmatprep.subr.bf16.mxu0 0
  %2192 = vmatpush1.bf16.msra.mxu0 0
  %2193 = vmatprep.subr.bf16.mxu0 0
  %2194 = vmatpush1.bf16.msra.mxu0 0
  %2195 = vmatprep.subr.bf16.mxu0 0
  %2196 = vmatpush1.bf16.msra.mxu0 0
  %2197 = vmatprep.subr.bf16.mxu0 0
  %2198 = vmatpush1.bf16.msra.mxu0 0
  %2199 = vmatprep.subr.bf16.mxu0 0
  %2200 = vmatpush1.bf16.msra.mxu0 0
  %2201 = vmatprep.subr.bf16.mxu0 0
  %2202 = vmatpush1.bf16.msra.mxu0 0
  %2203 = vmatprep.subr.bf16.mxu0 0
  %2204 = vmatpush1.bf16.msra.mxu0 0
  %2205 = vmatprep.subr.bf16.mxu0 0
  %2206 = vmatpush1.bf16.msra.mxu0 0
  %2207 = vmatprep.subr.bf16.mxu0 0
  %2208 = vmatpush1.bf16.msra.mxu0 0
  %2209 = vmatprep.subr.bf16.mxu0 0
  %2210 = vmatpush1.bf16.msra.mxu0 0
  %2211 = vmatprep.subr.bf16.mxu0 0
  %2212 = vmatpush1.bf16.msra.mxu0 0
  %2213 = vmatprep.subr.bf16.mxu0 0
  %2214 = vmatpush1.bf16.msra.mxu0 0
  %2215 = vmatprep.subr.bf16.mxu0 0
  %2216 = vmatpush1.bf16.msra.mxu0 0
  %2217 = vmatprep.subr.bf16.mxu0 0
  %2218 = vmatpush1.bf16.msra.mxu0 0
  %2219 = vmatprep.mubr.bf16.mxu0 0
  %2220 = vmatmul.mubr.bf16.gmra.mrb[0].mxu0 %v2185
  %v2221 = vpop.f32.mrb[0].mxu0
  %v2222 = vadd.f32 0.0, %v2221
  %v2223 = vpop.f32.mrb[0].mxu0
  %v2224 = vpop.f32.mrb[0].mxu0
  %v2225 = vadd.f32 0.0, %v2224
  %v2226 = vpop.f32.mrb[0].mxu0
  %2227 = vdwg.mxu0
  %v2228 = vmul.f32 %v2222, %v62
  %v2229 = vmul.f32 %v2225, %v62
  %v2230 = vpack.c.bf16 %v2229, %v2228
  %v2232 = vsel %vm376, %v2230, 0
  %2234 = vmatprep.subr.bf16.mxu0 0
  %2235 = vmatpush1.bf16.msra.mxu0 %v65
  %2236 = vmatprep.subr.bf16.mxu0 0
  %2237 = vmatpush1.bf16.msra.mxu0 %v65
  %2238 = vmatprep.subr.bf16.mxu0 0
  %2239 = vmatpush1.bf16.msra.mxu0 %v65
  %2240 = vmatprep.subr.bf16.mxu0 0
  %2241 = vmatpush1.bf16.msra.mxu0 %v65
  %2242 = vmatprep.subr.bf16.mxu0 0
  %2243 = vmatpush1.bf16.msra.mxu0 0
  %2244 = vmatprep.subr.bf16.mxu0 0
  %2245 = vmatpush1.bf16.msra.mxu0 0
  %2246 = vmatprep.subr.bf16.mxu0 0
  %2247 = vmatpush1.bf16.msra.mxu0 0
  %2248 = vmatprep.subr.bf16.mxu0 0
  %2249 = vmatpush1.bf16.msra.mxu0 0
  %2250 = vmatprep.subr.bf16.mxu0 0
  %2251 = vmatpush1.bf16.msra.mxu0 0
  %2252 = vmatprep.subr.bf16.mxu0 0
  %2253 = vmatpush1.bf16.msra.mxu0 0
  %2254 = vmatprep.subr.bf16.mxu0 0
  %2255 = vmatpush1.bf16.msra.mxu0 0
  %2256 = vmatprep.subr.bf16.mxu0 0
  %2257 = vmatpush1.bf16.msra.mxu0 0
  %2258 = vmatprep.subr.bf16.mxu0 0
  %2259 = vmatpush1.bf16.msra.mxu0 0
  %2260 = vmatprep.subr.bf16.mxu0 0
  %2261 = vmatpush1.bf16.msra.mxu0 0
  %2262 = vmatprep.subr.bf16.mxu0 0
  %2263 = vmatpush1.bf16.msra.mxu0 0
  %2264 = vmatprep.subr.bf16.mxu0 0
  %2265 = vmatpush1.bf16.msra.mxu0 0
  %2266 = vmatprep.mubr.bf16.mxu0 0
  %2267 = vmatmul.mubr.bf16.gmra.mrb[0].mxu0 %v2232
  %v2268 = vpop.f32.mrb[0].mxu0
  %v2269 = vadd.f32 0.0, %v2268
  %v2270 = vpop.f32.mrb[0].mxu0
  %v2271 = vpop.f32.mrb[0].mxu0
  %v2272 = vadd.f32 0.0, %v2271
  %v2273 = vpop.f32.mrb[0].mxu0
  %2274 = vdwg.mxu0
  %v2275 = vpack.c.bf16 %v1782, %v1782
  %v2276 = vpack.c.bf16 %v1783, %v1783
  %v2277 = vpack.c.bf16 %v2119, %v2119
  %v2278 = vpack.c.bf16 %v2120, %v2120
  %v2279 = vpack.c.bf16 %v1716, %v1716
  %v2280 = vpack.c.bf16 %v1719, %v1719
  %v2281 = vpack.c.bf16 %v2053, %v2053
  %v2282 = vpack.c.bf16 %v2056, %v2056
  %v2283 = vpack.c.bf16 %v1769, %v1769
  %v2284 = vpack.c.bf16 %v1772, %v1772
  %v2285 = vpack.c.bf16 %v2106, %v2106
  %v2286 = vpack.c.bf16 %v2109, %v2109
  %v2288 = vsel %vm328, %v2275, 0
  %v2291 = vsel %vm328, %v2279, 0
  %2293 = vmatprep.subr.bf16.mxu0 0
  %2294 = vmatpush1.bf16.xpose.msra.mxu0 %v2291
  %2295 = vmatprep.subr.bf16.mxu0 0
  %2296 = vmatpush1.bf16.xpose.msra.mxu0 0
  %2297 = vmatprep.subr.bf16.mxu0 0
  %2298 = vmatpush1.bf16.xpose.msra.mxu0 0
  %2299 = vmatprep.subr.bf16.mxu0 0
  %2300 = vmatpush1.bf16.xpose.msra.mxu0 0
  %2301 = vmatprep.subr.bf16.mxu0 0
  %2302 = vmatpush1.bf16.xpose.msra.mxu0 0
  %2303 = vmatprep.subr.bf16.mxu0 0
  %2304 = vmatpush1.bf16.xpose.msra.mxu0 0
  %2305 = vmatprep.subr.bf16.mxu0 0
  %2306 = vmatpush1.bf16.xpose.msra.mxu0 0
  %2307 = vmatprep.subr.bf16.mxu0 0
  %2308 = vmatpush1.bf16.xpose.msra.mxu0 0
  %2309 = vmatprep.subr.bf16.mxu0 0
  %2310 = vmatpush1.bf16.xpose.msra.mxu0 0
  %2311 = vmatprep.subr.bf16.mxu0 0
  %2312 = vmatpush1.bf16.xpose.msra.mxu0 0
  %2313 = vmatprep.subr.bf16.mxu0 0
  %2314 = vmatpush1.bf16.xpose.msra.mxu0 0
  %2315 = vmatprep.subr.bf16.mxu0 0
  %2316 = vmatpush1.bf16.xpose.msra.mxu0 0
  %2317 = vmatprep.subr.bf16.mxu0 0
  %2318 = vmatpush1.bf16.xpose.msra.mxu0 0
  %2319 = vmatprep.subr.bf16.mxu0 0
  %2320 = vmatpush1.bf16.xpose.msra.mxu0 0
  %2321 = vmatprep.subr.bf16.mxu0 0
  %2322 = vmatpush1.bf16.xpose.msra.mxu0 0
  %2323 = vmatprep.subr.bf16.mxu0 0
  %2324 = vmatpush1.bf16.xpose.msra.mxu0 0
  %2325 = vmatprep.mubr.bf16.mxu0 0
  %2326 = vmatmul.mubr.bf16.gmra.mrb[0].mxu0 %v2288
  %v2327 = vpop.f32.mrb[0].mxu0
  %v2328 = vadd.f32 %v1932, %v2327
  %v2329 = vpop.f32.mrb[0].mxu0
  %v2330 = vpop.f32.mrb[0].mxu0
  %v2331 = vpop.f32.mrb[0].mxu0
  %2332 = vdwg.mxu0
  %v2334 = vsel %vm328, %v2276, 0
  %v2337 = vsel %vm328, %v2280, 0
  %2339 = vmatprep.subr.bf16.mxu0 0
  %2340 = vmatpush1.bf16.xpose.msra.mxu0 %v2337
  %2341 = vmatprep.subr.bf16.mxu0 0
  %2342 = vmatpush1.bf16.xpose.msra.mxu0 0
  %2343 = vmatprep.subr.bf16.mxu0 0
  %2344 = vmatpush1.bf16.xpose.msra.mxu0 0
  %2345 = vmatprep.subr.bf16.mxu0 0
  %2346 = vmatpush1.bf16.xpose.msra.mxu0 0
  %2347 = vmatprep.subr.bf16.mxu0 0
  %2348 = vmatpush1.bf16.xpose.msra.mxu0 0
  %2349 = vmatprep.subr.bf16.mxu0 0
  %2350 = vmatpush1.bf16.xpose.msra.mxu0 0
  %2351 = vmatprep.subr.bf16.mxu0 0
  %2352 = vmatpush1.bf16.xpose.msra.mxu0 0
  %2353 = vmatprep.subr.bf16.mxu0 0
  %2354 = vmatpush1.bf16.xpose.msra.mxu0 0
  %2355 = vmatprep.subr.bf16.mxu0 0
  %2356 = vmatpush1.bf16.xpose.msra.mxu0 0
  %2357 = vmatprep.subr.bf16.mxu0 0
  %2358 = vmatpush1.bf16.xpose.msra.mxu0 0
  %2359 = vmatprep.subr.bf16.mxu0 0
  %2360 = vmatpush1.bf16.xpose.msra.mxu0 0
  %2361 = vmatprep.subr.bf16.mxu0 0
  %2362 = vmatpush1.bf16.xpose.msra.mxu0 0
  %2363 = vmatprep.subr.bf16.mxu0 0
  %2364 = vmatpush1.bf16.xpose.msra.mxu0 0
  %2365 = vmatprep.subr.bf16.mxu0 0
  %2366 = vmatpush1.bf16.xpose.msra.mxu0 0
  %2367 = vmatprep.subr.bf16.mxu0 0
  %2368 = vmatpush1.bf16.xpose.msra.mxu0 0
  %2369 = vmatprep.subr.bf16.mxu0 0
  %2370 = vmatpush1.bf16.xpose.msra.mxu0 0
  %2371 = vmatprep.mubr.bf16.mxu0 0
  %2372 = vmatmul.mubr.bf16.gmra.mrb[0].mxu0 %v2334
  %v2373 = vpop.f32.mrb[0].mxu0
  %v2374 = vadd.f32 %v1935, %v2373
  %v2375 = vpop.f32.mrb[0].mxu0
  %v2376 = vpop.f32.mrb[0].mxu0
  %v2377 = vpop.f32.mrb[0].mxu0
  %2378 = vdwg.mxu0
  %v2380 = vsel %vm328, %v2277, 0
  %v2383 = vsel %vm328, %v2281, 0
  %2385 = vmatprep.subr.bf16.mxu0 0
  %2386 = vmatpush1.bf16.xpose.msra.mxu0 %v2383
  %2387 = vmatprep.subr.bf16.mxu0 0
  %2388 = vmatpush1.bf16.xpose.msra.mxu0 0
  %2389 = vmatprep.subr.bf16.mxu0 0
  %2390 = vmatpush1.bf16.xpose.msra.mxu0 0
  %2391 = vmatprep.subr.bf16.mxu0 0
  %2392 = vmatpush1.bf16.xpose.msra.mxu0 0
  %2393 = vmatprep.subr.bf16.mxu0 0
  %2394 = vmatpush1.bf16.xpose.msra.mxu0 0
  %2395 = vmatprep.subr.bf16.mxu0 0
  %2396 = vmatpush1.bf16.xpose.msra.mxu0 0
  %2397 = vmatprep.subr.bf16.mxu0 0
  %2398 = vmatpush1.bf16.xpose.msra.mxu0 0
  %2399 = vmatprep.subr.bf16.mxu0 0
  %2400 = vmatpush1.bf16.xpose.msra.mxu0 0
  %2401 = vmatprep.subr.bf16.mxu0 0
  %2402 = vmatpush1.bf16.xpose.msra.mxu0 0
  %2403 = vmatprep.subr.bf16.mxu0 0
  %2404 = vmatpush1.bf16.xpose.msra.mxu0 0
  %2405 = vmatprep.subr.bf16.mxu0 0
  %2406 = vmatpush1.bf16.xpose.msra.mxu0 0
  %2407 = vmatprep.subr.bf16.mxu0 0
  %2408 = vmatpush1.bf16.xpose.msra.mxu0 0
  %2409 = vmatprep.subr.bf16.mxu0 0
  %2410 = vmatpush1.bf16.xpose.msra.mxu0 0
  %2411 = vmatprep.subr.bf16.mxu0 0
  %2412 = vmatpush1.bf16.xpose.msra.mxu0 0
  %2413 = vmatprep.subr.bf16.mxu0 0
  %2414 = vmatpush1.bf16.xpose.msra.mxu0 0
  %2415 = vmatprep.subr.bf16.mxu0 0
  %2416 = vmatpush1.bf16.xpose.msra.mxu0 0
  %2417 = vmatprep.mubr.bf16.mxu0 0
  %2418 = vmatmul.mubr.bf16.gmra.mrb[0].mxu0 %v2380
  %v2419 = vpop.f32.mrb[0].mxu0
  %v2420 = vadd.f32 %v2269, %v2419
  %v2421 = vpop.f32.mrb[0].mxu0
  %v2422 = vpop.f32.mrb[0].mxu0
  %v2423 = vpop.f32.mrb[0].mxu0
  %2424 = vdwg.mxu0
  %v2426 = vsel %vm328, %v2278, 0
  %v2429 = vsel %vm328, %v2282, 0
  %2431 = vmatprep.subr.bf16.mxu0 0
  %2432 = vmatpush1.bf16.xpose.msra.mxu0 %v2429
  %2433 = vmatprep.subr.bf16.mxu0 0
  %2434 = vmatpush1.bf16.xpose.msra.mxu0 0
  %2435 = vmatprep.subr.bf16.mxu0 0
  %2436 = vmatpush1.bf16.xpose.msra.mxu0 0
  %2437 = vmatprep.subr.bf16.mxu0 0
  %2438 = vmatpush1.bf16.xpose.msra.mxu0 0
  %2439 = vmatprep.subr.bf16.mxu0 0
  %2440 = vmatpush1.bf16.xpose.msra.mxu0 0
  %2441 = vmatprep.subr.bf16.mxu0 0
  %2442 = vmatpush1.bf16.xpose.msra.mxu0 0
  %2443 = vmatprep.subr.bf16.mxu0 0
  %2444 = vmatpush1.bf16.xpose.msra.mxu0 0
  %2445 = vmatprep.subr.bf16.mxu0 0
  %2446 = vmatpush1.bf16.xpose.msra.mxu0 0
  %2447 = vmatprep.subr.bf16.mxu0 0
  %2448 = vmatpush1.bf16.xpose.msra.mxu0 0
  %2449 = vmatprep.subr.bf16.mxu0 0
  %2450 = vmatpush1.bf16.xpose.msra.mxu0 0
  %2451 = vmatprep.subr.bf16.mxu0 0
  %2452 = vmatpush1.bf16.xpose.msra.mxu0 0
  %2453 = vmatprep.subr.bf16.mxu0 0
  %2454 = vmatpush1.bf16.xpose.msra.mxu0 0
  %2455 = vmatprep.subr.bf16.mxu0 0
  %2456 = vmatpush1.bf16.xpose.msra.mxu0 0
  %2457 = vmatprep.subr.bf16.mxu0 0
  %2458 = vmatpush1.bf16.xpose.msra.mxu0 0
  %2459 = vmatprep.subr.bf16.mxu0 0
  %2460 = vmatpush1.bf16.xpose.msra.mxu0 0
  %2461 = vmatprep.subr.bf16.mxu0 0
  %2462 = vmatpush1.bf16.xpose.msra.mxu0 0
  %2463 = vmatprep.mubr.bf16.mxu0 0
  %2464 = vmatmul.mubr.bf16.gmra.mrb[0].mxu0 %v2426
  %v2465 = vpop.f32.mrb[0].mxu0
  %v2466 = vadd.f32 %v2272, %v2465
  %v2467 = vpop.f32.mrb[0].mxu0
  %v2468 = vpop.f32.mrb[0].mxu0
  %v2469 = vpop.f32.mrb[0].mxu0
  %2470 = vdwg.mxu0
  %v2471 = vmul.f32 %v2328, 0.25
  %v2472 = vmul.f32 %v2374, 0.25
  %v2473 = vmul.f32 %v2420, 0.25
  %v2474 = vmul.f32 %v2466, 0.25
  %v2475 = vadd.f32 %v2471, %v56
  %v2476 = vadd.f32 %v2472, %v56
  %v2477 = vadd.f32 %v2473, %v56
  %v2478 = vadd.f32 %v2474, %v56
  %v2479 = vsel %vm964, %v2475, -inf
  %2480 = vmax.xlane.f32.xlu0 %v2479
  %v2481 = vpop.xlane.xlu0 %2480
  %v2482 = vsel %vm964, %v2476, -inf
  %2483 = vmax.xlane.f32.xlu0 %v2482
  %v2484 = vpop.xlane.xlu0 %2483
  %v2485 = vsel %vm964, %v2477, -inf
  %2486 = vmax.xlane.f32.xlu0 %v2485
  %v2487 = vpop.xlane.xlu0 %2486
  %v2488 = vsel %vm964, %v2478, -inf
  %2489 = vmax.xlane.f32.xlu0 %v2488
  %v2490 = vpop.xlane.xlu0 %2489
  %v2491 = vsub.f32 %v2475, %v2481
  %v2492 = vsub.f32 %v2476, %v2484
  %v2493 = vsub.f32 %v2477, %v2487
  %v2494 = vsub.f32 %v2478, %v2490
  %v2495 = vmul.f32 %v2491, 1.442695
  %v2496 = vpow.pop %v2495
  %v2497 = vmul.f32 %v2492, 1.442695
  %v2498 = vpow.pop %v2497
  %v2499 = vmul.f32 %v2493, 1.442695
  %v2500 = vpow.pop %v2499
  %v2501 = vmul.f32 %v2494, 1.442695
  %v2502 = vpow.pop %v2501
  %v2503 = vsel %vm964, %v2496, 0.0
  %2504 = vadd.xlane.f32.xlu0 %v2503
  %v2505 = vpop.xlane.xlu0 %2504
  %v2506 = vsel %vm964, %v2498, 0.0
  %2507 = vadd.xlane.f32.xlu0 %v2506
  %v2508 = vpop.xlane.xlu0 %2507
  %v2509 = vsel %vm964, %v2500, 0.0
  %2510 = vadd.xlane.f32.xlu0 %v2509
  %v2511 = vpop.xlane.xlu0 %2510
  %v2512 = vsel %vm964, %v2502, 0.0
  %2513 = vadd.xlane.f32.xlu0 %v2512
  %v2514 = vpop.xlane.xlu0 %2513
  %v2515 = vrcp.pop %v2505
  %v2516 = vrcp.pop %v2508
  %v2517 = vrcp.pop %v2511
  %v2518 = vrcp.pop %v2514
  %v2519 = vmul.f32 %v2496, %v2515
  %v2520 = vmul.f32 %v2498, %v2516
  %v2521 = vmul.f32 %v2500, %v2517
  %v2522 = vmul.f32 %v2502, %v2518
  %v2523 = vpack.c.bf16 %v2519, %v2519
  %v2524 = vpack.c.bf16 %v2520, %v2520
  %v2525 = vpack.c.bf16 %v2521, %v2521
  %v2526 = vpack.c.bf16 %v2522, %v2522
  %v2528 = vsel %vm964, %v2523, 0
  %v2531 = vsel %vm1016, %v2283, 0
  %2533 = vmatprep.subr.bf16.mxu0 0
  %2534 = vmatpush1.bf16.msra.mxu0 %v2531
  %2535 = vmatprep.subr.bf16.mxu0 0
  %2536 = vmatpush1.bf16.msra.mxu0 0
  %2537 = vmatprep.subr.bf16.mxu0 0
  %2538 = vmatpush1.bf16.msra.mxu0 0
  %2539 = vmatprep.subr.bf16.mxu0 0
  %2540 = vmatpush1.bf16.msra.mxu0 0
  %2541 = vmatprep.subr.bf16.mxu0 0
  %2542 = vmatpush1.bf16.msra.mxu0 0
  %2543 = vmatprep.subr.bf16.mxu0 0
  %2544 = vmatpush1.bf16.msra.mxu0 0
  %2545 = vmatprep.subr.bf16.mxu0 0
  %2546 = vmatpush1.bf16.msra.mxu0 0
  %2547 = vmatprep.subr.bf16.mxu0 0
  %2548 = vmatpush1.bf16.msra.mxu0 0
  %2549 = vmatprep.subr.bf16.mxu0 0
  %2550 = vmatpush1.bf16.msra.mxu0 0
  %2551 = vmatprep.subr.bf16.mxu0 0
  %2552 = vmatpush1.bf16.msra.mxu0 0
  %2553 = vmatprep.subr.bf16.mxu0 0
  %2554 = vmatpush1.bf16.msra.mxu0 0
  %2555 = vmatprep.subr.bf16.mxu0 0
  %2556 = vmatpush1.bf16.msra.mxu0 0
  %2557 = vmatprep.subr.bf16.mxu0 0
  %2558 = vmatpush1.bf16.msra.mxu0 0
  %2559 = vmatprep.subr.bf16.mxu0 0
  %2560 = vmatpush1.bf16.msra.mxu0 0
  %2561 = vmatprep.subr.bf16.mxu0 0
  %2562 = vmatpush1.bf16.msra.mxu0 0
  %2563 = vmatprep.subr.bf16.mxu0 0
  %2564 = vmatpush1.bf16.msra.mxu0 0
  %2565 = vmatprep.mubr.bf16.mxu0 0
  %2566 = vmatmul.mubr.bf16.gmra.mrb[0].mxu0 %v2528
  %v2567 = vpop.f32.mrb[0].mxu0
  %v2568 = vadd.f32 0.0, %v2567
  %v2569 = vpop.f32.mrb[0].mxu0
  %v2570 = vpop.f32.mrb[0].mxu0
  %v2571 = vpop.f32.mrb[0].mxu0
  %2572 = vdwg.mxu0
  %v2574 = vsel %vm964, %v2524, 0
  %v2577 = vsel %vm1016, %v2284, 0
  %2579 = vmatprep.subr.bf16.mxu0 0
  %2580 = vmatpush1.bf16.msra.mxu0 %v2577
  %2581 = vmatprep.subr.bf16.mxu0 0
  %2582 = vmatpush1.bf16.msra.mxu0 0
  %2583 = vmatprep.subr.bf16.mxu0 0
  %2584 = vmatpush1.bf16.msra.mxu0 0
  %2585 = vmatprep.subr.bf16.mxu0 0
  %2586 = vmatpush1.bf16.msra.mxu0 0
  %2587 = vmatprep.subr.bf16.mxu0 0
  %2588 = vmatpush1.bf16.msra.mxu0 0
  %2589 = vmatprep.subr.bf16.mxu0 0
  %2590 = vmatpush1.bf16.msra.mxu0 0
  %2591 = vmatprep.subr.bf16.mxu0 0
  %2592 = vmatpush1.bf16.msra.mxu0 0
  %2593 = vmatprep.subr.bf16.mxu0 0
  %2594 = vmatpush1.bf16.msra.mxu0 0
  %2595 = vmatprep.subr.bf16.mxu0 0
  %2596 = vmatpush1.bf16.msra.mxu0 0
  %2597 = vmatprep.subr.bf16.mxu0 0
  %2598 = vmatpush1.bf16.msra.mxu0 0
  %2599 = vmatprep.subr.bf16.mxu0 0
  %2600 = vmatpush1.bf16.msra.mxu0 0
  %2601 = vmatprep.subr.bf16.mxu0 0
  %2602 = vmatpush1.bf16.msra.mxu0 0
  %2603 = vmatprep.subr.bf16.mxu0 0
  %2604 = vmatpush1.bf16.msra.mxu0 0
  %2605 = vmatprep.subr.bf16.mxu0 0
  %2606 = vmatpush1.bf16.msra.mxu0 0
  %2607 = vmatprep.subr.bf16.mxu0 0
  %2608 = vmatpush1.bf16.msra.mxu0 0
  %2609 = vmatprep.subr.bf16.mxu0 0
  %2610 = vmatpush1.bf16.msra.mxu0 0
  %2611 = vmatprep.mubr.bf16.mxu0 0
  %2612 = vmatmul.mubr.bf16.gmra.mrb[0].mxu0 %v2574
  %v2613 = vpop.f32.mrb[0].mxu0
  %v2614 = vadd.f32 0.0, %v2613
  %v2615 = vpop.f32.mrb[0].mxu0
  %v2616 = vpop.f32.mrb[0].mxu0
  %v2617 = vpop.f32.mrb[0].mxu0
  %2618 = vdwg.mxu0
  %v2620 = vsel %vm964, %v2525, 0
  %v2623 = vsel %vm1016, %v2285, 0
  %2625 = vmatprep.subr.bf16.mxu0 0
  %2626 = vmatpush1.bf16.msra.mxu0 %v2623
  %2627 = vmatprep.subr.bf16.mxu0 0
  %2628 = vmatpush1.bf16.msra.mxu0 0
  %2629 = vmatprep.subr.bf16.mxu0 0
  %2630 = vmatpush1.bf16.msra.mxu0 0
  %2631 = vmatprep.subr.bf16.mxu0 0
  %2632 = vmatpush1.bf16.msra.mxu0 0
  %2633 = vmatprep.subr.bf16.mxu0 0
  %2634 = vmatpush1.bf16.msra.mxu0 0
  %2635 = vmatprep.subr.bf16.mxu0 0
  %2636 = vmatpush1.bf16.msra.mxu0 0
  %2637 = vmatprep.subr.bf16.mxu0 0
  %2638 = vmatpush1.bf16.msra.mxu0 0
  %2639 = vmatprep.subr.bf16.mxu0 0
  %2640 = vmatpush1.bf16.msra.mxu0 0
  %2641 = vmatprep.subr.bf16.mxu0 0
  %2642 = vmatpush1.bf16.msra.mxu0 0
  %2643 = vmatprep.subr.bf16.mxu0 0
  %2644 = vmatpush1.bf16.msra.mxu0 0
  %2645 = vmatprep.subr.bf16.mxu0 0
  %2646 = vmatpush1.bf16.msra.mxu0 0
  %2647 = vmatprep.subr.bf16.mxu0 0
  %2648 = vmatpush1.bf16.msra.mxu0 0
  %2649 = vmatprep.subr.bf16.mxu0 0
  %2650 = vmatpush1.bf16.msra.mxu0 0
  %2651 = vmatprep.subr.bf16.mxu0 0
  %2652 = vmatpush1.bf16.msra.mxu0 0
  %2653 = vmatprep.subr.bf16.mxu0 0
  %2654 = vmatpush1.bf16.msra.mxu0 0
  %2655 = vmatprep.subr.bf16.mxu0 0
  %2656 = vmatpush1.bf16.msra.mxu0 0
  %2657 = vmatprep.mubr.bf16.mxu0 0
  %2658 = vmatmul.mubr.bf16.gmra.mrb[0].mxu0 %v2620
  %v2659 = vpop.f32.mrb[0].mxu0
  %v2660 = vadd.f32 0.0, %v2659
  %v2661 = vpop.f32.mrb[0].mxu0
  %v2662 = vpop.f32.mrb[0].mxu0
  %v2663 = vpop.f32.mrb[0].mxu0
  %2664 = vdwg.mxu0
  %v2666 = vsel %vm964, %v2526, 0
  %v2669 = vsel %vm1016, %v2286, 0
  %2671 = vmatprep.subr.bf16.mxu0 0
  %2672 = vmatpush1.bf16.msra.mxu0 %v2669
  %2673 = vmatprep.subr.bf16.mxu0 0
  %2674 = vmatpush1.bf16.msra.mxu0 0
  %2675 = vmatprep.subr.bf16.mxu0 0
  %2676 = vmatpush1.bf16.msra.mxu0 0
  %2677 = vmatprep.subr.bf16.mxu0 0
  %2678 = vmatpush1.bf16.msra.mxu0 0
  %2679 = vmatprep.subr.bf16.mxu0 0
  %2680 = vmatpush1.bf16.msra.mxu0 0
  %2681 = vmatprep.subr.bf16.mxu0 0
  %2682 = vmatpush1.bf16.msra.mxu0 0
  %2683 = vmatprep.subr.bf16.mxu0 0
  %2684 = vmatpush1.bf16.msra.mxu0 0
  %2685 = vmatprep.subr.bf16.mxu0 0
  %2686 = vmatpush1.bf16.msra.mxu0 0
  %2687 = vmatprep.subr.bf16.mxu0 0
  %2688 = vmatpush1.bf16.msra.mxu0 0
  %2689 = vmatprep.subr.bf16.mxu0 0
  %2690 = vmatpush1.bf16.msra.mxu0 0
  %2691 = vmatprep.subr.bf16.mxu0 0
  %2692 = vmatpush1.bf16.msra.mxu0 0
  %2693 = vmatprep.subr.bf16.mxu0 0
  %2694 = vmatpush1.bf16.msra.mxu0 0
  %2695 = vmatprep.subr.bf16.mxu0 0
  %2696 = vmatpush1.bf16.msra.mxu0 0
  %2697 = vmatprep.subr.bf16.mxu0 0
  %2698 = vmatpush1.bf16.msra.mxu0 0
  %2699 = vmatprep.subr.bf16.mxu0 0
  %2700 = vmatpush1.bf16.msra.mxu0 0
  %2701 = vmatprep.subr.bf16.mxu0 0
  %2702 = vmatpush1.bf16.msra.mxu0 0
  %2703 = vmatprep.mubr.bf16.mxu0 0
  %2704 = vmatmul.mubr.bf16.gmra.mrb[0].mxu0 %v2666
  %v2705 = vpop.f32.mrb[0].mxu0
  %v2706 = vadd.f32 0.0, %v2705
  %v2707 = vpop.f32.mrb[0].mxu0
  %v2708 = vpop.f32.mrb[0].mxu0
  %v2709 = vpop.f32.mrb[0].mxu0
  %2710 = vdwg.mxu0
  %v2711 = vpack.c.bf16 %v2614, %v2568
  %s2712 = scalar_lea.vmem %s5, 16
  %v2713 = vld [vmem:[%s2712] sm:$0xf]
  %v2714 = vld [vmem:[%s2712 + $0x4] sm:$0xf]
  %v2715 = vpack.c.bf16 %v2706, %v2660
  %s2716 = scalar_lea.vmem %s5, 24
  %v2717 = vld [vmem:[%s2716] sm:$0xf]
  %v2718 = vld [vmem:[%s2716 + $0x4] sm:$0xf]
  %v2721 = vunpack.c.l.b16 %v2717
  %v2722 = vunpack.c.l.b16 %v2718
  %v2723 = vpack.c.b16 %v2722, %v2721
  %v2726 = vsel %vm328, %v2715, 0
  %2728 = vmatprep.subr.bf16.mxu0 0
  %2729 = vmatpush1.bf16.msra.mxu0 %v2723
  %2730 = vmatprep.subr.bf16.mxu0 0
  %2731 = vmatpush1.bf16.msra.mxu0 0
  %2732 = vmatprep.subr.bf16.mxu0 0
  %2733 = vmatpush1.bf16.msra.mxu0 0
  %2734 = vmatprep.subr.bf16.mxu0 0
  %2735 = vmatpush1.bf16.msra.mxu0 0
  %2736 = vmatprep.subr.bf16.mxu0 0
  %2737 = vmatpush1.bf16.msra.mxu0 0
  %2738 = vmatprep.subr.bf16.mxu0 0
  %2739 = vmatpush1.bf16.msra.mxu0 0
  %2740 = vmatprep.subr.bf16.mxu0 0
  %2741 = vmatpush1.bf16.msra.mxu0 0
  %2742 = vmatprep.subr.bf16.mxu0 0
  %2743 = vmatpush1.bf16.msra.mxu0 0
  %2744 = vmatprep.subr.bf16.mxu0 0
  %2745 = vmatpush1.bf16.msra.mxu0 0
  %2746 = vmatprep.subr.bf16.mxu0 0
  %2747 = vmatpush1.bf16.msra.mxu0 0
  %2748 = vmatprep.subr.bf16.mxu0 0
  %2749 = vmatpush1.bf16.msra.mxu0 0
  %2750 = vmatprep.subr.bf16.mxu0 0
  %2751 = vmatpush1.bf16.msra.mxu0 0
  %2752 = vmatprep.subr.bf16.mxu0 0
  %2753 = vmatpush1.bf16.msra.mxu0 0
  %2754 = vmatprep.subr.bf16.mxu0 0
  %2755 = vmatpush1.bf16.msra.mxu0 0
  %2756 = vmatprep.subr.bf16.mxu0 0
  %2757 = vmatpush1.bf16.msra.mxu0 0
  %2758 = vmatprep.subr.bf16.mxu0 0
  %2759 = vmatpush1.bf16.msra.mxu0 0
  %2760 = vmatprep.mubr.bf16.mxu0 0
  %2761 = vmatmul.mubr.bf16.gmra.mrb[0].mxu0 %v2726
  %v2762 = vpop.f32.mrb[0].mxu0
  %v2763 = vadd.f32 0.0, %v2762
  %v2764 = vpop.f32.mrb[0].mxu0
  %v2765 = vpop.f32.mrb[0].mxu0
  %v2766 = vadd.f32 0.0, %v2765
  %v2767 = vpop.f32.mrb[0].mxu0
  %2768 = vdwg.mxu0
  %v2771 = vunpack.c.l.b16 %v2713
  %v2772 = vunpack.c.l.b16 %v2714
  %v2773 = vpack.c.b16 %v2772, %v2771
  %v2776 = vsel %vm328, %v2711, 0
  %2778 = vmatprep.subr.bf16.mxu0 0
  %2779 = vmatpush1.bf16.msra.mxu0 %v2773
  %2780 = vmatprep.subr.bf16.mxu0 0
  %2781 = vmatpush1.bf16.msra.mxu0 0
  %2782 = vmatprep.subr.bf16.mxu0 0
  %2783 = vmatpush1.bf16.msra.mxu0 0
  %2784 = vmatprep.subr.bf16.mxu0 0
  %2785 = vmatpush1.bf16.msra.mxu0 0
  %2786 = vmatprep.subr.bf16.mxu0 0
  %2787 = vmatpush1.bf16.msra.mxu0 0
  %2788 = vmatprep.subr.bf16.mxu0 0
  %2789 = vmatpush1.bf16.msra.mxu0 0
  %2790 = vmatprep.subr.bf16.mxu0 0
  %2791 = vmatpush1.bf16.msra.mxu0 0
  %2792 = vmatprep.subr.bf16.mxu0 0
  %2793 = vmatpush1.bf16.msra.mxu0 0
  %2794 = vmatprep.subr.bf16.mxu0 0
  %2795 = vmatpush1.bf16.msra.mxu0 0
  %2796 = vmatprep.subr.bf16.mxu0 0
  %2797 = vmatpush1.bf16.msra.mxu0 0
  %2798 = vmatprep.subr.bf16.mxu0 0
  %2799 = vmatpush1.bf16.msra.mxu0 0
  %2800 = vmatprep.subr.bf16.mxu0 0
  %2801 = vmatpush1.bf16.msra.mxu0 0
  %2802 = vmatprep.subr.bf16.mxu0 0
  %2803 = vmatpush1.bf16.msra.mxu0 0
  %2804 = vmatprep.subr.bf16.mxu0 0
  %2805 = vmatpush1.bf16.msra.mxu0 0
  %2806 = vmatprep.subr.bf16.mxu0 0
  %2807 = vmatpush1.bf16.msra.mxu0 0
  %2808 = vmatprep.subr.bf16.mxu0 0
  %2809 = vmatpush1.bf16.msra.mxu0 0
  %2810 = vmatprep.mubr.bf16.mxu0 0
  %2811 = vmatmul.mubr.bf16.gmra.mrb[0].mxu0 %v2776
  %v2812 = vpop.f32.mrb[0].mxu0
  %v2813 = vadd.f32 %v2763, %v2812
  %v2814 = vpop.f32.mrb[0].mxu0
  %v2815 = vpop.f32.mrb[0].mxu0
  %v2816 = vadd.f32 %v2766, %v2815
  %v2817 = vpop.f32.mrb[0].mxu0
  %2818 = vdwg.mxu0
  %v2819 = vadd.f32 %v1595, %v2813
  %v2820 = vadd.f32 %v1596, %v2816
  %s2821 = scalar_lea.vmem %s6, 5
  %v2822 = vld [vmem:[%s2821] sm:$0x1]
  %s2823 = scalar_lea.vmem %s6, 6
  %v2824 = vld [vmem:[%s2823] sm:$0x1]
  %v2825 = vsel %vm93, %v2819, 0.0
  %2826 = vadd.xlane.f32.xlu0 %v2825
  %v2827 = vpop.xlane.xlu0 %2826
  %v2828 = vsel %vm93, %v2820, 0.0
  %2829 = vadd.xlane.f32.xlu0 %v2828
  %v2830 = vpop.xlane.xlu0 %2829
  %v2831 = vmul.f32 %v2827, %v1316
  %v2832 = vmul.f32 %v2830, %v1316
  %v2833 = vmul.f32 %v2819, %v2819
  %v2834 = vmul.f32 %v2820, %v2820
  %v2835 = vsel %vm93, %v2833, 0.0
  %2836 = vadd.xlane.f32.xlu0 %v2835
  %v2837 = vpop.xlane.xlu0 %2836
  %v2838 = vsel %vm93, %v2834, 0.0
  %2839 = vadd.xlane.f32.xlu0 %v2838
  %v2840 = vpop.xlane.xlu0 %2839
  %v2841 = vmul.f32 %v2837, %v1316
  %v2842 = vmul.f32 %v2840, %v1316
  %v2843 = vmul.f32 %v2831, %v2831
  %v2844 = vmul.f32 %v2832, %v2832
  %v2845 = vsub.f32 %v2841, %v2843
  %v2846 = vsub.f32 %v2842, %v2844
  %v2847 = vmax.f32 %v2845, 0.0
  %v2848 = vmax.f32 %v2846, 0.0
  %v2849 = vsub.f32 %v2819, %v2831
  %v2850 = vsub.f32 %v2820, %v2832
  %v2851 = vadd.f32 %v2847, 1e-05
  %v2852 = vadd.f32 %v2848, 1e-05
  %v2853 = vrsqrt.pop %v2851
  %v2854 = vrsqrt.pop %v2852
  %v2855 = vmul.f32 %v2849, %v2853
  %v2856 = vmul.f32 %v2850, %v2854
  %v2858 = vlaneseq
  %v2859 = vshrl.u32 %v2858, 7
  %v2860 = vsub.s32 0, %v2859
  %v2861 = vrot.slane %v2822, %v2860
  %v2863 = vmul.f32 %v2855, %v2861
  %v2864 = vmul.f32 %v2856, %v2861
  %v2866 = vlaneseq
  %v2867 = vshrl.u32 %v2866, 7
  %v2868 = vsub.s32 0, %v2867
  %v2869 = vrot.slane %v2824, %v2868
  %v2871 = vadd.f32 %v2863, %v2869
  %v2872 = vadd.f32 %v2864, %v2869
  %v2873 = vpack.c.bf16 %v2872, %v2871
  %s2874 = scalar_lea.vmem %s8, 16
  %v2875 = vld [vmem:[%s2874] sm:$0xf]
  %v2876 = vld [vmem:[%s2874 + $0x4] sm:$0xf]
  %v2877 = vld [vmem:[%s2874 + $0x8] sm:$0xf]
  %v2878 = vld [vmem:[%s2874 + $0xc] sm:$0xf]
  %s2879 = scalar_lea.vmem %s7, 1
  %v2880 = vld [vmem:[%s2879] sm:$0x1]
  %v2882 = vlaneseq
  %v2883 = vshrl.u32 %v2882, 7
  %v2884 = vsub.s32 0, %v2883
  %v2885 = vrot.slane %v2880, %v2884
  %v2891 = vunpack.c.l.b16 %v2875
  %v2892 = vunpack.c.l.b16 %v2876
  %v2893 = vunpack.c.l.b16 %v2877
  %v2894 = vunpack.c.l.b16 %v2878
  %v2895 = vpack.c.b16 %v2892, %v2891
  %v2896 = vpack.c.b16 %v2894, %v2893
  %v2900 = vsel %vm93, %v2873, 0
  %2902 = vmatprep.subr.bf16.mxu0 0
  %2903 = vmatpush1.bf16.msra.mxu0 %v2895
  %2904 = vmatprep.subr.bf16.mxu0 0
  %2905 = vmatpush1.bf16.msra.mxu0 %v2896
  %2906 = vmatprep.subr.bf16.mxu0 0
  %2907 = vmatpush1.bf16.msra.mxu0 0
  %2908 = vmatprep.subr.bf16.mxu0 0
  %2909 = vmatpush1.bf16.msra.mxu0 0
  %2910 = vmatprep.subr.bf16.mxu0 0
  %2911 = vmatpush1.bf16.msra.mxu0 0
  %2912 = vmatprep.subr.bf16.mxu0 0
  %2913 = vmatpush1.bf16.msra.mxu0 0
  %2914 = vmatprep.subr.bf16.mxu0 0
  %2915 = vmatpush1.bf16.msra.mxu0 0
  %2916 = vmatprep.subr.bf16.mxu0 0
  %2917 = vmatpush1.bf16.msra.mxu0 0
  %2918 = vmatprep.subr.bf16.mxu0 0
  %2919 = vmatpush1.bf16.msra.mxu0 0
  %2920 = vmatprep.subr.bf16.mxu0 0
  %2921 = vmatpush1.bf16.msra.mxu0 0
  %2922 = vmatprep.subr.bf16.mxu0 0
  %2923 = vmatpush1.bf16.msra.mxu0 0
  %2924 = vmatprep.subr.bf16.mxu0 0
  %2925 = vmatpush1.bf16.msra.mxu0 0
  %2926 = vmatprep.subr.bf16.mxu0 0
  %2927 = vmatpush1.bf16.msra.mxu0 0
  %2928 = vmatprep.subr.bf16.mxu0 0
  %2929 = vmatpush1.bf16.msra.mxu0 0
  %2930 = vmatprep.subr.bf16.mxu0 0
  %2931 = vmatpush1.bf16.msra.mxu0 0
  %2932 = vmatprep.subr.bf16.mxu0 0
  %2933 = vmatpush1.bf16.msra.mxu0 0
  %2934 = vmatprep.mubr.bf16.mxu0 0
  %2935 = vmatmul.mubr.bf16.gmra.mrb[0].mxu0 %v2900
  %v2936 = vpop.f32.mrb[0].mxu0
  %v2937 = vadd.f32 %v2885, %v2936
  %v2938 = vpop.f32.mrb[0].mxu0
  %v2939 = vpop.f32.mrb[0].mxu0
  %v2940 = vadd.f32 %v2885, %v2939
  %v2941 = vpop.f32.mrb[0].mxu0
  %2942 = vdwg.mxu0
  %v2943 = vmax.f32 %v2937, 0.0
  %v2944 = vmax.f32 %v2940, 0.0
  %v2945 = vpack.c.bf16 %v2944, %v2943
  %s2946 = scalar_lea.vmem %s9, 64
  %v2947 = vld [vmem:[%s2946] sm:$0xf]
  %v2948 = vld [vmem:[%s2946 + $0x4] sm:$0xf]
  %v2949 = vld [vmem:[%s2946 + $0x8] sm:$0xf]
  %v2950 = vld [vmem:[%s2946 + $0xc] sm:$0xf]
  %v2951 = vld [vmem:[%s2946 + $0x10] sm:$0xf]
  %v2952 = vld [vmem:[%s2946 + $0x14] sm:$0xf]
  %v2953 = vld [vmem:[%s2946 + $0x18] sm:$0xf]
  %v2954 = vld [vmem:[%s2946 + $0x1c] sm:$0xf]
  %v2955 = vld [vmem:[%s2946 + $0x20] sm:$0xf]
  %v2956 = vld [vmem:[%s2946 + $0x24] sm:$0xf]
  %v2957 = vld [vmem:[%s2946 + $0x28] sm:$0xf]
  %v2958 = vld [vmem:[%s2946 + $0x2c] sm:$0xf]
  %v2959 = vld [vmem:[%s2946 + $0x30] sm:$0xf]
  %v2960 = vld [vmem:[%s2946 + $0x34] sm:$0xf]
  %v2961 = vld [vmem:[%s2946 + $0x38] sm:$0xf]
  %v2962 = vld [vmem:[%s2946 + $0x3c] sm:$0xf]
  %s2963 = scalar_lea.vmem %s6, 9
  %v2964 = vld [vmem:[%s2963] sm:$0x1]
  %v2966 = vlaneseq
  %v2967 = vshrl.u32 %v2966, 7
  %v2968 = vsub.s32 0, %v2967
  %v2969 = vrot.slane %v2964, %v2968
  %v2987 = vunpack.c.l.b16 %v2947
  %v2988 = vunpack.c.l.b16 %v2948
  %v2989 = vunpack.c.l.b16 %v2949
  %v2990 = vunpack.c.l.b16 %v2950
  %v2991 = vunpack.c.l.b16 %v2951
  %v2992 = vunpack.c.l.b16 %v2952
  %v2993 = vunpack.c.l.b16 %v2953
  %v2994 = vunpack.c.l.b16 %v2954
  %v2995 = vunpack.c.l.b16 %v2955
  %v2996 = vunpack.c.l.b16 %v2956
  %v2997 = vunpack.c.l.b16 %v2957
  %v2998 = vunpack.c.l.b16 %v2958
  %v2999 = vunpack.c.l.b16 %v2959
  %v3000 = vunpack.c.l.b16 %v2960
  %v3001 = vunpack.c.l.b16 %v2961
  %v3002 = vunpack.c.l.b16 %v2962
  %v3003 = vpack.c.b16 %v2988, %v2987
  %v3004 = vpack.c.b16 %v2990, %v2989
  %v3005 = vpack.c.b16 %v2992, %v2991
  %v3006 = vpack.c.b16 %v2994, %v2993
  %v3007 = vpack.c.b16 %v2996, %v2995
  %v3008 = vpack.c.b16 %v2998, %v2997
  %v3009 = vpack.c.b16 %v3000, %v2999
  %v3010 = vpack.c.b16 %v3002, %v3001
  %3019 = vmatprep.subr.bf16.mxu0 0
  %3020 = vmatpush1.bf16.msra.mxu0 %v3003
  %3021 = vmatprep.subr.bf16.mxu0 0
  %3022 = vmatpush1.bf16.msra.mxu0 %v3004
  %3023 = vmatprep.subr.bf16.mxu0 0
  %3024 = vmatpush1.bf16.msra.mxu0 %v3005
  %3025 = vmatprep.subr.bf16.mxu0 0
  %3026 = vmatpush1.bf16.msra.mxu0 %v3006
  %3027 = vmatprep.subr.bf16.mxu0 0
  %3028 = vmatpush1.bf16.msra.mxu0 %v3007
  %3029 = vmatprep.subr.bf16.mxu0 0
  %3030 = vmatpush1.bf16.msra.mxu0 %v3008
  %3031 = vmatprep.subr.bf16.mxu0 0
  %3032 = vmatpush1.bf16.msra.mxu0 %v3009
  %3033 = vmatprep.subr.bf16.mxu0 0
  %3034 = vmatpush1.bf16.msra.mxu0 %v3010
  %3035 = vmatprep.subr.bf16.mxu0 0
  %3036 = vmatpush1.bf16.msra.mxu0 0
  %3037 = vmatprep.subr.bf16.mxu0 0
  %3038 = vmatpush1.bf16.msra.mxu0 0
  %3039 = vmatprep.subr.bf16.mxu0 0
  %3040 = vmatpush1.bf16.msra.mxu0 0
  %3041 = vmatprep.subr.bf16.mxu0 0
  %3042 = vmatpush1.bf16.msra.mxu0 0
  %3043 = vmatprep.subr.bf16.mxu0 0
  %3044 = vmatpush1.bf16.msra.mxu0 0
  %3045 = vmatprep.subr.bf16.mxu0 0
  %3046 = vmatpush1.bf16.msra.mxu0 0
  %3047 = vmatprep.subr.bf16.mxu0 0
  %3048 = vmatpush1.bf16.msra.mxu0 0
  %3049 = vmatprep.subr.bf16.mxu0 0
  %3050 = vmatpush1.bf16.msra.mxu0 0
  %3051 = vmatprep.mubr.bf16.mxu0 0
  %3052 = vmatmul.mubr.bf16.gmra.mrb[0].mxu0 %v2945
  %v3053 = vpop.f32.mrb[0].mxu0
  %v3054 = vadd.f32 %v2969, %v3053
  %v3055 = vpop.f32.mrb[0].mxu0
  %v3056 = vpop.f32.mrb[0].mxu0
  %v3057 = vadd.f32 %v2969, %v3056
  %v3058 = vpop.f32.mrb[0].mxu0
  %3059 = vdwg.mxu0
  %v3060 = vadd.f32 %v2871, %v3054
  %v3061 = vadd.f32 %v2872, %v3057
  %s3062 = scalar_lea.vmem %s6, 7
  %v3063 = vld [vmem:[%s3062] sm:$0x1]
  %s3064 = scalar_lea.vmem %s6, 8
  %v3065 = vld [vmem:[%s3064] sm:$0x1]
  %v3066 = vsel %vm93, %v3060, 0.0
  %3067 = vadd.xlane.f32.xlu0 %v3066
  %v3068 = vpop.xlane.xlu0 %3067
  %v3069 = vsel %vm93, %v3061, 0.0
  %3070 = vadd.xlane.f32.xlu0 %v3069
  %v3071 = vpop.xlane.xlu0 %3070
  %v3072 = vmul.f32 %v3068, %v1316
  %v3073 = vmul.f32 %v3071, %v1316
  %v3074 = vmul.f32 %v3060, %v3060
  %v3075 = vmul.f32 %v3061, %v3061
  %v3076 = vsel %vm93, %v3074, 0.0
  %3077 = vadd.xlane.f32.xlu0 %v3076
  %v3078 = vpop.xlane.xlu0 %3077
  %v3079 = vsel %vm93, %v3075, 0.0
  %3080 = vadd.xlane.f32.xlu0 %v3079
  %v3081 = vpop.xlane.xlu0 %3080
  %v3082 = vmul.f32 %v3078, %v1316
  %v3083 = vmul.f32 %v3081, %v1316
  %v3084 = vmul.f32 %v3072, %v3072
  %v3085 = vmul.f32 %v3073, %v3073
  %v3086 = vsub.f32 %v3082, %v3084
  %v3087 = vsub.f32 %v3083, %v3085
  %v3088 = vmax.f32 %v3086, 0.0
  %v3089 = vmax.f32 %v3087, 0.0
  %v3090 = vsub.f32 %v3060, %v3072
  %v3091 = vsub.f32 %v3061, %v3073
  %v3092 = vadd.f32 %v3088, 1e-05
  %v3093 = vadd.f32 %v3089, 1e-05
  %v3094 = vrsqrt.pop %v3092
  %v3095 = vrsqrt.pop %v3093
  %v3096 = vmul.f32 %v3090, %v3094
  %v3097 = vmul.f32 %v3091, %v3095
  %v3099 = vlaneseq
  %v3100 = vshrl.u32 %v3099, 7
  %v3101 = vsub.s32 0, %v3100
  %v3102 = vrot.slane %v3063, %v3101
  %v3104 = vmul.f32 %v3096, %v3102
  %v3105 = vmul.f32 %v3097, %v3102
  %v3107 = vlaneseq
  %v3108 = vshrl.u32 %v3107, 7
  %v3109 = vsub.s32 0, %v3108
  %v3110 = vrot.slane %v3065, %v3109
  %v3112 = vadd.f32 %v3104, %v3110
  %v3113 = vadd.f32 %v3105, %v3110
  %v3114 = vpack.c.bf16 %v3113, %v3112
  %v3115 = vld [vmem:[%s10] sm:$0xf]
  %v3116 = vld [vmem:[%s10 + $0x4] sm:$0xf]
  %v3117 = vld [vmem:[%s10 + $0x8] sm:$0xf]
  %v3118 = vld [vmem:[%s10 + $0xc] sm:$0xf]
  %v3119 = vld [vmem:[%s11] sm:$0x1]
  %v3121 = vlaneseq
  %v3122 = vshrl.u32 %v3121, 7
  %v3123 = vsub.s32 0, %v3122
  %v3124 = vrot.slane %v3119, %v3123
  %v3130 = vunpack.c.l.b16 %v3115
  %v3131 = vunpack.c.l.b16 %v3116
  %v3132 = vunpack.c.l.b16 %v3117
  %v3133 = vunpack.c.l.b16 %v3118
  %v3134 = vpack.c.b16 %v3131, %v3130
  %v3135 = vpack.c.b16 %v3133, %v3132
  %v3139 = vsel %vm93, %v3114, 0
  %3141 = vmatprep.subr.bf16.mxu0 0
  %3142 = vmatpush1.bf16.msra.mxu0 %v3134
  %3143 = vmatprep.subr.bf16.mxu0 0
  %3144 = vmatpush1.bf16.msra.mxu0 %v3135
  %3145 = vmatprep.subr.bf16.mxu0 0
  %3146 = vmatpush1.bf16.msra.mxu0 0
  %3147 = vmatprep.subr.bf16.mxu0 0
  %3148 = vmatpush1.bf16.msra.mxu0 0
  %3149 = vmatprep.subr.bf16.mxu0 0
  %3150 = vmatpush1.bf16.msra.mxu0 0
  %3151 = vmatprep.subr.bf16.mxu0 0
  %3152 = vmatpush1.bf16.msra.mxu0 0
  %3153 = vmatprep.subr.bf16.mxu0 0
  %3154 = vmatpush1.bf16.msra.mxu0 0
  %3155 = vmatprep.subr.bf16.mxu0 0
  %3156 = vmatpush1.bf16.msra.mxu0 0
  %3157 = vmatprep.subr.bf16.mxu0 0
  %3158 = vmatpush1.bf16.msra.mxu0 0
  %3159 = vmatprep.subr.bf16.mxu0 0
  %3160 = vmatpush1.bf16.msra.mxu0 0
  %3161 = vmatprep.subr.bf16.mxu0 0
  %3162 = vmatpush1.bf16.msra.mxu0 0
  %3163 = vmatprep.subr.bf16.mxu0 0
  %3164 = vmatpush1.bf16.msra.mxu0 0
  %3165 = vmatprep.subr.bf16.mxu0 0
  %3166 = vmatpush1.bf16.msra.mxu0 0
  %3167 = vmatprep.subr.bf16.mxu0 0
  %3168 = vmatpush1.bf16.msra.mxu0 0
  %3169 = vmatprep.subr.bf16.mxu0 0
  %3170 = vmatpush1.bf16.msra.mxu0 0
  %3171 = vmatprep.subr.bf16.mxu0 0
  %3172 = vmatpush1.bf16.msra.mxu0 0
  %3173 = vmatprep.mubr.bf16.mxu0 0
  %3174 = vmatmul.mubr.bf16.gmra.mrb[0].mxu0 %v3139
  %v3175 = vpop.f32.mrb[0].mxu0
  %v3176 = vadd.f32 %v3124, %v3175
  %v3177 = vpop.f32.mrb[0].mxu0
  %v3178 = vpop.f32.mrb[0].mxu0
  %v3179 = vadd.f32 %v3124, %v3178
  %v3180 = vpop.f32.mrb[0].mxu0
  %3181 = vdwg.mxu0
  %3182 = vmax.xlane.f32.xlu0 %v3176
  %v3183 = vpop.xlane.xlu0 %3182
  %3184 = vmax.xlane.f32.xlu0 %v3179
  %v3185 = vpop.xlane.xlu0 %3184
  %v3186 = vsub.f32 %v3176, %v3183
  %v3187 = vsub.f32 %v3179, %v3185
  %v3188 = vmul.f32 %v3186, 1.442695
  %v3189 = vpow.pop %v3188
  %v3190 = vmul.f32 %v3187, 1.442695
  %v3191 = vpow.pop %v3190
  %3192 = vadd.xlane.f32.xlu0 %v3189
  %v3193 = vpop.xlane.xlu0 %3192
  %3194 = vadd.xlane.f32.xlu0 %v3191
  %v3195 = vpop.xlane.xlu0 %3194
  %v3196 = vlog2.pop %v3193
  %v3197 = vmul.f32 %v3196, 0.6931472
  %v3198 = vlog2.pop %v3195
  %v3199 = vmul.f32 %v3198, 0.6931472
  %v3200 = vadd.f32 %v3183, %v3197
  %v3201 = vadd.f32 %v3185, %v3199
  %v3202 = vld [vmem:[%s12] sm:$0xff]
  %v3203 = vld [vmem:[%s12 + $0x8] sm:$0xff]
  %3204 = vset.pattern.permute.xlu0 0
  %3205 = vperm.xlu0 %3204, %v3202
  %v3206 = vpop.permute.xlu0 %3205
  %3207 = vset.pattern.permute.xlu0 0
  %3208 = vperm.xlu0 %3207, %v3203
  %v3209 = vpop.permute.xlu0 %3208
  %vm3210 = vcmp.eq.s32.totalorder %v54, %v3206
  %vm3211 = vcmp.eq.s32.totalorder %v54, %v3209
  %v3212 = vsel %vm3210, %v3176, 0.0
  %v3213 = vsel %vm3211, %v3179, 0.0
  %3214 = vadd.xlane.f32.xlu0 %v3212
  %v3215 = vpop.xlane.xlu0 %3214
  %3216 = vadd.xlane.f32.xlu0 %v3213
  %v3217 = vpop.xlane.xlu0 %3216
  %v3218 = vsub.f32 %v3200, %v3215
  %v3219 = vsub.f32 %v3201, %v3217
  %vm3220 = vcmask 7168
  %3221 = vst.msk [vmem:[%s13] sm:$0xff] %vm3220, %v3218
  %3222 = vst.msk [vmem:[%s13 + $0x8] sm:$0xff] %vm3220, %v3219
  // Predicated region
  $region54: #{transformer_xl_forward.1} parent=0 // pred_check
    _
  $region55: #{transformer_xl_forward.1} parent=0 // pred_check_branch
    %3224 = sbr.rel (0) target = $region57
  $region56: #{transformer_xl_forward.1} parent=0 // pred_region
    _
  $region57: #{transformer_xl_forward.1} parent=0 // pred_fallthru
    _
  // Predicated region
  $region58: #{transformer_xl_forward.1} parent=0 // pred_check
    _
  $region59: #{transformer_xl_forward.1} parent=0 // pred_check_branch
    %3226 = sbr.rel (0) target = $region61
  $region60: #{transformer_xl_forward.1} parent=0 // pred_region
    _
  $region61: #{transformer_xl_forward.1} parent=0 // pred_fallthru
    _

</llo_original>
